<compile_context>
chip_gen: v7x
topology: tpu7x:2x2x1
jax: 0.10.0
libtpu: 0.0.40
codegen_flags: <defaults>
</compile_context>

<pallas_src>
import jax
import jax.numpy as jnp
from jax import lax
from jax.experimental import pallas as pl
from jax.experimental.pallas import tpu as pltpu


def fds_gru_kernel(xt_ref, xf_ref, wih_ref, whh_ref, gib_ref, bhhn_ref,
                   out_ref, h_ref):
    """One (tn rows) x (mc steps of M) chunk of the GRU recurrence.

    xt_ref, xf_ref : (tn, mc, D)   x_time / x_freq chunk
    wih_ref        : (D, 3D)       packed W_ih^T, gate order [r | z | n]
    whh_ref        : (D, 3D)       packed W_hh^T, gate order [r | z | n]
    gib_ref        : (1, 3D)       b_ih with b_hh_r / b_hh_z folded in
    bhhn_ref       : (1, D)        b_hh_n (must stay inside r * (.))
    out_ref        : (tn, mc, D)   output chunk, already in (N, M, D) layout
    h_ref          : (tn, D) f32   carry, persists across the M-chunk grid axis
    """
    tn, mc, D = out_ref.shape

    # New N tile -> reset the carried hidden state.
    @pl.when(pl.program_id(1) == 0)
    def _init():
        h_ref[...] = jnp.zeros_like(h_ref)

    wih = wih_ref[...]                                    # (D, 3D), hoisted
    whh = whh_ref[...]                                    # (D, 3D), hoisted
    # Hoist bias broadcasts out of the unrolled step loop.
    gib = jnp.broadcast_to(gib_ref[...].astype(jnp.float32), (tn, 3 * D))
    bhh_n = jnp.broadcast_to(bhhn_ref[...].astype(jnp.float32), (tn, D))

    # Input chunk; keep MXU operands in the weight dtype, accumulate in f32.
    xs = xt_ref[...].astype(jnp.float32) + xf_ref[...].astype(jnp.float32)
    xs_mx = xs if wih.dtype == jnp.float32 else xs.astype(wih.dtype)

    h = h_ref[...]                                        # read carry ONCE per chunk

    # Static partial unroll (mc steps, mc == 8 when M % 8 == 0): step j's gi matmul has
    # no dependence on h, so the scheduler overlaps it with step j-1's gate math.
    for j in range(mc):
        x_j = xs_mx[:, j, :]                              # (tn, D), static slice
        # Fused input projection (no GI HBM round trip) + fused 3-gate hidden matmul.
        gi = jnp.dot(x_j, wih, preferred_element_type=jnp.float32) + gib   # (tn, 3D)
        h_mx = h if whh.dtype == jnp.float32 else h.astype(whh.dtype)
        gh = jnp.dot(h_mx, whh, preferred_element_type=jnp.float32)        # (tn, 3D)

        # NOTE: for D a multiple of 128 these gate slices are lane-aligned (the
        # realistic case); for small D they cost a few XLU shuffles per step.
        r = jax.nn.sigmoid(gi[:, 0:D] + gh[:, 0:D])
        z = jax.nn.sigmoid(gi[:, D:2 * D] + gh[:, D:2 * D])
        n = jnp.tanh(gi[:, 2 * D:3 * D] + r * (gh[:, 2 * D:3 * D] + bhh_n))
        h = (1.0 - z) * n + z * h

        out_ref[:, j, :] = h.astype(out_ref.dtype)        # direct (N, M, D) layout

    h_ref[...] = h                                        # write carry ONCE per chunk


def _vmem_capacity_bytes():
    try:
        return int(pltpu.get_tpu_info().vmem_capacity_bytes)
    except Exception:
        return 64 * 1024 * 1024        # conservative (v7x-sized) fallback


def _choose_tiles(N, M, D, x_bytes, out_bytes, w_bytes):
    """VMEM-budget-aware tile selection (returns (tn, mc))."""
    # Block sublane dim must be a multiple of 8 or the full M extent.
    mc = 8 if M % 8 == 0 else M

    budget = int(_vmem_capacity_bytes() * 0.6)            # headroom for compiler scratch
    # Resident weights/biases are double-buffered by the pipeline (index never changes,
    # so they are only DMA'd once, but 2 buffers are allocated).
    resident = 2 * (2 * D * 3 * D * w_bytes + (3 * D + D) * 4)
    # Per N-row cost: double-buffered x_time/x_freq blocks + double-buffered output
    # block + the f32 carry scratch.
    per_row = (2 * 2 * mc * D * x_bytes) + (2 * mc * D * out_bytes) + D * 4
    tn_budget = max((budget - resident) // per_row, 1)

    # Keep >= 2 N tiles so the "parallel" axis can feed both v7x TensorCores.
    cap_rows = min(tn_budget, N if N < 16 else N // 2)
    divs = [d for d in range(1, N + 1) if N % d == 0 and d <= max(cap_rows, 1)]
    mult8 = [d for d in divs if d % 8 == 0]
    tn = max(mult8) if mult8 else max(divs)
    return tn, mc


@jax.jit
def frequency_delayed_stack(x_time, x_freq, wih_pk, whh_pk, gi_bias, bhh_n):
    """Pallas implementation of FrequencyDelayedStack.forward.

    x_time, x_freq : (B, T, M, D)
    wih_pk, whh_pk : (D, 3D)   packed transposed GRU weights, gate order [r | z | n]
    gi_bias        : (3D,)     b_ih with b_hh_r / b_hh_z folded in
    bhh_n          : (1, D)    b_hh_n (kept separate: lives inside r * gh_n)
    returns        : (B, T, M, D)
    """
    B, T, M, D = x_time.shape
    N = B * T
    out_dtype = x_time.dtype
    tn, mc = _choose_tiles(N, M, D,
                           x_time.dtype.itemsize,
                           jnp.dtype(out_dtype).itemsize,
                           wih_pk.dtype.itemsize)

    xt = x_time.reshape(N, M, D)
    xf = x_freq.reshape(N, M, D)
    gib2 = gi_bias.reshape(1, 3 * D)

    out = pl.pallas_call(
        fds_gru_kernel,
        out_shape=jax.ShapeDtypeStruct((N, M, D), out_dtype),
        grid_spec=pltpu.PrefetchScalarGridSpec(
            num_scalar_prefetch=0,
            grid=(N // tn, M // mc),                               # (N tiles, M chunks)
            in_specs=[
                pl.BlockSpec((tn, mc, D), lambda n, c: (n, c, 0)),  # x_time chunk
                pl.BlockSpec((tn, mc, D), lambda n, c: (n, c, 0)),  # x_freq chunk
                pl.BlockSpec((D, 3 * D), lambda n, c: (0, 0)),      # W_ih^T (resident)
                pl.BlockSpec((D, 3 * D), lambda n, c: (0, 0)),      # W_hh^T (resident)
                pl.BlockSpec((1, 3 * D), lambda n, c: (0, 0)),      # fused input bias
                pl.BlockSpec((1, D), lambda n, c: (0, 0)),          # b_hh_n
            ],
            out_specs=pl.BlockSpec((tn, mc, D), lambda n, c: (n, c, 0)),
            scratch_shapes=[pltpu.VMEM((tn, D), jnp.float32)],      # carried hidden state
        ),
        compiler_params=pltpu.CompilerParams(
            dimension_semantics=("parallel", "arbitrary"),          # N parallel, M serial
            vmem_limit_bytes=int(_vmem_capacity_bytes() * 0.85),
        ),
    )(xt, xf, wih_pk, whh_pk, gib2, bhh_n)

    # (N, M, D) -> (B, T, M, D): pure reshape, no transpose / extra HBM traffic.
    return out.reshape(B, T, M, D)


def reference_gru(x_time, x_freq, weight_ih, weight_hh, bias_ih, bias_hh):
    """Pure-JAX reference of the PyTorch module (lax.scan over M, original weights)."""
    B, T, M, D = x_time.shape
    x = (x_time.astype(jnp.float32) + x_freq.astype(jnp.float32)).reshape(B * T, M, D)
    wih_t = [weight_ih[i * D:(i + 1) * D].T for i in range(3)]
    whh_t = [weight_hh[i * D:(i + 1) * D].T for i in range(3)]
    bih = [bias_ih[i * D:(i + 1) * D] for i in range(3)]
    bhh = [bias_hh[i * D:(i + 1) * D] for i in range(3)]

    def step(h, x_t):
        gi = [x_t @ wih_t[i] + bih[i] for i in range(3)]
        gh = [h @ whh_t[i] + bhh[i] for i in range(3)]
        r = jax.nn.sigmoid(gi[0] + gh[0])
        z = jax.nn.sigmoid(gi[1] + gh[1])
        n = jnp.tanh(gi[2] + r * gh[2])
        h_new = (1.0 - z) * n + z * h
        return h_new, h_new

    h0 = jnp.zeros((B * T, D), jnp.float32)
    _, ys = lax.scan(step, h0, jnp.transpose(x, (1, 0, 2)))   # (M, N, D)
    return jnp.transpose(ys, (1, 0, 2)).reshape(B, T, M, D)


if __name__ == "__main__":
    # Small shapes consistent with the forward: x_time/x_freq are (B, T, M, D).
    # Chosen so the grid is (2, 2): exercises both the N-tile parallel axis and the
    # h-carry persistence / reset across the M-chunk axis.
    B, T, M, D = 2, 8, 16, 32
    key = jax.random.PRNGKey(0)
    k_xt, k_xf, k_wih, k_whh, k_bih, k_bhh = jax.random.split(key, 6)

    x_time = jax.random.normal(k_xt, (B, T, M, D), jnp.float32)
    x_freq = jax.random.normal(k_xf, (B, T, M, D), jnp.float32)

    # GRU params (nn.GRU(dims, dims)): weight_ih_l0 (3D, D), weight_hh_l0 (3D, D),
    # bias_ih_l0 (3D,), bias_hh_l0 (3D,).  Gate order [r | z | n].
    bound = 1.0 / float(D) ** 0.5
    weight_ih = jax.random.uniform(k_wih, (3 * D, D), jnp.float32, -bound, bound)
    weight_hh = jax.random.uniform(k_whh, (3 * D, D), jnp.float32, -bound, bound)
    bias_ih = jax.random.uniform(k_bih, (3 * D,), jnp.float32, -bound, bound)
    bias_hh = jax.random.uniform(k_bhh, (3 * D,), jnp.float32, -bound, bound)

    # Repack for the kernel: fused (D, 3D) weights; fold b_hh_r / b_hh_z into the GI
    # bias (they always appear summed with b_ih_r / b_ih_z); keep b_hh_n separate.
    wih_pk = weight_ih.T                                             # (D, 3D) [r | z | n]
    whh_pk = weight_hh.T                                             # (D, 3D) [r | z | n]
    gi_bias = bias_ih + jnp.concatenate(
        [bias_hh[:2 * D], jnp.zeros((D,), jnp.float32)])             # (3D,)
    bhh_n = bias_hh[2 * D:].reshape(1, D)                            # (1, D)

    y = frequency_delayed_stack(x_time, x_freq, wih_pk, whh_pk, gi_bias, bhh_n)
    y = jax.block_until_ready(y)

    y_ref = reference_gru(x_time, x_freq, weight_ih, weight_hh, bias_ih, bias_hh)
    assert y.shape == (B, T, M, D)
    assert jnp.allclose(y, y_ref, atol=1e-4, rtol=1e-4), "mismatch vs reference GRU"

    print("KERNEL_OK")
</pallas_src>

<mosaic_0001>
module attributes {stable_mosaic.version = 11 : i64} {
  func.func @fds_gru_kernel(%arg0: i32, %arg1: i32, %arg2: memref<8x8x32xf32, #tpu.memory_space<vmem>>, %arg3: memref<8x8x32xf32, #tpu.memory_space<vmem>>, %arg4: memref<32x96xf32, #tpu.memory_space<vmem>>, %arg5: memref<32x96xf32, #tpu.memory_space<vmem>>, %arg6: memref<1x96xf32, #tpu.memory_space<vmem>>, %arg7: memref<1x32xf32, #tpu.memory_space<vmem>>, %arg8: memref<8x8x32xf32, #tpu.memory_space<vmem>>, %arg9: memref<8x32xf32, #tpu.memory_space<vmem>>) attributes {dimension_semantics = [#tpu.dimension_semantics<parallel>, #tpu.dimension_semantics<arbitrary>], iteration_bounds = array<i64: 2, 2>, scalar_prefetch = 0 : i64, scratch_operands = 1 : i64, tpu.core_type = #tpu.core_type<tc>, window_params = [{transform_indices = @transform_0, window_bounds = array<i64: 8, 8, 32>}, {transform_indices = @transform_1, window_bounds = array<i64: 8, 8, 32>}, {pipeline_mode = #tpu.pipeline_mode<synchronous>, transform_indices = @transform_2, window_bounds = array<i64: 32, 96>}, {pipeline_mode = #tpu.pipeline_mode<synchronous>, transform_indices = @transform_3, window_bounds = array<i64: 32, 96>}, {pipeline_mode = #tpu.pipeline_mode<synchronous>, transform_indices = @transform_4, window_bounds = array<i64: 1, 96>}, {pipeline_mode = #tpu.pipeline_mode<synchronous>, transform_indices = @transform_5, window_bounds = array<i64: 1, 32>}, {transform_indices = @transform_6, window_bounds = array<i64: 8, 8, 32>}]} {
    %c0_i32 = arith.constant 0 : i32
    %0 = arith.cmpi eq, %arg1, %c0_i32 : i32
    %1 = arith.extui %0 : i1 to i32
    %c0_i32_0 = arith.constant 0 : i32
    %2 = arith.cmpi ne, %1, %c0_i32_0 : i32
    scf.if %2 {
      %cst_74 = arith.constant 0.000000e+00 : f32
      %296 = vector.broadcast %cst_74 : f32 to vector<8x32xf32>
      %c0_75 = arith.constant 0 : index
      %c0_76 = arith.constant 0 : index
      %297 = vector.load %arg9[%c0_75, %c0_76] : memref<8x32xf32, #tpu.memory_space<vmem>>, vector<8x32xf32>
      tpu.vector_store %arg9[%c0_75, %c0_76], %296 {strides = array<i32>} : memref<8x32xf32, #tpu.memory_space<vmem>>, vector<8x32xf32>,
    } else {
    }
    %c0 = arith.constant 0 : index
    %c0_1 = arith.constant 0 : index
    %3 = vector.load %arg4[%c0, %c0_1] : memref<32x96xf32, #tpu.memory_space<vmem>>, vector<32x96xf32>
    %c0_2 = arith.constant 0 : index
    %c0_3 = arith.constant 0 : index
    %4 = vector.load %arg5[%c0_2, %c0_3] : memref<32x96xf32, #tpu.memory_space<vmem>>, vector<32x96xf32>
    %c0_4 = arith.constant 0 : index
    %c0_5 = arith.constant 0 : index
    %5 = vector.load %arg6[%c0_4, %c0_5] : memref<1x96xf32, #tpu.memory_space<vmem>>, vector<1x96xf32>
    %6 = vector.shape_cast %5 : vector<1x96xf32> to vector<1x96xf32>
    %7 = vector.broadcast %6 : vector<1x96xf32> to vector<8x96xf32>
    %c0_6 = arith.constant 0 : index
    %c0_7 = arith.constant 0 : index
    %8 = vector.load %arg7[%c0_6, %c0_7] : memref<1x32xf32, #tpu.memory_space<vmem>>, vector<1x32xf32>
    %9 = vector.shape_cast %8 : vector<1x32xf32> to vector<1x32xf32>
    %10 = vector.broadcast %9 : vector<1x32xf32> to vector<8x32xf32>
    %c0_8 = arith.constant 0 : index
    %c0_9 = arith.constant 0 : index
    %c0_10 = arith.constant 0 : index
    %11 = vector.load %arg2[%c0_8, %c0_9, %c0_10] : memref<8x8x32xf32, #tpu.memory_space<vmem>>, vector<8x8x32xf32>
    %c0_11 = arith.constant 0 : index
    %c0_12 = arith.constant 0 : index
    %c0_13 = arith.constant 0 : index
    %12 = vector.load %arg3[%c0_11, %c0_12, %c0_13] : memref<8x8x32xf32, #tpu.memory_space<vmem>>, vector<8x8x32xf32>
    %13 = arith.addf %11, %12 : vector<8x8x32xf32>
    %c0_14 = arith.constant 0 : index
    %c0_15 = arith.constant 0 : index
    %14 = vector.load %arg9[%c0_14, %c0_15] : memref<8x32xf32, #tpu.memory_space<vmem>>, vector<8x32xf32>
    %15 = vector.extract_strided_slice %13 {offsets = [0, 0, 0], sizes = [8, 1, 32], strides = [1, 1, 1]} : vector<8x8x32xf32> to vector<8x1x32xf32>
    %16 = vector.shape_cast %15 : vector<8x1x32xf32> to vector<8x32xf32>
    %cst = arith.constant dense<0.000000e+00> : vector<8x96xf32>
    %17 = tpu.matmul %16, %3, %cst {dimension_numbers = #tpu.dot_dimension_numbers<[1], [0], [0], [1], [0, 0, 1, 1], [], []>} : vector<8x32xf32>, vector<32x96xf32>, vector<8x96xf32> -> vector<8x96xf32>
    %18 = arith.addf %17, %7 : vector<8x96xf32>
    %cst_16 = arith.constant dense<0.000000e+00> : vector<8x96xf32>
    %19 = tpu.matmul %14, %4, %cst_16 {dimension_numbers = #tpu.dot_dimension_numbers<[1], [0], [0], [1], [0, 0, 1, 1], [], []>} : vector<8x32xf32>, vector<32x96xf32>, vector<8x96xf32> -> vector<8x96xf32>
    %20 = vector.extract_strided_slice %18 {offsets = [0, 0], sizes = [8, 32], strides = [1, 1]} : vector<8x96xf32> to vector<8x32xf32>
    %21 = vector.extract_strided_slice %19 {offsets = [0, 0], sizes = [8, 32], strides = [1, 1]} : vector<8x96xf32> to vector<8x32xf32>
    %22 = arith.addf %20, %21 : vector<8x32xf32>
    %23 = arith.negf %22 : vector<8x32xf32>
    %24 = math.exp %23 : vector<8x32xf32>
    %cst_17 = arith.constant 1.000000e+00 : f32
    %25 = vector.broadcast %cst_17 : f32 to vector<8x32xf32>
    %26 = arith.addf %25, %24 : vector<8x32xf32>
    %27 = arith.divf %25, %26 : vector<8x32xf32>
    %28 = vector.extract_strided_slice %18 {offsets = [0, 32], sizes = [8, 32], strides = [1, 1]} : vector<8x96xf32> to vector<8x32xf32>
    %29 = vector.extract_strided_slice %19 {offsets = [0, 32], sizes = [8, 32], strides = [1, 1]} : vector<8x96xf32> to vector<8x32xf32>
    %30 = arith.addf %28, %29 : vector<8x32xf32>
    %31 = arith.negf %30 : vector<8x32xf32>
    %32 = math.exp %31 : vector<8x32xf32>
    %cst_18 = arith.constant 1.000000e+00 : f32
    %33 = vector.broadcast %cst_18 : f32 to vector<8x32xf32>
    %34 = arith.addf %33, %32 : vector<8x32xf32>
    %35 = arith.divf %33, %34 : vector<8x32xf32>
    %36 = vector.extract_strided_slice %18 {offsets = [0, 64], sizes = [8, 32], strides = [1, 1]} : vector<8x96xf32> to vector<8x32xf32>
    %37 = vector.extract_strided_slice %19 {offsets = [0, 64], sizes = [8, 32], strides = [1, 1]} : vector<8x96xf32> to vector<8x32xf32>
    %38 = arith.addf %37, %10 : vector<8x32xf32>
    %39 = arith.mulf %27, %38 : vector<8x32xf32>
    %40 = arith.addf %36, %39 : vector<8x32xf32>
    %41 = math.tanh %40 : vector<8x32xf32>
    %cst_19 = arith.constant 1.000000e+00 : f32
    %42 = vector.broadcast %cst_19 : f32 to vector<8x32xf32>
    %43 = arith.subf %42, %35 : vector<8x32xf32>
    %44 = arith.mulf %43, %41 : vector<8x32xf32>
    %45 = arith.mulf %35, %14 : vector<8x32xf32>
    %46 = arith.addf %44, %45 : vector<8x32xf32>
    %c0_20 = arith.constant 0 : index
    %c0_21 = arith.constant 0 : index
    %c0_22 = arith.constant 0 : index
    %47 = vector.load %arg8[%c0_20, %c0_21, %c0_22] : memref<8x8x32xf32, #tpu.memory_space<vmem>>, vector<8x1x32xf32>
    %48 = vector.shape_cast %47 : vector<8x1x32xf32> to vector<8x32xf32>
    %49 = vector.shape_cast %46 : vector<8x32xf32> to vector<8x1x32xf32>
    tpu.vector_store %arg8[%c0_20, %c0_21, %c0_22], %49 {strides = array<i32>} : memref<8x8x32xf32, #tpu.memory_space<vmem>>, vector<8x1x32xf32>,
    %50 = vector.extract_strided_slice %13 {offsets = [0, 1, 0], sizes = [8, 1, 32], strides = [1, 1, 1]} : vector<8x8x32xf32> to vector<8x1x32xf32>
    %51 = vector.shape_cast %50 : vector<8x1x32xf32> to vector<8x32xf32>
    %cst_23 = arith.constant dense<0.000000e+00> : vector<8x96xf32>
    %52 = tpu.matmul %51, %3, %cst_23 {dimension_numbers = #tpu.dot_dimension_numbers<[1], [0], [0], [1], [0, 0, 1, 1], [], []>} : vector<8x32xf32>, vector<32x96xf32>, vector<8x96xf32> -> vector<8x96xf32>
    %53 = arith.addf %52, %7 : vector<8x96xf32>
    %cst_24 = arith.constant dense<0.000000e+00> : vector<8x96xf32>
    %54 = tpu.matmul %46, %4, %cst_24 {dimension_numbers = #tpu.dot_dimension_numbers<[1], [0], [0], [1], [0, 0, 1, 1], [], []>} : vector<8x32xf32>, vector<32x96xf32>, vector<8x96xf32> -> vector<8x96xf32>
    %55 = vector.extract_strided_slice %53 {offsets = [0, 0], sizes = [8, 32], strides = [1, 1]} : vector<8x96xf32> to vector<8x32xf32>
    %56 = vector.extract_strided_slice %54 {offsets = [0, 0], sizes = [8, 32], strides = [1, 1]} : vector<8x96xf32> to vector<8x32xf32>
    %57 = arith.addf %55, %56 : vector<8x32xf32>
    %58 = arith.negf %57 : vector<8x32xf32>
    %59 = math.exp %58 : vector<8x32xf32>
    %cst_25 = arith.constant 1.000000e+00 : f32
    %60 = vector.broadcast %cst_25 : f32 to vector<8x32xf32>
    %61 = arith.addf %60, %59 : vector<8x32xf32>
    %62 = arith.divf %60, %61 : vector<8x32xf32>
    %63 = vector.extract_strided_slice %53 {offsets = [0, 32], sizes = [8, 32], strides = [1, 1]} : vector<8x96xf32> to vector<8x32xf32>
    %64 = vector.extract_strided_slice %54 {offsets = [0, 32], sizes = [8, 32], strides = [1, 1]} : vector<8x96xf32> to vector<8x32xf32>
    %65 = arith.addf %63, %64 : vector<8x32xf32>
    %66 = arith.negf %65 : vector<8x32xf32>
    %67 = math.exp %66 : vector<8x32xf32>
    %cst_26 = arith.constant 1.000000e+00 : f32
    %68 = vector.broadcast %cst_26 : f32 to vector<8x32xf32>
    %69 = arith.addf %68, %67 : vector<8x32xf32>
    %70 = arith.divf %68, %69 : vector<8x32xf32>
    %71 = vector.extract_strided_slice %53 {offsets = [0, 64], sizes = [8, 32], strides = [1, 1]} : vector<8x96xf32> to vector<8x32xf32>
    %72 = vector.extract_strided_slice %54 {offsets = [0, 64], sizes = [8, 32], strides = [1, 1]} : vector<8x96xf32> to vector<8x32xf32>
    %73 = arith.addf %72, %10 : vector<8x32xf32>
    %74 = arith.mulf %62, %73 : vector<8x32xf32>
    %75 = arith.addf %71, %74 : vector<8x32xf32>
    %76 = math.tanh %75 : vector<8x32xf32>
    %cst_27 = arith.constant 1.000000e+00 : f32
    %77 = vector.broadcast %cst_27 : f32 to vector<8x32xf32>
    %78 = arith.subf %77, %70 : vector<8x32xf32>
    %79 = arith.mulf %78, %76 : vector<8x32xf32>
    %80 = arith.mulf %70, %46 : vector<8x32xf32>
    %81 = arith.addf %79, %80 : vector<8x32xf32>
    %c0_28 = arith.constant 0 : index
    %c1 = arith.constant 1 : index
    %c0_29 = arith.constant 0 : index
    %82 = vector.load %arg8[%c0_28, %c1, %c0_29] : memref<8x8x32xf32, #tpu.memory_space<vmem>>, vector<8x1x32xf32>
    %83 = vector.shape_cast %82 : vector<8x1x32xf32> to vector<8x32xf32>
    %84 = vector.shape_cast %81 : vector<8x32xf32> to vector<8x1x32xf32>
    tpu.vector_store %arg8[%c0_28, %c1, %c0_29], %84 {strides = array<i32>} : memref<8x8x32xf32, #tpu.memory_space<vmem>>, vector<8x1x32xf32>,
    %85 = vector.extract_strided_slice %13 {offsets = [0, 2, 0], sizes = [8, 1, 32], strides = [1, 1, 1]} : vector<8x8x32xf32> to vector<8x1x32xf32>
    %86 = vector.shape_cast %85 : vector<8x1x32xf32> to vector<8x32xf32>
    %cst_30 = arith.constant dense<0.000000e+00> : vector<8x96xf32>
    %87 = tpu.matmul %86, %3, %cst_30 {dimension_numbers = #tpu.dot_dimension_numbers<[1], [0], [0], [1], [0, 0, 1, 1], [], []>} : vector<8x32xf32>, vector<32x96xf32>, vector<8x96xf32> -> vector<8x96xf32>
    %88 = arith.addf %87, %7 : vector<8x96xf32>
    %cst_31 = arith.constant dense<0.000000e+00> : vector<8x96xf32>
    %89 = tpu.matmul %81, %4, %cst_31 {dimension_numbers = #tpu.dot_dimension_numbers<[1], [0], [0], [1], [0, 0, 1, 1], [], []>} : vector<8x32xf32>, vector<32x96xf32>, vector<8x96xf32> -> vector<8x96xf32>
    %90 = vector.extract_strided_slice %88 {offsets = [0, 0], sizes = [8, 32], strides = [1, 1]} : vector<8x96xf32> to vector<8x32xf32>
    %91 = vector.extract_strided_slice %89 {offsets = [0, 0], sizes = [8, 32], strides = [1, 1]} : vector<8x96xf32> to vector<8x32xf32>
    %92 = arith.addf %90, %91 : vector<8x32xf32>
    %93 = arith.negf %92 : vector<8x32xf32>
    %94 = math.exp %93 : vector<8x32xf32>
    %cst_32 = arith.constant 1.000000e+00 : f32
    %95 = vector.broadcast %cst_32 : f32 to vector<8x32xf32>
    %96 = arith.addf %95, %94 : vector<8x32xf32>
    %97 = arith.divf %95, %96 : vector<8x32xf32>
    %98 = vector.extract_strided_slice %88 {offsets = [0, 32], sizes = [8, 32], strides = [1, 1]} : vector<8x96xf32> to vector<8x32xf32>
    %99 = vector.extract_strided_slice %89 {offsets = [0, 32], sizes = [8, 32], strides = [1, 1]} : vector<8x96xf32> to vector<8x32xf32>
    %100 = arith.addf %98, %99 : vector<8x32xf32>
    %101 = arith.negf %100 : vector<8x32xf32>
    %102 = math.exp %101 : vector<8x32xf32>
    %cst_33 = arith.constant 1.000000e+00 : f32
    %103 = vector.broadcast %cst_33 : f32 to vector<8x32xf32>
    %104 = arith.addf %103, %102 : vector<8x32xf32>
    %105 = arith.divf %103, %104 : vector<8x32xf32>
    %106 = vector.extract_strided_slice %88 {offsets = [0, 64], sizes = [8, 32], strides = [1, 1]} : vector<8x96xf32> to vector<8x32xf32>
    %107 = vector.extract_strided_slice %89 {offsets = [0, 64], sizes = [8, 32], strides = [1, 1]} : vector<8x96xf32> to vector<8x32xf32>
    %108 = arith.addf %107, %10 : vector<8x32xf32>
    %109 = arith.mulf %97, %108 : vector<8x32xf32>
    %110 = arith.addf %106, %109 : vector<8x32xf32>
    %111 = math.tanh %110 : vector<8x32xf32>
    %cst_34 = arith.constant 1.000000e+00 : f32
    %112 = vector.broadcast %cst_34 : f32 to vector<8x32xf32>
    %113 = arith.subf %112, %105 : vector<8x32xf32>
    %114 = arith.mulf %113, %111 : vector<8x32xf32>
    %115 = arith.mulf %105, %81 : vector<8x32xf32>
    %116 = arith.addf %114, %115 : vector<8x32xf32>
    %c0_35 = arith.constant 0 : index
    %c2 = arith.constant 2 : index
    %c0_36 = arith.constant 0 : index
    %117 = vector.load %arg8[%c0_35, %c2, %c0_36] : memref<8x8x32xf32, #tpu.memory_space<vmem>>, vector<8x1x32xf32>
    %118 = vector.shape_cast %117 : vector<8x1x32xf32> to vector<8x32xf32>
    %119 = vector.shape_cast %116 : vector<8x32xf32> to vector<8x1x32xf32>
    tpu.vector_store %arg8[%c0_35, %c2, %c0_36], %119 {strides = array<i32>} : memref<8x8x32xf32, #tpu.memory_space<vmem>>, vector<8x1x32xf32>,
    %120 = vector.extract_strided_slice %13 {offsets = [0, 3, 0], sizes = [8, 1, 32], strides = [1, 1, 1]} : vector<8x8x32xf32> to vector<8x1x32xf32>
    %121 = vector.shape_cast %120 : vector<8x1x32xf32> to vector<8x32xf32>
    %cst_37 = arith.constant dense<0.000000e+00> : vector<8x96xf32>
    %122 = tpu.matmul %121, %3, %cst_37 {dimension_numbers = #tpu.dot_dimension_numbers<[1], [0], [0], [1], [0, 0, 1, 1], [], []>} : vector<8x32xf32>, vector<32x96xf32>, vector<8x96xf32> -> vector<8x96xf32>
    %123 = arith.addf %122, %7 : vector<8x96xf32>
    %cst_38 = arith.constant dense<0.000000e+00> : vector<8x96xf32>
    %124 = tpu.matmul %116, %4, %cst_38 {dimension_numbers = #tpu.dot_dimension_numbers<[1], [0], [0], [1], [0, 0, 1, 1], [], []>} : vector<8x32xf32>, vector<32x96xf32>, vector<8x96xf32> -> vector<8x96xf32>
    %125 = vector.extract_strided_slice %123 {offsets = [0, 0], sizes = [8, 32], strides = [1, 1]} : vector<8x96xf32> to vector<8x32xf32>
    %126 = vector.extract_strided_slice %124 {offsets = [0, 0], sizes = [8, 32], strides = [1, 1]} : vector<8x96xf32> to vector<8x32xf32>
    %127 = arith.addf %125, %126 : vector<8x32xf32>
    %128 = arith.negf %127 : vector<8x32xf32>
    %129 = math.exp %128 : vector<8x32xf32>
    %cst_39 = arith.constant 1.000000e+00 : f32
    %130 = vector.broadcast %cst_39 : f32 to vector<8x32xf32>
    %131 = arith.addf %130, %129 : vector<8x32xf32>
    %132 = arith.divf %130, %131 : vector<8x32xf32>
    %133 = vector.extract_strided_slice %123 {offsets = [0, 32], sizes = [8, 32], strides = [1, 1]} : vector<8x96xf32> to vector<8x32xf32>
    %134 = vector.extract_strided_slice %124 {offsets = [0, 32], sizes = [8, 32], strides = [1, 1]} : vector<8x96xf32> to vector<8x32xf32>
    %135 = arith.addf %133, %134 : vector<8x32xf32>
    %136 = arith.negf %135 : vector<8x32xf32>
    %137 = math.exp %136 : vector<8x32xf32>
    %cst_40 = arith.constant 1.000000e+00 : f32
    %138 = vector.broadcast %cst_40 : f32 to vector<8x32xf32>
    %139 = arith.addf %138, %137 : vector<8x32xf32>
    %140 = arith.divf %138, %139 : vector<8x32xf32>
    %141 = vector.extract_strided_slice %123 {offsets = [0, 64], sizes = [8, 32], strides = [1, 1]} : vector<8x96xf32> to vector<8x32xf32>
    %142 = vector.extract_strided_slice %124 {offsets = [0, 64], sizes = [8, 32], strides = [1, 1]} : vector<8x96xf32> to vector<8x32xf32>
    %143 = arith.addf %142, %10 : vector<8x32xf32>
    %144 = arith.mulf %132, %143 : vector<8x32xf32>
    %145 = arith.addf %141, %144 : vector<8x32xf32>
    %146 = math.tanh %145 : vector<8x32xf32>
    %cst_41 = arith.constant 1.000000e+00 : f32
    %147 = vector.broadcast %cst_41 : f32 to vector<8x32xf32>
    %148 = arith.subf %147, %140 : vector<8x32xf32>
    %149 = arith.mulf %148, %146 : vector<8x32xf32>
    %150 = arith.mulf %140, %116 : vector<8x32xf32>
    %151 = arith.addf %149, %150 : vector<8x32xf32>
    %c0_42 = arith.constant 0 : index
    %c3 = arith.constant 3 : index
    %c0_43 = arith.constant 0 : index
    %152 = vector.load %arg8[%c0_42, %c3, %c0_43] : memref<8x8x32xf32, #tpu.memory_space<vmem>>, vector<8x1x32xf32>
    %153 = vector.shape_cast %152 : vector<8x1x32xf32> to vector<8x32xf32>
    %154 = vector.shape_cast %151 : vector<8x32xf32> to vector<8x1x32xf32>
    tpu.vector_store %arg8[%c0_42, %c3, %c0_43], %154 {strides = array<i32>} : memref<8x8x32xf32, #tpu.memory_space<vmem>>, vector<8x1x32xf32>,
    %155 = vector.extract_strided_slice %13 {offsets = [0, 4, 0], sizes = [8, 1, 32], strides = [1, 1, 1]} : vector<8x8x32xf32> to vector<8x1x32xf32>
    %156 = vector.shape_cast %155 : vector<8x1x32xf32> to vector<8x32xf32>
    %cst_44 = arith.constant dense<0.000000e+00> : vector<8x96xf32>
    %157 = tpu.matmul %156, %3, %cst_44 {dimension_numbers = #tpu.dot_dimension_numbers<[1], [0], [0], [1], [0, 0, 1, 1], [], []>} : vector<8x32xf32>, vector<32x96xf32>, vector<8x96xf32> -> vector<8x96xf32>
    %158 = arith.addf %157, %7 : vector<8x96xf32>
    %cst_45 = arith.constant dense<0.000000e+00> : vector<8x96xf32>
    %159 = tpu.matmul %151, %4, %cst_45 {dimension_numbers = #tpu.dot_dimension_numbers<[1], [0], [0], [1], [0, 0, 1, 1], [], []>} : vector<8x32xf32>, vector<32x96xf32>, vector<8x96xf32> -> vector<8x96xf32>
    %160 = vector.extract_strided_slice %158 {offsets = [0, 0], sizes = [8, 32], strides = [1, 1]} : vector<8x96xf32> to vector<8x32xf32>
    %161 = vector.extract_strided_slice %159 {offsets = [0, 0], sizes = [8, 32], strides = [1, 1]} : vector<8x96xf32> to vector<8x32xf32>
    %162 = arith.addf %160, %161 : vector<8x32xf32>
    %163 = arith.negf %162 : vector<8x32xf32>
    %164 = math.exp %163 : vector<8x32xf32>
    %cst_46 = arith.constant 1.000000e+00 : f32
    %165 = vector.broadcast %cst_46 : f32 to vector<8x32xf32>
    %166 = arith.addf %165, %164 : vector<8x32xf32>
    %167 = arith.divf %165, %166 : vector<8x32xf32>
    %168 = vector.extract_strided_slice %158 {offsets = [0, 32], sizes = [8, 32], strides = [1, 1]} : vector<8x96xf32> to vector<8x32xf32>
    %169 = vector.extract_strided_slice %159 {offsets = [0, 32], sizes = [8, 32], strides = [1, 1]} : vector<8x96xf32> to vector<8x32xf32>
    %170 = arith.addf %168, %169 : vector<8x32xf32>
    %171 = arith.negf %170 : vector<8x32xf32>
    %172 = math.exp %171 : vector<8x32xf32>
    %cst_47 = arith.constant 1.000000e+00 : f32
    %173 = vector.broadcast %cst_47 : f32 to vector<8x32xf32>
    %174 = arith.addf %173, %172 : vector<8x32xf32>
    %175 = arith.divf %173, %174 : vector<8x32xf32>
    %176 = vector.extract_strided_slice %158 {offsets = [0, 64], sizes = [8, 32], strides = [1, 1]} : vector<8x96xf32> to vector<8x32xf32>
    %177 = vector.extract_strided_slice %159 {offsets = [0, 64], sizes = [8, 32], strides = [1, 1]} : vector<8x96xf32> to vector<8x32xf32>
    %178 = arith.addf %177, %10 : vector<8x32xf32>
    %179 = arith.mulf %167, %178 : vector<8x32xf32>
    %180 = arith.addf %176, %179 : vector<8x32xf32>
    %181 = math.tanh %180 : vector<8x32xf32>
    %cst_48 = arith.constant 1.000000e+00 : f32
    %182 = vector.broadcast %cst_48 : f32 to vector<8x32xf32>
    %183 = arith.subf %182, %175 : vector<8x32xf32>
    %184 = arith.mulf %183, %181 : vector<8x32xf32>
    %185 = arith.mulf %175, %151 : vector<8x32xf32>
    %186 = arith.addf %184, %185 : vector<8x32xf32>
    %c0_49 = arith.constant 0 : index
    %c4 = arith.constant 4 : index
    %c0_50 = arith.constant 0 : index
    %187 = vector.load %arg8[%c0_49, %c4, %c0_50] : memref<8x8x32xf32, #tpu.memory_space<vmem>>, vector<8x1x32xf32>
    %188 = vector.shape_cast %187 : vector<8x1x32xf32> to vector<8x32xf32>
    %189 = vector.shape_cast %186 : vector<8x32xf32> to vector<8x1x32xf32>
    tpu.vector_store %arg8[%c0_49, %c4, %c0_50], %189 {strides = array<i32>} : memref<8x8x32xf32, #tpu.memory_space<vmem>>, vector<8x1x32xf32>,
    %190 = vector.extract_strided_slice %13 {offsets = [0, 5, 0], sizes = [8, 1, 32], strides = [1, 1, 1]} : vector<8x8x32xf32> to vector<8x1x32xf32>
    %191 = vector.shape_cast %190 : vector<8x1x32xf32> to vector<8x32xf32>
    %cst_51 = arith.constant dense<0.000000e+00> : vector<8x96xf32>
    %192 = tpu.matmul %191, %3, %cst_51 {dimension_numbers = #tpu.dot_dimension_numbers<[1], [0], [0], [1], [0, 0, 1, 1], [], []>} : vector<8x32xf32>, vector<32x96xf32>, vector<8x96xf32> -> vector<8x96xf32>
    %193 = arith.addf %192, %7 : vector<8x96xf32>
    %cst_52 = arith.constant dense<0.000000e+00> : vector<8x96xf32>
    %194 = tpu.matmul %186, %4, %cst_52 {dimension_numbers = #tpu.dot_dimension_numbers<[1], [0], [0], [1], [0, 0, 1, 1], [], []>} : vector<8x32xf32>, vector<32x96xf32>, vector<8x96xf32> -> vector<8x96xf32>
    %195 = vector.extract_strided_slice %193 {offsets = [0, 0], sizes = [8, 32], strides = [1, 1]} : vector<8x96xf32> to vector<8x32xf32>
    %196 = vector.extract_strided_slice %194 {offsets = [0, 0], sizes = [8, 32], strides = [1, 1]} : vector<8x96xf32> to vector<8x32xf32>
    %197 = arith.addf %195, %196 : vector<8x32xf32>
    %198 = arith.negf %197 : vector<8x32xf32>
    %199 = math.exp %198 : vector<8x32xf32>
    %cst_53 = arith.constant 1.000000e+00 : f32
    %200 = vector.broadcast %cst_53 : f32 to vector<8x32xf32>
    %201 = arith.addf %200, %199 : vector<8x32xf32>
    %202 = arith.divf %200, %201 : vector<8x32xf32>
    %203 = vector.extract_strided_slice %193 {offsets = [0, 32], sizes = [8, 32], strides = [1, 1]} : vector<8x96xf32> to vector<8x32xf32>
    %204 = vector.extract_strided_slice %194 {offsets = [0, 32], sizes = [8, 32], strides = [1, 1]} : vector<8x96xf32> to vector<8x32xf32>
    %205 = arith.addf %203, %204 : vector<8x32xf32>
    %206 = arith.negf %205 : vector<8x32xf32>
    %207 = math.exp %206 : vector<8x32xf32>
    %cst_54 = arith.constant 1.000000e+00 : f32
    %208 = vector.broadcast %cst_54 : f32 to vector<8x32xf32>
    %209 = arith.addf %208, %207 : vector<8x32xf32>
    %210 = arith.divf %208, %209 : vector<8x32xf32>
    %211 = vector.extract_strided_slice %193 {offsets = [0, 64], sizes = [8, 32], strides = [1, 1]} : vector<8x96xf32> to vector<8x32xf32>
    %212 = vector.extract_strided_slice %194 {offsets = [0, 64], sizes = [8, 32], strides = [1, 1]} : vector<8x96xf32> to vector<8x32xf32>
    %213 = arith.addf %212, %10 : vector<8x32xf32>
    %214 = arith.mulf %202, %213 : vector<8x32xf32>
    %215 = arith.addf %211, %214 : vector<8x32xf32>
    %216 = math.tanh %215 : vector<8x32xf32>
    %cst_55 = arith.constant 1.000000e+00 : f32
    %217 = vector.broadcast %cst_55 : f32 to vector<8x32xf32>
    %218 = arith.subf %217, %210 : vector<8x32xf32>
    %219 = arith.mulf %218, %216 : vector<8x32xf32>
    %220 = arith.mulf %210, %186 : vector<8x32xf32>
    %221 = arith.addf %219, %220 : vector<8x32xf32>
    %c0_56 = arith.constant 0 : index
    %c5 = arith.constant 5 : index
    %c0_57 = arith.constant 0 : index
    %222 = vector.load %arg8[%c0_56, %c5, %c0_57] : memref<8x8x32xf32, #tpu.memory_space<vmem>>, vector<8x1x32xf32>
    %223 = vector.shape_cast %222 : vector<8x1x32xf32> to vector<8x32xf32>
    %224 = vector.shape_cast %221 : vector<8x32xf32> to vector<8x1x32xf32>
    tpu.vector_store %arg8[%c0_56, %c5, %c0_57], %224 {strides = array<i32>} : memref<8x8x32xf32, #tpu.memory_space<vmem>>, vector<8x1x32xf32>,
    %225 = vector.extract_strided_slice %13 {offsets = [0, 6, 0], sizes = [8, 1, 32], strides = [1, 1, 1]} : vector<8x8x32xf32> to vector<8x1x32xf32>
    %226 = vector.shape_cast %225 : vector<8x1x32xf32> to vector<8x32xf32>
    %cst_58 = arith.constant dense<0.000000e+00> : vector<8x96xf32>
    %227 = tpu.matmul %226, %3, %cst_58 {dimension_numbers = #tpu.dot_dimension_numbers<[1], [0], [0], [1], [0, 0, 1, 1], [], []>} : vector<8x32xf32>, vector<32x96xf32>, vector<8x96xf32> -> vector<8x96xf32>
    %228 = arith.addf %227, %7 : vector<8x96xf32>
    %cst_59 = arith.constant dense<0.000000e+00> : vector<8x96xf32>
    %229 = tpu.matmul %221, %4, %cst_59 {dimension_numbers = #tpu.dot_dimension_numbers<[1], [0], [0], [1], [0, 0, 1, 1], [], []>} : vector<8x32xf32>, vector<32x96xf32>, vector<8x96xf32> -> vector<8x96xf32>
    %230 = vector.extract_strided_slice %228 {offsets = [0, 0], sizes = [8, 32], strides = [1, 1]} : vector<8x96xf32> to vector<8x32xf32>
    %231 = vector.extract_strided_slice %229 {offsets = [0, 0], sizes = [8, 32], strides = [1, 1]} : vector<8x96xf32> to vector<8x32xf32>
    %232 = arith.addf %230, %231 : vector<8x32xf32>
    %233 = arith.negf %232 : vector<8x32xf32>
    %234 = math.exp %233 : vector<8x32xf32>
    %cst_60 = arith.constant 1.000000e+00 : f32
    %235 = vector.broadcast %cst_60 : f32 to vector<8x32xf32>
    %236 = arith.addf %235, %234 : vector<8x32xf32>
    %237 = arith.divf %235, %236 : vector<8x32xf32>
    %238 = vector.extract_strided_slice %228 {offsets = [0, 32], sizes = [8, 32], strides = [1, 1]} : vector<8x96xf32> to vector<8x32xf32>
    %239 = vector.extract_strided_slice %229 {offsets = [0, 32], sizes = [8, 32], strides = [1, 1]} : vector<8x96xf32> to vector<8x32xf32>
    %240 = arith.addf %238, %239 : vector<8x32xf32>
    %241 = arith.negf %240 : vector<8x32xf32>
    %242 = math.exp %241 : vector<8x32xf32>
    %cst_61 = arith.constant 1.000000e+00 : f32
    %243 = vector.broadcast %cst_61 : f32 to vector<8x32xf32>
    %244 = arith.addf %243, %242 : vector<8x32xf32>
    %245 = arith.divf %243, %244 : vector<8x32xf32>
    %246 = vector.extract_strided_slice %228 {offsets = [0, 64], sizes = [8, 32], strides = [1, 1]} : vector<8x96xf32> to vector<8x32xf32>
    %247 = vector.extract_strided_slice %229 {offsets = [0, 64], sizes = [8, 32], strides = [1, 1]} : vector<8x96xf32> to vector<8x32xf32>
    %248 = arith.addf %247, %10 : vector<8x32xf32>
    %249 = arith.mulf %237, %248 : vector<8x32xf32>
    %250 = arith.addf %246, %249 : vector<8x32xf32>
    %251 = math.tanh %250 : vector<8x32xf32>
    %cst_62 = arith.constant 1.000000e+00 : f32
    %252 = vector.broadcast %cst_62 : f32 to vector<8x32xf32>
    %253 = arith.subf %252, %245 : vector<8x32xf32>
    %254 = arith.mulf %253, %251 : vector<8x32xf32>
    %255 = arith.mulf %245, %221 : vector<8x32xf32>
    %256 = arith.addf %254, %255 : vector<8x32xf32>
    %c0_63 = arith.constant 0 : index
    %c6 = arith.constant 6 : index
    %c0_64 = arith.constant 0 : index
    %257 = vector.load %arg8[%c0_63, %c6, %c0_64] : memref<8x8x32xf32, #tpu.memory_space<vmem>>, vector<8x1x32xf32>
    %258 = vector.shape_cast %257 : vector<8x1x32xf32> to vector<8x32xf32>
    %259 = vector.shape_cast %256 : vector<8x32xf32> to vector<8x1x32xf32>
    tpu.vector_store %arg8[%c0_63, %c6, %c0_64], %259 {strides = array<i32>} : memref<8x8x32xf32, #tpu.memory_space<vmem>>, vector<8x1x32xf32>,
    %260 = vector.extract_strided_slice %13 {offsets = [0, 7, 0], sizes = [8, 1, 32], strides = [1, 1, 1]} : vector<8x8x32xf32> to vector<8x1x32xf32>
    %261 = vector.shape_cast %260 : vector<8x1x32xf32> to vector<8x32xf32>
    %cst_65 = arith.constant dense<0.000000e+00> : vector<8x96xf32>
    %262 = tpu.matmul %261, %3, %cst_65 {dimension_numbers = #tpu.dot_dimension_numbers<[1], [0], [0], [1], [0, 0, 1, 1], [], []>} : vector<8x32xf32>, vector<32x96xf32>, vector<8x96xf32> -> vector<8x96xf32>
    %263 = arith.addf %262, %7 : vector<8x96xf32>
    %cst_66 = arith.constant dense<0.000000e+00> : vector<8x96xf32>
    %264 = tpu.matmul %256, %4, %cst_66 {dimension_numbers = #tpu.dot_dimension_numbers<[1], [0], [0], [1], [0, 0, 1, 1], [], []>} : vector<8x32xf32>, vector<32x96xf32>, vector<8x96xf32> -> vector<8x96xf32>
    %265 = vector.extract_strided_slice %263 {offsets = [0, 0], sizes = [8, 32], strides = [1, 1]} : vector<8x96xf32> to vector<8x32xf32>
    %266 = vector.extract_strided_slice %264 {offsets = [0, 0], sizes = [8, 32], strides = [1, 1]} : vector<8x96xf32> to vector<8x32xf32>
    %267 = arith.addf %265, %266 : vector<8x32xf32>
    %268 = arith.negf %267 : vector<8x32xf32>
    %269 = math.exp %268 : vector<8x32xf32>
    %cst_67 = arith.constant 1.000000e+00 : f32
    %270 = vector.broadcast %cst_67 : f32 to vector<8x32xf32>
    %271 = arith.addf %270, %269 : vector<8x32xf32>
    %272 = arith.divf %270, %271 : vector<8x32xf32>
    %273 = vector.extract_strided_slice %263 {offsets = [0, 32], sizes = [8, 32], strides = [1, 1]} : vector<8x96xf32> to vector<8x32xf32>
    %274 = vector.extract_strided_slice %264 {offsets = [0, 32], sizes = [8, 32], strides = [1, 1]} : vector<8x96xf32> to vector<8x32xf32>
    %275 = arith.addf %273, %274 : vector<8x32xf32>
    %276 = arith.negf %275 : vector<8x32xf32>
    %277 = math.exp %276 : vector<8x32xf32>
    %cst_68 = arith.constant 1.000000e+00 : f32
    %278 = vector.broadcast %cst_68 : f32 to vector<8x32xf32>
    %279 = arith.addf %278, %277 : vector<8x32xf32>
    %280 = arith.divf %278, %279 : vector<8x32xf32>
    %281 = vector.extract_strided_slice %263 {offsets = [0, 64], sizes = [8, 32], strides = [1, 1]} : vector<8x96xf32> to vector<8x32xf32>
    %282 = vector.extract_strided_slice %264 {offsets = [0, 64], sizes = [8, 32], strides = [1, 1]} : vector<8x96xf32> to vector<8x32xf32>
    %283 = arith.addf %282, %10 : vector<8x32xf32>
    %284 = arith.mulf %272, %283 : vector<8x32xf32>
    %285 = arith.addf %281, %284 : vector<8x32xf32>
    %286 = math.tanh %285 : vector<8x32xf32>
    %cst_69 = arith.constant 1.000000e+00 : f32
    %287 = vector.broadcast %cst_69 : f32 to vector<8x32xf32>
    %288 = arith.subf %287, %280 : vector<8x32xf32>
    %289 = arith.mulf %288, %286 : vector<8x32xf32>
    %290 = arith.mulf %280, %256 : vector<8x32xf32>
    %291 = arith.addf %289, %290 : vector<8x32xf32>
    %c0_70 = arith.constant 0 : index
    %c7 = arith.constant 7 : index
    %c0_71 = arith.constant 0 : index
    %292 = vector.load %arg8[%c0_70, %c7, %c0_71] : memref<8x8x32xf32, #tpu.memory_space<vmem>>, vector<8x1x32xf32>
    %293 = vector.shape_cast %292 : vector<8x1x32xf32> to vector<8x32xf32>
    %294 = vector.shape_cast %291 : vector<8x32xf32> to vector<8x1x32xf32>
    tpu.vector_store %arg8[%c0_70, %c7, %c0_71], %294 {strides = array<i32>} : memref<8x8x32xf32, #tpu.memory_space<vmem>>, vector<8x1x32xf32>,
    %c0_72 = arith.constant 0 : index
    %c0_73 = arith.constant 0 : index
    %295 = vector.load %arg9[%c0_72, %c0_73] : memref<8x32xf32, #tpu.memory_space<vmem>>, vector<8x32xf32>
    tpu.vector_store %arg9[%c0_72, %c0_73], %291 {strides = array<i32>} : memref<8x32xf32, #tpu.memory_space<vmem>>, vector<8x32xf32>,
    return
  }
  func.func @transform_0(%arg0: i32, %arg1: i32) -> (i32, i32, i32) {
    %c0_i32 = arith.constant 0 : i32
    %c0_i32_0 = arith.constant 0 : i32
    return %arg0, %arg1, %c0_i32 : i32, i32, i32
  }
  func.func @transform_1(%arg0: i32, %arg1: i32) -> (i32, i32, i32) {
    %c0_i32 = arith.constant 0 : i32
    %c0_i32_0 = arith.constant 0 : i32
    return %arg0, %arg1, %c0_i32 : i32, i32, i32
  }
  func.func @transform_2(%arg0: i32, %arg1: i32) -> (i32, i32) {
    %c0_i32 = arith.constant 0 : i32
    %c0_i32_0 = arith.constant 0 : i32
    %c0_i32_1 = arith.constant 0 : i32
    return %c0_i32, %c0_i32_0 : i32, i32
  }
  func.func @transform_3(%arg0: i32, %arg1: i32) -> (i32, i32) {
    %c0_i32 = arith.constant 0 : i32
    %c0_i32_0 = arith.constant 0 : i32
    %c0_i32_1 = arith.constant 0 : i32
    return %c0_i32, %c0_i32_0 : i32, i32
  }
  func.func @transform_4(%arg0: i32, %arg1: i32) -> (i32, i32) {
    %c0_i32 = arith.constant 0 : i32
    %c0_i32_0 = arith.constant 0 : i32
    %c0_i32_1 = arith.constant 0 : i32
    return %c0_i32, %c0_i32_0 : i32, i32
  }
  func.func @transform_5(%arg0: i32, %arg1: i32) -> (i32, i32) {
    %c0_i32 = arith.constant 0 : i32
    %c0_i32_0 = arith.constant 0 : i32
    %c0_i32_1 = arith.constant 0 : i32
    return %c0_i32, %c0_i32_0 : i32, i32
  }
  func.func @transform_6(%arg0: i32, %arg1: i32) -> (i32, i32, i32) {
    %c0_i32 = arith.constant 0 : i32
    %c0_i32_0 = arith.constant 0 : i32
    return %arg0, %arg1, %c0_i32 : i32, i32, i32
  }
}

</mosaic_0001>

<llo_original>
// kernel: frequency_delayed_stack.1
$region0: #{frequency_delayed_stack.1}
  #allocation0 [shape = 'u32[]', space=smem, size = 0x4, offset = 0x4, fixed_abs, tag = 'smem constant byte address 0x4 - core index']
  #allocation1 [shape = 'u32[144,128]{1,0:T(1,128)}', space=vmem, size = 0x12000, scoped, tag = 'internal scratch']
  #allocation2 [shape = 'f32[8,32]{1,0:T(8,128)}', space=vmem, size = 0x1000, scoped, tag = 'scratch operand']
  %s0 = inlined_call_operand.hbm [shape: f32[16,16,32], index: 0, kind: input, shape index: {}]
  %s1 = inlined_call_operand.hbm [shape: f32[16,16,32], index: 1, kind: input, shape index: {}]
  %s2 = inlined_call_operand.hbm [shape: f32[32,96], index: 2, kind: input, shape index: {}]
  %s3 = inlined_call_operand.hbm [shape: f32[32,96], index: 3, kind: input, shape index: {}]
  %s4 = inlined_call_operand.vmem [shape: f32[1,96], index: 4, kind: input, shape index: {}]
  %s5 = inlined_call_operand.vmem [shape: f32[1,32], index: 5, kind: input, shape index: {}]
  %s6 = inlined_call_operand.hbm [shape: f32[16,16,32], index: 6, kind: output, shape index: {}]
  %s7 = sld [smem:[#allocation0]]
  $region77: #{frequency_delayed_stack.1} parent=0
    _
  %s9 = ssub.s32 1, %s7
  %s10 = scalar_select 0, %s9, %s7
  $region1: #{frequency_delayed_stack.1} parent=0
    #allocation3 [shape = 'u8[65536]{0}', space=vmem, size = 0x10000, scoped, tag = 'input window, operand 0']
    #allocation4 [shape = 's32[2]{0}', space=sflag, size = 0x8, scoped, tag = 'scoped memory for frequency_delayed_stack.1']
    #allocation5 [shape = 's32[2]{0}', space=sflag, size = 0x8, scoped, tag = 'scoped memory for frequency_delayed_stack.1']
    #allocation6 [shape = 'u8[65536]{0}', space=vmem, size = 0x10000, scoped, tag = 'input window, operand 1']
    #allocation7 [shape = 's32[2]{0}', space=sflag, size = 0x8, scoped, tag = 'scoped memory for frequency_delayed_stack.1']
    #allocation8 [shape = 'u8[16384]{0}', space=vmem, size = 0x4000, scoped, tag = 'input window, operand 2, single buffered']
    #allocation9 [shape = 'u8[16384]{0}', space=vmem, size = 0x4000, scoped, tag = 'input window, operand 3, single buffered']
    #allocation10 [shape = 's32[1]{0}', space=sflag, size = 0x4, scoped, tag = 'scoped memory for frequency_delayed_stack.1']
    #allocation11 [shape = 'u8[65536]{0}', space=vmem, size = 0x10000, scoped, tag = 'output window, operand 0']
    %11 = vsyncpa [#allocation4], 0
    %s12 = scalar_lea.sflag [#allocation4], 1
    %13 = vsyncpa %s12, 0
    %14 = vsyncpa [#allocation7], 0
    %s15 = scalar_lea.sflag [#allocation7], 1
    %16 = vsyncpa %s15, 0
    %17 = vsyncpa [#allocation10], 0
    %18 = vsyncpa [#allocation5], 0
    %s19 = scalar_lea.sflag [#allocation5], 1
    %20 = vsyncpa %s19, 0
    loop: start=0, step=1, limit=6
    $region2: #{frequency_delayed_stack.1} parent=1 // loop_pre_header
      _
    $region3: #{frequency_delayed_stack.1} parent=1 // loop_header
      %s22 = sphi 0, %s26
      %p23 = scmp.ge.s32.totalorder %s22, 6
      %s29 = sphi 0, %s41
      %s30 = sphi 0, %s37
      %s31 = sphi 0, %s29
      %s32 = sphi 0, %s30
      %s33 = sphi 0, %s31
      %s34 = sphi 0, %s32
      %s46 = sphi 0, %s48
      %s49 = sphi 0, %s46
      %s50 = sphi 0, %s49
      %s66 = sphi 0, %s50
      %s74 = sphi 0, %s76
      %s77 = sphi 0, %s74
      %s78 = sphi 0, %s77
      %s94 = sphi 0, %s78
      %s98 = sphi 0, %s98
      %s100 = sphi 0, %s98
      %s101 = sphi 0, %s100
      %s115 = sphi 0, %s101
      %s119 = sphi 0, %s119
      %s121 = sphi 0, %s119
      %s122 = sphi 0, %s121
      %s136 = sphi 0, %s122
      %s140 = sphi 0, %s140
      %s142 = sphi 0, %s140
      %s143 = sphi 0, %s142
      %s157 = sphi 0, %s143
      %s161 = sphi 0, %s161
      %s163 = sphi 0, %s161
      %s164 = sphi 0, %s163
      %s178 = sphi 0, %s164
      %s186 = sphi 0, %s188
      %s189 = sphi 0, %s186
      %s190 = sphi 0, %s189
      %s206 = sphi 0, %s190
    $region4: #{frequency_delayed_stack.1} parent=1 // loop_header_branch
      %25 = sbr.rel (%p23) target = $region8
    $region5: #{frequency_delayed_stack.1} parent=1 // loop_body
      %s27 = ssub.s32 %s22, 1
      %s28 = ssub.s32 %s22, 2
      %s35 = sadd.s32 1, %s30
      %p36 = scmp.ge.s32.totalorder %s35, 2
      %s37 = scalar_select %p36, 0, %s35
      %s38 = sadd.s32 1, %s29
      %s39 = scalar_select %p36, %s38, %s29
      %p40 = scmp.ge.s32.totalorder %s39, 2
      %s41 = scalar_select %p40, 0, %s39
      %s42 = ssub.s32 %s29, %s41
      %s43 = ssub.s32 %s30, %s37
      %s44 = sor.u32 %s42, %s43
      %p45 = scmp.eq.s32.totalorder %s44, 0
      %s47 = sadd.s32 %s46, 1
      %s48 = scalar_select %p45, %s46, %s47
      %p51 = pneg %p45
      %p52 = scmp.eq.s32.totalorder %s22, 3
      %p53 = por %p51, %p52
      %p54 = scmp.ne.s32.totalorder %s46, %s49
      %p55 = scmp.eq.s32.totalorder %s22, 0
      %p56 = por %p54, %p55
      %p57 = scmp.ne.s32.totalorder %s46, %s49
      %p58 = scmp.eq.s32.totalorder %s27, 3
      %p59 = por %p57, %p58
      %p60 = scmp.ne.s32.totalorder %s49, %s50
      %p61 = scmp.eq.s32.totalorder %s27, 0
      %p62 = por %p60, %p61
      %p63 = scmp.ne.s32.totalorder %s49, %s50
      %p64 = scmp.eq.s32.totalorder %s28, 3
      %p65 = por %p63, %p64
      %p67 = scmp.ne.s32.totalorder %s50, %s66
      %p68 = scmp.eq.s32.totalorder %s28, 0
      %p69 = por %p67, %p68
      %s70 = ssub.s32 %s29, %s41
      %s71 = ssub.s32 %s30, %s37
      %s72 = sor.u32 %s70, %s71
      %p73 = scmp.eq.s32.totalorder %s72, 0
      %s75 = sadd.s32 %s74, 1
      %s76 = scalar_select %p73, %s74, %s75
      %p79 = pneg %p73
      %p80 = scmp.eq.s32.totalorder %s22, 3
      %p81 = por %p79, %p80
      %p82 = scmp.ne.s32.totalorder %s74, %s77
      %p83 = scmp.eq.s32.totalorder %s22, 0
      %p84 = por %p82, %p83
      %p85 = scmp.ne.s32.totalorder %s74, %s77
      %p86 = scmp.eq.s32.totalorder %s27, 3
      %p87 = por %p85, %p86
      %p88 = scmp.ne.s32.totalorder %s77, %s78
      %p89 = scmp.eq.s32.totalorder %s27, 0
      %p90 = por %p88, %p89
      %p91 = scmp.ne.s32.totalorder %s77, %s78
      %p92 = scmp.eq.s32.totalorder %s28, 3
      %p93 = por %p91, %p92
      %p95 = scmp.ne.s32.totalorder %s78, %s94
      %p96 = scmp.eq.s32.totalorder %s28, 0
      %p97 = por %p95, %p96
      %s99 = sadd.s32 %s98, 1
      %p102 = scmp.eq.s32.totalorder %s22, 3
      %p103 = scmp.ne.s32.totalorder %s98, %s100
      %p104 = scmp.eq.s32.totalorder %s22, 0
      %p105 = por %p103, %p104
      %p106 = scmp.ne.s32.totalorder %s98, %s100
      %p107 = scmp.eq.s32.totalorder %s27, 3
      %p108 = por %p106, %p107
      %p109 = scmp.ne.s32.totalorder %s100, %s101
      %p110 = scmp.eq.s32.totalorder %s27, 0
      %p111 = por %p109, %p110
      %p112 = scmp.ne.s32.totalorder %s100, %s101
      %p113 = scmp.eq.s32.totalorder %s28, 3
      %p114 = por %p112, %p113
      %p116 = scmp.ne.s32.totalorder %s101, %s115
      %p117 = scmp.eq.s32.totalorder %s28, 0
      %p118 = por %p116, %p117
      %s120 = sadd.s32 %s119, 1
      %p123 = scmp.eq.s32.totalorder %s22, 3
      %p124 = scmp.ne.s32.totalorder %s119, %s121
      %p125 = scmp.eq.s32.totalorder %s22, 0
      %p126 = por %p124, %p125
      %p127 = scmp.ne.s32.totalorder %s119, %s121
      %p128 = scmp.eq.s32.totalorder %s27, 3
      %p129 = por %p127, %p128
      %p130 = scmp.ne.s32.totalorder %s121, %s122
      %p131 = scmp.eq.s32.totalorder %s27, 0
      %p132 = por %p130, %p131
      %p133 = scmp.ne.s32.totalorder %s121, %s122
      %p134 = scmp.eq.s32.totalorder %s28, 3
      %p135 = por %p133, %p134
      %p137 = scmp.ne.s32.totalorder %s122, %s136
      %p138 = scmp.eq.s32.totalorder %s28, 0
      %p139 = por %p137, %p138
      %s141 = sadd.s32 %s140, 1
      %p144 = scmp.eq.s32.totalorder %s22, 3
      %p145 = scmp.ne.s32.totalorder %s140, %s142
      %p146 = scmp.eq.s32.totalorder %s22, 0
      %p147 = por %p145, %p146
      %p148 = scmp.ne.s32.totalorder %s140, %s142
      %p149 = scmp.eq.s32.totalorder %s27, 3
      %p150 = por %p148, %p149
      %p151 = scmp.ne.s32.totalorder %s142, %s143
      %p152 = scmp.eq.s32.totalorder %s27, 0
      %p153 = por %p151, %p152
      %p154 = scmp.ne.s32.totalorder %s142, %s143
      %p155 = scmp.eq.s32.totalorder %s28, 3
      %p156 = por %p154, %p155
      %p158 = scmp.ne.s32.totalorder %s143, %s157
      %p159 = scmp.eq.s32.totalorder %s28, 0
      %p160 = por %p158, %p159
      %s162 = sadd.s32 %s161, 1
      %p165 = scmp.eq.s32.totalorder %s22, 3
      %p166 = scmp.ne.s32.totalorder %s161, %s163
      %p167 = scmp.eq.s32.totalorder %s22, 0
      %p168 = por %p166, %p167
      %p169 = scmp.ne.s32.totalorder %s161, %s163
      %p170 = scmp.eq.s32.totalorder %s27, 3
      %p171 = por %p169, %p170
      %p172 = scmp.ne.s32.totalorder %s163, %s164
      %p173 = scmp.eq.s32.totalorder %s27, 0
      %p174 = por %p172, %p173
      %p175 = scmp.ne.s32.totalorder %s163, %s164
      %p176 = scmp.eq.s32.totalorder %s28, 3
      %p177 = por %p175, %p176
      %p179 = scmp.ne.s32.totalorder %s164, %s178
      %p180 = scmp.eq.s32.totalorder %s28, 0
      %p181 = por %p179, %p180
      %s182 = ssub.s32 %s29, %s41
      %s183 = ssub.s32 %s30, %s37
      %s184 = sor.u32 %s182, %s183
      %p185 = scmp.eq.s32.totalorder %s184, 0
      %s187 = sadd.s32 %s186, 1
      %s188 = scalar_select %p185, %s186, %s187
      %p191 = pneg %p185
      %p192 = scmp.eq.s32.totalorder %s22, 3
      %p193 = por %p191, %p192
      %p194 = scmp.ne.s32.totalorder %s186, %s189
      %p195 = scmp.eq.s32.totalorder %s22, 0
      %p196 = por %p194, %p195
      %p197 = scmp.ne.s32.totalorder %s186, %s189
      %p198 = scmp.eq.s32.totalorder %s27, 3
      %p199 = por %p197, %p198
      %p200 = scmp.ne.s32.totalorder %s189, %s190
      %p201 = scmp.eq.s32.totalorder %s27, 0
      %p202 = por %p200, %p201
      %p203 = scmp.ne.s32.totalorder %s189, %s190
      %p204 = scmp.eq.s32.totalorder %s28, 3
      %p205 = por %p203, %p204
      %p207 = scmp.ne.s32.totalorder %s190, %s206
      %p208 = scmp.eq.s32.totalorder %s28, 0
      %p209 = por %p207, %p208
      %p210 = scmp.le.s32.totalorder 1, %s22
      %p211 = scmp.lt.s32.totalorder %s22, 5
      %p212 = pnand %p210, %p211
      %p213 = pneg %p212
      // Predicated region
      $region9: #{frequency_delayed_stack.1} parent=5 // pred_check
        _
      $region10: #{frequency_delayed_stack.1} parent=5 // pred_check_branch
        %215 = sbr.rel (%p212) target = $region12
      $region11: #{frequency_delayed_stack.1} parent=5 // pred_region
        %s216 = ssub.s32 %s22, 1
        // Predicated region
        $region13: #{frequency_delayed_stack.1} parent=11 // pred_check
          %p217 = pneg %p111
        $region14: #{frequency_delayed_stack.1} parent=11 // pred_check_branch
          %219 = sbr.rel (%p217) target = $region16
        $region15: #{frequency_delayed_stack.1} parent=11 // pred_region
          %s221 = ssub.s32 512, 512
          %222 = vsyncadd [#allocation7], %s221
          %s223 = sshll.u32 [#allocation8], 4
          %s224 = int_to_ptr.vmem [resolvable:$true] %s223
          %229 = dma.hbm_to_vmem [thread:$0]  %s2, 512, %s224, [#allocation7], 128, 128, 8
        $region16: #{frequency_delayed_stack.1} parent=11 // pred_fallthru
          _
        // Predicated region
        $region17: #{frequency_delayed_stack.1} parent=11 // pred_check
          %p230 = pneg %p132
        $region18: #{frequency_delayed_stack.1} parent=11 // pred_check_branch
          %232 = sbr.rel (%p230) target = $region20
        $region19: #{frequency_delayed_stack.1} parent=11 // pred_region
          %s234 = ssub.s32 512, 512
          %235 = vsyncadd [#allocation10], %s234
          %s236 = sshll.u32 [#allocation9], 4
          %s237 = int_to_ptr.vmem [resolvable:$true] %s236
          %242 = dma.hbm_to_vmem [thread:$0]  %s3, 512, %s237, [#allocation10], 128, 128, 8
        $region20: #{frequency_delayed_stack.1} parent=11 // pred_fallthru
          _
        // Predicated region
        $region21: #{frequency_delayed_stack.1} parent=11 // pred_check
          %p243 = pneg %p153
        $region22: #{frequency_delayed_stack.1} parent=11 // pred_check_branch
          %245 = sbr.rel (%p243) target = $region24
        $region23: #{frequency_delayed_stack.1} parent=11 // pred_region
          _
        $region24: #{frequency_delayed_stack.1} parent=11 // pred_fallthru
          _
        // Predicated region
        $region25: #{frequency_delayed_stack.1} parent=11 // pred_check
          %p246 = pneg %p174
        $region26: #{frequency_delayed_stack.1} parent=11 // pred_check_branch
          %248 = sbr.rel (%p246) target = $region28
        $region27: #{frequency_delayed_stack.1} parent=11 // pred_region
          _
        $region28: #{frequency_delayed_stack.1} parent=11 // pred_fallthru
          _
      $region12: #{frequency_delayed_stack.1} parent=5 // pred_fallthru
        _
      %p249 = scmp.lt.s32.totalorder %s22, 4
      // Predicated region
      $region29: #{frequency_delayed_stack.1} parent=5 // pred_check
        %p250 = pneg %p249
      $region30: #{frequency_delayed_stack.1} parent=5 // pred_check_branch
        %252 = sbr.rel (%p250) target = $region32
      $region31: #{frequency_delayed_stack.1} parent=5 // pred_region
        // Predicated region
        $region33: #{frequency_delayed_stack.1} parent=31 // pred_check
          %p253 = pneg %p56
        $region34: #{frequency_delayed_stack.1} parent=31 // pred_check_branch
          %255 = sbr.rel (%p253) target = $region36
        $region35: #{frequency_delayed_stack.1} parent=31 // pred_region
          %s256 = sand.u32 %s46, 1
          %s257 = scalar_lea.sflag [#allocation4], %s256
          %s258 = sand.u32 %s46, 1
          %s259 = smul.addr %s258, 64
          %s260 = scalar_lea.vmem [#allocation3], %s259
          %s261 = smul.u32 8, %s29
          %s263 = ssub.s32 1024, 1024
          %264 = vsyncadd %s257, %s263
          %s265 = smul.addr %s261, 2
          %s266 = sadd.s32 %s30, %s265
          %s267 = smul.addr %s266, 128
          %s268 = scalar_lea.hbm %s0, %s267
          %s269 = sshll.u32 %s260, 4
          %s270 = int_to_ptr.vmem [resolvable:$true] %s269
          %275 = dma.hbm_to_vmem [thread:$0]  %s268, 1024, %s270, %s257, 256, 128, 8
        $region36: #{frequency_delayed_stack.1} parent=31 // pred_fallthru
          _
        // Predicated region
        $region37: #{frequency_delayed_stack.1} parent=31 // pred_check
          %p276 = pneg %p84
        $region38: #{frequency_delayed_stack.1} parent=31 // pred_check_branch
          %278 = sbr.rel (%p276) target = $region40
        $region39: #{frequency_delayed_stack.1} parent=31 // pred_region
          %s279 = sand.u32 %s22, 1
          %s280 = scalar_lea.sflag [#allocation7], %s279
          %s281 = sand.u32 %s74, 1
          %s282 = smul.addr %s281, 64
          %s283 = scalar_lea.vmem [#allocation6], %s282
          %s284 = smul.u32 8, %s29
          %s286 = ssub.s32 1024, 1024
          %287 = vsyncadd %s280, %s286
          %s288 = smul.addr %s284, 2
          %s289 = sadd.s32 %s30, %s288
          %s290 = smul.addr %s289, 128
          %s291 = scalar_lea.hbm %s1, %s290
          %s292 = sshll.u32 %s283, 4
          %s293 = int_to_ptr.vmem [resolvable:$true] %s292
          %298 = dma.hbm_to_vmem [thread:$0]  %s291, 1024, %s293, %s280, 256, 128, 8
        $region40: #{frequency_delayed_stack.1} parent=31 // pred_fallthru
          _
      $region32: #{frequency_delayed_stack.1} parent=5 // pred_fallthru
        _
      %p299 = scmp.le.s32.totalorder 1, %s22
      %p300 = scmp.lt.s32.totalorder %s22, 5
      %p301 = pnand %p299, %p300
      %p302 = pneg %p301
      // Predicated region
      $region41: #{frequency_delayed_stack.1} parent=5 // pred_check
        _
      $region42: #{frequency_delayed_stack.1} parent=5 // pred_check_branch
        %304 = sbr.rel (%p301) target = $region44
      $region43: #{frequency_delayed_stack.1} parent=5 // pred_region
        %s305 = ssub.s32 %s22, 1
        %s306 = sand.u32 %s49, 1
        %s307 = scalar_lea.sflag [#allocation4], %s306
        %s308 = sand.u32 %s49, 1
        %s309 = smul.addr %s308, 64
        %s310 = scalar_lea.vmem [#allocation3], %s309
        // Predicated region
        $region45: #{frequency_delayed_stack.1} parent=43 // pred_check
          %p311 = pneg %p62
        $region46: #{frequency_delayed_stack.1} parent=43 // pred_check_branch
          %313 = sbr.rel (%p311) target = $region48
        $region47: #{frequency_delayed_stack.1} parent=43 // pred_region
          %314 = dma.done %s307, 1024
        $region48: #{frequency_delayed_stack.1} parent=43 // pred_fallthru
          _
        %s315 = sand.u32 %s27, 1
        %s316 = scalar_lea.sflag [#allocation7], %s315
        %s317 = sand.u32 %s77, 1
        %s318 = smul.addr %s317, 64
        %s319 = scalar_lea.vmem [#allocation6], %s318
        // Predicated region
        $region49: #{frequency_delayed_stack.1} parent=43 // pred_check
          %p320 = pneg %p90
        $region50: #{frequency_delayed_stack.1} parent=43 // pred_check_branch
          %322 = sbr.rel (%p320) target = $region52
        $region51: #{frequency_delayed_stack.1} parent=43 // pred_region
          %323 = dma.done %s316, 1024
        $region52: #{frequency_delayed_stack.1} parent=43 // pred_fallthru
          _
        // Predicated region
        $region53: #{frequency_delayed_stack.1} parent=43 // pred_check
          %p324 = pneg %p111
        $region54: #{frequency_delayed_stack.1} parent=43 // pred_check_branch
          %326 = sbr.rel (%p324) target = $region56
        $region55: #{frequency_delayed_stack.1} parent=43 // pred_region
          %327 = dma.done [#allocation7], 512
        $region56: #{frequency_delayed_stack.1} parent=43 // pred_fallthru
          _
        // Predicated region
        $region57: #{frequency_delayed_stack.1} parent=43 // pred_check
          %p328 = pneg %p132
        $region58: #{frequency_delayed_stack.1} parent=43 // pred_check_branch
          %330 = sbr.rel (%p328) target = $region60
        $region59: #{frequency_delayed_stack.1} parent=43 // pred_region
          %331 = dma.done [#allocation10], 512
        $region60: #{frequency_delayed_stack.1} parent=43 // pred_fallthru
          _
        %s332 = sand.u32 %s49, 1
        %s333 = scalar_lea.sflag [#allocation4], %s332
        %s334 = sand.u32 %s49, 1
        %s335 = smul.addr %s334, 64
        %s336 = scalar_lea.vmem [#allocation3], %s335
        %p337 = pneg %p62
        %p338 = pneg %p59
        %s339 = sand.u32 %s27, 1
        %s340 = scalar_lea.sflag [#allocation7], %s339
        %s341 = sand.u32 %s77, 1
        %s342 = smul.addr %s341, 64
        %s343 = scalar_lea.vmem [#allocation6], %s342
        %p344 = pneg %p90
        %p345 = pneg %p87
        %p346 = pneg %p111
        %p347 = pneg %p108
        %p348 = pneg %p132
        %p349 = pneg %p129
        %p350 = pneg %p153
        %p351 = pneg %p150
        %p352 = pneg %p174
        %p353 = pneg %p171
        %p354 = pneg %p202
        %p355 = pneg %p199
        %s356 = sand.u32 %s189, 1
        %s357 = scalar_lea.sflag [#allocation5], %s356
        %s358 = sand.u32 %s189, 1
        %s359 = smul.addr %s358, 64
        %s360 = scalar_lea.vmem [#allocation11], %s359
        %s361 = smul.u32 8, %s31
        %s362 = smul.u32 8, %s31
        %s363 = smul.u32 8, %s31
        %p364 = scmp.eq.s32.totalorder %s32, 0
        // Predicated region
        $region61: #{frequency_delayed_stack.1} parent=43 // pred_check
          %p365 = pneg %p364
        $region62: #{frequency_delayed_stack.1} parent=43 // pred_check_branch
          %367 = sbr.rel (%p365) target = $region64
        $region63: #{frequency_delayed_stack.1} parent=43 // pred_region
          %vm368 = vcmask 261120
          %369 = vst.msk [vmem:[#allocation2] sm:$0xff] %vm368, 0.0
        $region64: #{frequency_delayed_stack.1} parent=43 // pred_fallthru
          _
        %v370 = vld [vmem:[#allocation8] sm:$0xff]
        %v371 = vld [vmem:[#allocation8 + $0x8] sm:$0xff]
        %v372 = vld [vmem:[#allocation8 + $0x10] sm:$0xff]
        %v373 = vld [vmem:[#allocation8 + $0x18] sm:$0xff]
        %v374 = vld [vmem:[#allocation9] sm:$0xff]
        %v375 = vld [vmem:[#allocation9 + $0x8] sm:$0xff]
        %v376 = vld [vmem:[#allocation9 + $0x10] sm:$0xff]
        %v377 = vld [vmem:[#allocation9 + $0x18] sm:$0xff]
        %v378 = vld [vmem:[%s4] sm:$0x1]
        %v380 = vlaneseq
        %v381 = vshrl.u32 %v380, 7
        %v382 = vsub.s32 0, %v381
        %v383 = vrot.slane %v378, %v382
        %v385 = vld [vmem:[%s5] sm:$0x1]
        %v387 = vlaneseq
        %v388 = vshrl.u32 %v387, 7
        %v389 = vsub.s32 0, %v388
        %v390 = vrot.slane %v385, %v389
        %v391 = vld [vmem:[%s310] sm:$0xff]
        %v392 = vld [vmem:[%s310 + $0x8] sm:$0xff]
        %v393 = vld [vmem:[%s310 + $0x10] sm:$0xff]
        %v394 = vld [vmem:[%s310 + $0x18] sm:$0xff]
        %v395 = vld [vmem:[%s310 + $0x20] sm:$0xff]
        %v396 = vld [vmem:[%s310 + $0x28] sm:$0xff]
        %v397 = vld [vmem:[%s310 + $0x30] sm:$0xff]
        %v398 = vld [vmem:[%s310 + $0x38] sm:$0xff]
        %v399 = vld [vmem:[%s319] sm:$0xff]
        %v400 = vld [vmem:[%s319 + $0x8] sm:$0xff]
        %v401 = vld [vmem:[%s319 + $0x10] sm:$0xff]
        %v402 = vld [vmem:[%s319 + $0x18] sm:$0xff]
        %v403 = vld [vmem:[%s319 + $0x20] sm:$0xff]
        %v404 = vld [vmem:[%s319 + $0x28] sm:$0xff]
        %v405 = vld [vmem:[%s319 + $0x30] sm:$0xff]
        %v406 = vld [vmem:[%s319 + $0x38] sm:$0xff]
        %v407 = vadd.f32 %v391, %v399
        %v408 = vadd.f32 %v392, %v400
        %v409 = vadd.f32 %v393, %v401
        %v410 = vadd.f32 %v394, %v402
        %v411 = vadd.f32 %v395, %v403
        %v412 = vadd.f32 %v396, %v404
        %v413 = vadd.f32 %v397, %v405
        %v414 = vadd.f32 %v398, %v406
        %v415 = vld [vmem:[#allocation2] sm:$0xff]
        %v424 = vrot.slane %v408, 7
        %vm425 = vcmask 1041409
        %v426 = vsel %vm425, %v424, %v407
        %v427 = vrot.slane %v409, 6
        %vm428 = vcmask 1042434
        %v429 = vsel %vm428, %v427, %v426
        %v430 = vrot.slane %v410, 5
        %vm431 = vcmask 1043459
        %v432 = vsel %vm431, %v430, %v429
        %v433 = vrot.slane %v411, 4
        %vm434 = vcmask 1044484
        %v435 = vsel %vm434, %v433, %v432
        %v436 = vrot.slane %v412, 3
        %vm437 = vcmask 1045509
        %v438 = vsel %vm437, %v436, %v435
        %v439 = vrot.slane %v413, 2
        %vm440 = vcmask 1046534
        %v441 = vsel %vm440, %v439, %v438
        %v442 = vrot.slane %v414, 1
        %vm443 = vcmask 1047559
        %v444 = vsel %vm443, %v442, %v441
        %vm445 = vcmask 261120
        %v446 = vsel %vm445, %v444, 0
        %448 = vmatprep.subr.mxu0 0.0
        %449 = vmatpush1.msra.mxu0 %v370
        %450 = vmatprep.subr.mxu0 0.0
        %451 = vmatpush1.msra.mxu0 %v371
        %452 = vmatprep.subr.mxu0 0.0
        %453 = vmatpush1.msra.mxu0 %v372
        %454 = vmatprep.subr.mxu0 0.0
        %455 = vmatpush1.msra.mxu0 %v373
        %456 = vmatprep.subr.mxu0 0.0
        %457 = vmatpush1.msra.mxu0 0.0
        %458 = vmatprep.subr.mxu0 0.0
        %459 = vmatpush1.msra.mxu0 0.0
        %460 = vmatprep.subr.mxu0 0.0
        %461 = vmatpush1.msra.mxu0 0.0
        %462 = vmatprep.subr.mxu0 0.0
        %463 = vmatpush1.msra.mxu0 0.0
        %464 = vmatprep.subr.mxu0 0.0
        %465 = vmatpush1.msra.mxu0 0.0
        %466 = vmatprep.subr.mxu0 0.0
        %467 = vmatpush1.msra.mxu0 0.0
        %468 = vmatprep.subr.mxu0 0.0
        %469 = vmatpush1.msra.mxu0 0.0
        %470 = vmatprep.subr.mxu0 0.0
        %471 = vmatpush1.msra.mxu0 0.0
        %472 = vmatprep.subr.mxu0 0.0
        %473 = vmatpush1.msra.mxu0 0.0
        %474 = vmatprep.subr.mxu0 0.0
        %475 = vmatpush1.msra.mxu0 0.0
        %476 = vmatprep.subr.mxu0 0.0
        %477 = vmatpush1.msra.mxu0 0.0
        %478 = vmatprep.subr.mxu0 0.0
        %479 = vmatpush1.msra.mxu0 0.0
        %480 = vmatprep.subr.mxu0 0.0
        %481 = vmatpush1.msra.mxu0 0.0
        %482 = vmatprep.subr.mxu0 0.0
        %483 = vmatpush1.msra.mxu0 0.0
        %484 = vmatprep.subr.mxu0 0.0
        %485 = vmatpush1.msra.mxu0 0.0
        %486 = vmatprep.subr.mxu0 0.0
        %487 = vmatpush1.msra.mxu0 0.0
        %488 = vmatprep.subr.mxu0 0.0
        %489 = vmatpush1.msra.mxu0 0.0
        %490 = vmatprep.subr.mxu0 0.0
        %491 = vmatpush1.msra.mxu0 0.0
        %492 = vmatprep.subr.mxu0 0.0
        %493 = vmatpush1.msra.mxu0 0.0
        %494 = vmatprep.subr.mxu0 0.0
        %495 = vmatpush1.msra.mxu0 0.0
        %496 = vmatprep.subr.mxu0 0.0
        %497 = vmatpush1.msra.mxu0 0.0
        %498 = vmatprep.subr.mxu0 0.0
        %499 = vmatpush1.msra.mxu0 0.0
        %500 = vmatprep.subr.mxu0 0.0
        %501 = vmatpush1.msra.mxu0 0.0
        %502 = vmatprep.subr.mxu0 0.0
        %503 = vmatpush1.msra.mxu0 0.0
        %504 = vmatprep.subr.mxu0 0.0
        %505 = vmatpush1.msra.mxu0 0.0
        %506 = vmatprep.subr.mxu0 0.0
        %507 = vmatpush1.msra.mxu0 0.0
        %508 = vmatprep.subr.mxu0 0.0
        %509 = vmatpush1.msra.mxu0 0.0
        %510 = vmatprep.subr.mxu0 0.0
        %511 = vmatpush1.msra.mxu0 0.0
        %512 = vmatprep.mubr.f32.mxu0 0.0
        %513 = vmatmul.mubr.f32.gmra.mrb[0].mxu0 %v446
        %v514 = vpop.f32.mrb[0].mxu0
        %v515 = vadd.f32 %v383, %v514
        %v516 = vpop.f32.mrb[0].mxu0
        %517 = vdwg.mxu0
        %v519 = vsel %vm445, %v415, 0
        %521 = vmatprep.subr.mxu0 0.0
        %522 = vmatpush1.msra.mxu0 %v374
        %523 = vmatprep.subr.mxu0 0.0
        %524 = vmatpush1.msra.mxu0 %v375
        %525 = vmatprep.subr.mxu0 0.0
        %526 = vmatpush1.msra.mxu0 %v376
        %527 = vmatprep.subr.mxu0 0.0
        %528 = vmatpush1.msra.mxu0 %v377
        %529 = vmatprep.subr.mxu0 0.0
        %530 = vmatpush1.msra.mxu0 0.0
        %531 = vmatprep.subr.mxu0 0.0
        %532 = vmatpush1.msra.mxu0 0.0
        %533 = vmatprep.subr.mxu0 0.0
        %534 = vmatpush1.msra.mxu0 0.0
        %535 = vmatprep.subr.mxu0 0.0
        %536 = vmatpush1.msra.mxu0 0.0
        %537 = vmatprep.subr.mxu0 0.0
        %538 = vmatpush1.msra.mxu0 0.0
        %539 = vmatprep.subr.mxu0 0.0
        %540 = vmatpush1.msra.mxu0 0.0
        %541 = vmatprep.subr.mxu0 0.0
        %542 = vmatpush1.msra.mxu0 0.0
        %543 = vmatprep.subr.mxu0 0.0
        %544 = vmatpush1.msra.mxu0 0.0
        %545 = vmatprep.subr.mxu0 0.0
        %546 = vmatpush1.msra.mxu0 0.0
        %547 = vmatprep.subr.mxu0 0.0
        %548 = vmatpush1.msra.mxu0 0.0
        %549 = vmatprep.subr.mxu0 0.0
        %550 = vmatpush1.msra.mxu0 0.0
        %551 = vmatprep.subr.mxu0 0.0
        %552 = vmatpush1.msra.mxu0 0.0
        %553 = vmatprep.subr.mxu0 0.0
        %554 = vmatpush1.msra.mxu0 0.0
        %555 = vmatprep.subr.mxu0 0.0
        %556 = vmatpush1.msra.mxu0 0.0
        %557 = vmatprep.subr.mxu0 0.0
        %558 = vmatpush1.msra.mxu0 0.0
        %559 = vmatprep.subr.mxu0 0.0
        %560 = vmatpush1.msra.mxu0 0.0
        %561 = vmatprep.subr.mxu0 0.0
        %562 = vmatpush1.msra.mxu0 0.0
        %563 = vmatprep.subr.mxu0 0.0
        %564 = vmatpush1.msra.mxu0 0.0
        %565 = vmatprep.subr.mxu0 0.0
        %566 = vmatpush1.msra.mxu0 0.0
        %567 = vmatprep.subr.mxu0 0.0
        %568 = vmatpush1.msra.mxu0 0.0
        %569 = vmatprep.subr.mxu0 0.0
        %570 = vmatpush1.msra.mxu0 0.0
        %571 = vmatprep.subr.mxu0 0.0
        %572 = vmatpush1.msra.mxu0 0.0
        %573 = vmatprep.subr.mxu0 0.0
        %574 = vmatpush1.msra.mxu0 0.0
        %575 = vmatprep.subr.mxu0 0.0
        %576 = vmatpush1.msra.mxu0 0.0
        %577 = vmatprep.subr.mxu0 0.0
        %578 = vmatpush1.msra.mxu0 0.0
        %579 = vmatprep.subr.mxu0 0.0
        %580 = vmatpush1.msra.mxu0 0.0
        %581 = vmatprep.subr.mxu0 0.0
        %582 = vmatpush1.msra.mxu0 0.0
        %583 = vmatprep.subr.mxu0 0.0
        %584 = vmatpush1.msra.mxu0 0.0
        %585 = vmatprep.mubr.f32.mxu0 0.0
        %586 = vmatmul.mubr.f32.gmra.mrb[0].mxu0 %v519
        %v587 = vpop.f32.mrb[0].mxu0
        %v588 = vadd.f32 0.0, %v587
        %v589 = vpop.f32.mrb[0].mxu0
        %590 = vdwg.mxu0
        %v591 = vadd.f32 %v515, %v588
        %v592 = vxor.u32 %v591, 2147483648
        %v593 = vmul.f32 %v592, 1.442695
        %v594 = vpow.pop %v593
        %v595 = vadd.f32 %v594, 1.0
        %v596 = vrcp.pop %v595
        %v597 = vmul.f32 1.0, %v596
        %598 = vrot.lane.b32.xlu0 %v390, 64
        %v599 = vpop.permute.xlu0 %598
        %v601 = vadd.f32 %v588, %v599
        %603 = vrot.lane.b32.xlu0 %v601, 64
        %v604 = vpop.permute.xlu0 %603
        %v606 = vmul.f32 %v597, %v604
        %608 = vrot.lane.b32.xlu0 %v606, 64
        %v609 = vpop.permute.xlu0 %608
        %v611 = vadd.f32 %v515, %v609
        %v612 = vtanh.pop %v611
        %v613 = vsub.f32 1.0, %v597
        %615 = vrot.lane.b32.xlu0 %v612, 96
        %v616 = vpop.permute.xlu0 %615
        %v618 = vmul.f32 %v613, %v616
        %619 = vrot.lane.b32.xlu0 %v415, 32
        %v620 = vpop.permute.xlu0 %619
        %v622 = vmul.f32 %v597, %v620
        %v623 = vadd.f32 %v618, %v622
        %v625 = vcombine.high %v623, %v623
        %v627 = vunpack.c.l.s4 1966171168
        %v628 = vunpack.c.0.s8 %v627
        %v629 = vlaneseq
        %v630 = vshrl.u32 %v629, 7
        %v631 = vsub.s32 %v628, %v630
        %v632 = vrot.slane %v623, %v631
        %v634 = vunpack.c.l.s4 1966171168
        %v635 = vunpack.c.0.s8 %v634
        %v636 = vlaneseq
        %v637 = vshrl.u32 %v636, 7
        %v638 = vsub.s32 %v635, %v637
        %v639 = vrot.slane %v625, %v638
        %v640 = vcombine.high %v632, %v632
        %v641 = vcombine.high %v639, %v639
        %v643 = vunpack.c.l.s4 1966171168
        %v644 = vunpack.c.0.s8 %v643
        %v645 = vlaneseq
        %v646 = vshrl.u32 %v645, 7
        %v647 = vsub.s32 %v644, %v646
        %v648 = vrot.slane %v632, %v647
        %v650 = vunpack.c.l.s4 1966171168
        %v651 = vunpack.c.0.s8 %v650
        %v652 = vlaneseq
        %v653 = vshrl.u32 %v652, 7
        %v654 = vsub.s32 %v651, %v653
        %v655 = vrot.slane %v639, %v654
        %v657 = vunpack.c.l.s4 1966171168
        %v658 = vunpack.c.0.s8 %v657
        %v659 = vlaneseq
        %v660 = vshrl.u32 %v659, 7
        %v661 = vsub.s32 %v658, %v660
        %v662 = vrot.slane %v640, %v661
        %v664 = vunpack.c.l.s4 1966171168
        %v665 = vunpack.c.0.s8 %v664
        %v666 = vlaneseq
        %v667 = vshrl.u32 %v666, 7
        %v668 = vsub.s32 %v665, %v667
        %v669 = vrot.slane %v641, %v668
        %v670 = vcombine.high %v648, %v648
        %v671 = vcombine.high %v655, %v655
        %v672 = vcombine.high %v662, %v662
        %v673 = vcombine.high %v669, %v669
        %v674 = vlaneseq
        %v675 = vshrl.u32 %v674, 7
        %v676 = vsub.s32 0, %v675
        %v677 = vrot.slane %v648, %v676
        %v678 = vlaneseq
        %v679 = vshrl.u32 %v678, 7
        %v680 = vsub.s32 0, %v679
        %v681 = vrot.slane %v662, %v680
        %v682 = vlaneseq
        %v683 = vshrl.u32 %v682, 7
        %v684 = vsub.s32 0, %v683
        %v685 = vrot.slane %v670, %v684
        %v686 = vlaneseq
        %v687 = vshrl.u32 %v686, 7
        %v688 = vsub.s32 0, %v687
        %v689 = vrot.slane %v672, %v688
        %v690 = vlaneseq
        %v691 = vshrl.u32 %v690, 7
        %v692 = vsub.s32 0, %v691
        %v693 = vrot.slane %v655, %v692
        %v694 = vlaneseq
        %v695 = vshrl.u32 %v694, 7
        %v696 = vsub.s32 0, %v695
        %v697 = vrot.slane %v669, %v696
        %v698 = vlaneseq
        %v699 = vshrl.u32 %v698, 7
        %v700 = vsub.s32 0, %v699
        %v701 = vrot.slane %v671, %v700
        %v702 = vlaneseq
        %v703 = vshrl.u32 %v702, 7
        %v704 = vsub.s32 0, %v703
        %v705 = vrot.slane %v673, %v704
        %706 = vrot.lane.b32.xlu0 %v677, 96
        %v707 = vpop.permute.xlu0 %706
        %708 = vrot.lane.b32.xlu0 %v681, 96
        %v709 = vpop.permute.xlu0 %708
        %710 = vrot.lane.b32.xlu0 %v685, 96
        %v711 = vpop.permute.xlu0 %710
        %712 = vrot.lane.b32.xlu0 %v689, 96
        %v713 = vpop.permute.xlu0 %712
        %714 = vrot.lane.b32.xlu0 %v693, 96
        %v715 = vpop.permute.xlu0 %714
        %716 = vrot.lane.b32.xlu0 %v697, 96
        %v717 = vpop.permute.xlu0 %716
        %718 = vrot.lane.b32.xlu0 %v701, 96
        %v719 = vpop.permute.xlu0 %718
        %720 = vrot.lane.b32.xlu0 %v705, 96
        %v721 = vpop.permute.xlu0 %720
        %vm730 = vcmask 253952
        %731 = vst.msk [vmem:[%s360] sm:$0x1] %vm730, %v707
        %732 = vst.msk [vmem:[%s360 + $0x8] sm:$0x1] %vm730, %v709
        %733 = vst.msk [vmem:[%s360 + $0x10] sm:$0x1] %vm730, %v711
        %734 = vst.msk [vmem:[%s360 + $0x18] sm:$0x1] %vm730, %v713
        %735 = vst.msk [vmem:[%s360 + $0x20] sm:$0x1] %vm730, %v715
        %736 = vst.msk [vmem:[%s360 + $0x28] sm:$0x1] %vm730, %v717
        %737 = vst.msk [vmem:[%s360 + $0x30] sm:$0x1] %vm730, %v719
        %738 = vst.msk [vmem:[%s360 + $0x38] sm:$0x1] %vm730, %v721
        %v739 = vrot.slane %v407, 1
        %v740 = vsel %vm425, %v408, %v739
        %v741 = vrot.slane %v409, 7
        %v742 = vsel %vm428, %v741, %v740
        %v743 = vrot.slane %v410, 6
        %v744 = vsel %vm431, %v743, %v742
        %v745 = vrot.slane %v411, 5
        %v746 = vsel %vm434, %v745, %v744
        %v747 = vrot.slane %v412, 4
        %v748 = vsel %vm437, %v747, %v746
        %v749 = vrot.slane %v413, 3
        %v750 = vsel %vm440, %v749, %v748
        %v751 = vrot.slane %v414, 2
        %v752 = vsel %vm443, %v751, %v750
        %v753 = vsel %vm445, %v752, 0
        %755 = vmatprep.subr.mxu0 0.0
        %756 = vmatpush1.msra.mxu0 %v370
        %757 = vmatprep.subr.mxu0 0.0
        %758 = vmatpush1.msra.mxu0 %v371
        %759 = vmatprep.subr.mxu0 0.0
        %760 = vmatpush1.msra.mxu0 %v372
        %761 = vmatprep.subr.mxu0 0.0
        %762 = vmatpush1.msra.mxu0 %v373
        %763 = vmatprep.subr.mxu0 0.0
        %764 = vmatpush1.msra.mxu0 0.0
        %765 = vmatprep.subr.mxu0 0.0
        %766 = vmatpush1.msra.mxu0 0.0
        %767 = vmatprep.subr.mxu0 0.0
        %768 = vmatpush1.msra.mxu0 0.0
        %769 = vmatprep.subr.mxu0 0.0
        %770 = vmatpush1.msra.mxu0 0.0
        %771 = vmatprep.subr.mxu0 0.0
        %772 = vmatpush1.msra.mxu0 0.0
        %773 = vmatprep.subr.mxu0 0.0
        %774 = vmatpush1.msra.mxu0 0.0
        %775 = vmatprep.subr.mxu0 0.0
        %776 = vmatpush1.msra.mxu0 0.0
        %777 = vmatprep.subr.mxu0 0.0
        %778 = vmatpush1.msra.mxu0 0.0
        %779 = vmatprep.subr.mxu0 0.0
        %780 = vmatpush1.msra.mxu0 0.0
        %781 = vmatprep.subr.mxu0 0.0
        %782 = vmatpush1.msra.mxu0 0.0
        %783 = vmatprep.subr.mxu0 0.0
        %784 = vmatpush1.msra.mxu0 0.0
        %785 = vmatprep.subr.mxu0 0.0
        %786 = vmatpush1.msra.mxu0 0.0
        %787 = vmatprep.subr.mxu0 0.0
        %788 = vmatpush1.msra.mxu0 0.0
        %789 = vmatprep.subr.mxu0 0.0
        %790 = vmatpush1.msra.mxu0 0.0
        %791 = vmatprep.subr.mxu0 0.0
        %792 = vmatpush1.msra.mxu0 0.0
        %793 = vmatprep.subr.mxu0 0.0
        %794 = vmatpush1.msra.mxu0 0.0
        %795 = vmatprep.subr.mxu0 0.0
        %796 = vmatpush1.msra.mxu0 0.0
        %797 = vmatprep.subr.mxu0 0.0
        %798 = vmatpush1.msra.mxu0 0.0
        %799 = vmatprep.subr.mxu0 0.0
        %800 = vmatpush1.msra.mxu0 0.0
        %801 = vmatprep.subr.mxu0 0.0
        %802 = vmatpush1.msra.mxu0 0.0
        %803 = vmatprep.subr.mxu0 0.0
        %804 = vmatpush1.msra.mxu0 0.0
        %805 = vmatprep.subr.mxu0 0.0
        %806 = vmatpush1.msra.mxu0 0.0
        %807 = vmatprep.subr.mxu0 0.0
        %808 = vmatpush1.msra.mxu0 0.0
        %809 = vmatprep.subr.mxu0 0.0
        %810 = vmatpush1.msra.mxu0 0.0
        %811 = vmatprep.subr.mxu0 0.0
        %812 = vmatpush1.msra.mxu0 0.0
        %813 = vmatprep.subr.mxu0 0.0
        %814 = vmatpush1.msra.mxu0 0.0
        %815 = vmatprep.subr.mxu0 0.0
        %816 = vmatpush1.msra.mxu0 0.0
        %817 = vmatprep.subr.mxu0 0.0
        %818 = vmatpush1.msra.mxu0 0.0
        %819 = vmatprep.mubr.f32.mxu0 0.0
        %820 = vmatmul.mubr.f32.gmra.mrb[0].mxu0 %v753
        %v821 = vpop.f32.mrb[0].mxu0
        %v822 = vadd.f32 %v383, %v821
        %v823 = vpop.f32.mrb[0].mxu0
        %824 = vdwg.mxu0
        %825 = vrot.lane.b32.xlu0 %v623, 96
        %v826 = vpop.permute.xlu0 %825
        %v827 = vsel %vm445, %v826, 0
        %829 = vmatprep.subr.mxu0 0.0
        %830 = vmatpush1.msra.mxu0 %v374
        %831 = vmatprep.subr.mxu0 0.0
        %832 = vmatpush1.msra.mxu0 %v375
        %833 = vmatprep.subr.mxu0 0.0
        %834 = vmatpush1.msra.mxu0 %v376
        %835 = vmatprep.subr.mxu0 0.0
        %836 = vmatpush1.msra.mxu0 %v377
        %837 = vmatprep.subr.mxu0 0.0
        %838 = vmatpush1.msra.mxu0 0.0
        %839 = vmatprep.subr.mxu0 0.0
        %840 = vmatpush1.msra.mxu0 0.0
        %841 = vmatprep.subr.mxu0 0.0
        %842 = vmatpush1.msra.mxu0 0.0
        %843 = vmatprep.subr.mxu0 0.0
        %844 = vmatpush1.msra.mxu0 0.0
        %845 = vmatprep.subr.mxu0 0.0
        %846 = vmatpush1.msra.mxu0 0.0
        %847 = vmatprep.subr.mxu0 0.0
        %848 = vmatpush1.msra.mxu0 0.0
        %849 = vmatprep.subr.mxu0 0.0
        %850 = vmatpush1.msra.mxu0 0.0
        %851 = vmatprep.subr.mxu0 0.0
        %852 = vmatpush1.msra.mxu0 0.0
        %853 = vmatprep.subr.mxu0 0.0
        %854 = vmatpush1.msra.mxu0 0.0
        %855 = vmatprep.subr.mxu0 0.0
        %856 = vmatpush1.msra.mxu0 0.0
        %857 = vmatprep.subr.mxu0 0.0
        %858 = vmatpush1.msra.mxu0 0.0
        %859 = vmatprep.subr.mxu0 0.0
        %860 = vmatpush1.msra.mxu0 0.0
        %861 = vmatprep.subr.mxu0 0.0
        %862 = vmatpush1.msra.mxu0 0.0
        %863 = vmatprep.subr.mxu0 0.0
        %864 = vmatpush1.msra.mxu0 0.0
        %865 = vmatprep.subr.mxu0 0.0
        %866 = vmatpush1.msra.mxu0 0.0
        %867 = vmatprep.subr.mxu0 0.0
        %868 = vmatpush1.msra.mxu0 0.0
        %869 = vmatprep.subr.mxu0 0.0
        %870 = vmatpush1.msra.mxu0 0.0
        %871 = vmatprep.subr.mxu0 0.0
        %872 = vmatpush1.msra.mxu0 0.0
        %873 = vmatprep.subr.mxu0 0.0
        %874 = vmatpush1.msra.mxu0 0.0
        %875 = vmatprep.subr.mxu0 0.0
        %876 = vmatpush1.msra.mxu0 0.0
        %877 = vmatprep.subr.mxu0 0.0
        %878 = vmatpush1.msra.mxu0 0.0
        %879 = vmatprep.subr.mxu0 0.0
        %880 = vmatpush1.msra.mxu0 0.0
        %881 = vmatprep.subr.mxu0 0.0
        %882 = vmatpush1.msra.mxu0 0.0
        %883 = vmatprep.subr.mxu0 0.0
        %884 = vmatpush1.msra.mxu0 0.0
        %885 = vmatprep.subr.mxu0 0.0
        %886 = vmatpush1.msra.mxu0 0.0
        %887 = vmatprep.subr.mxu0 0.0
        %888 = vmatpush1.msra.mxu0 0.0
        %889 = vmatprep.subr.mxu0 0.0
        %890 = vmatpush1.msra.mxu0 0.0
        %891 = vmatprep.subr.mxu0 0.0
        %892 = vmatpush1.msra.mxu0 0.0
        %893 = vmatprep.mubr.f32.mxu0 0.0
        %894 = vmatmul.mubr.f32.gmra.mrb[0].mxu0 %v827
        %v895 = vpop.f32.mrb[0].mxu0
        %v896 = vadd.f32 0.0, %v895
        %v897 = vpop.f32.mrb[0].mxu0
        %898 = vdwg.mxu0
        %v899 = vadd.f32 %v822, %v896
        %v900 = vxor.u32 %v899, 2147483648
        %v901 = vmul.f32 %v900, 1.442695
        %v902 = vpow.pop %v901
        %v903 = vadd.f32 %v902, 1.0
        %v904 = vrcp.pop %v903
        %v905 = vmul.f32 1.0, %v904
        %v906 = vadd.f32 %v896, %v599
        %908 = vrot.lane.b32.xlu0 %v906, 64
        %v909 = vpop.permute.xlu0 %908
        %v911 = vmul.f32 %v905, %v909
        %913 = vrot.lane.b32.xlu0 %v911, 64
        %v914 = vpop.permute.xlu0 %913
        %v916 = vadd.f32 %v822, %v914
        %v917 = vtanh.pop %v916
        %v918 = vsub.f32 1.0, %v905
        %920 = vrot.lane.b32.xlu0 %v917, 96
        %v921 = vpop.permute.xlu0 %920
        %v923 = vmul.f32 %v918, %v921
        %v924 = vmul.f32 %v905, %v623
        %v925 = vadd.f32 %v923, %v924
        %v927 = vcombine.high %v925, %v925
        %v929 = vunpack.c.l.s4 1966171168
        %v930 = vunpack.c.0.s8 %v929
        %v931 = vlaneseq
        %v932 = vshrl.u32 %v931, 7
        %v933 = vsub.s32 %v930, %v932
        %v934 = vrot.slane %v925, %v933
        %v936 = vunpack.c.l.s4 1966171168
        %v937 = vunpack.c.0.s8 %v936
        %v938 = vlaneseq
        %v939 = vshrl.u32 %v938, 7
        %v940 = vsub.s32 %v937, %v939
        %v941 = vrot.slane %v927, %v940
        %v942 = vcombine.high %v934, %v934
        %v943 = vcombine.high %v941, %v941
        %v945 = vunpack.c.l.s4 1966171168
        %v946 = vunpack.c.0.s8 %v945
        %v947 = vlaneseq
        %v948 = vshrl.u32 %v947, 7
        %v949 = vsub.s32 %v946, %v948
        %v950 = vrot.slane %v934, %v949
        %v952 = vunpack.c.l.s4 1966171168
        %v953 = vunpack.c.0.s8 %v952
        %v954 = vlaneseq
        %v955 = vshrl.u32 %v954, 7
        %v956 = vsub.s32 %v953, %v955
        %v957 = vrot.slane %v941, %v956
        %v959 = vunpack.c.l.s4 1966171168
        %v960 = vunpack.c.0.s8 %v959
        %v961 = vlaneseq
        %v962 = vshrl.u32 %v961, 7
        %v963 = vsub.s32 %v960, %v962
        %v964 = vrot.slane %v942, %v963
        %v966 = vunpack.c.l.s4 1966171168
        %v967 = vunpack.c.0.s8 %v966
        %v968 = vlaneseq
        %v969 = vshrl.u32 %v968, 7
        %v970 = vsub.s32 %v967, %v969
        %v971 = vrot.slane %v943, %v970
        %v972 = vcombine.high %v950, %v950
        %v973 = vcombine.high %v957, %v957
        %v974 = vcombine.high %v964, %v964
        %v975 = vcombine.high %v971, %v971
        %v976 = vlaneseq
        %v977 = vshrl.u32 %v976, 7
        %v978 = vsub.s32 0, %v977
        %v979 = vrot.slane %v950, %v978
        %v980 = vlaneseq
        %v981 = vshrl.u32 %v980, 7
        %v982 = vsub.s32 0, %v981
        %v983 = vrot.slane %v964, %v982
        %v984 = vlaneseq
        %v985 = vshrl.u32 %v984, 7
        %v986 = vsub.s32 0, %v985
        %v987 = vrot.slane %v972, %v986
        %v988 = vlaneseq
        %v989 = vshrl.u32 %v988, 7
        %v990 = vsub.s32 0, %v989
        %v991 = vrot.slane %v974, %v990
        %v992 = vlaneseq
        %v993 = vshrl.u32 %v992, 7
        %v994 = vsub.s32 0, %v993
        %v995 = vrot.slane %v957, %v994
        %v996 = vlaneseq
        %v997 = vshrl.u32 %v996, 7
        %v998 = vsub.s32 0, %v997
        %v999 = vrot.slane %v971, %v998
        %v1000 = vlaneseq
        %v1001 = vshrl.u32 %v1000, 7
        %v1002 = vsub.s32 0, %v1001
        %v1003 = vrot.slane %v973, %v1002
        %v1004 = vlaneseq
        %v1005 = vshrl.u32 %v1004, 7
        %v1006 = vsub.s32 0, %v1005
        %v1007 = vrot.slane %v975, %v1006
        %1008 = vrot.lane.b32.xlu0 %v979, 96
        %v1009 = vpop.permute.xlu0 %1008
        %1010 = vrot.lane.b32.xlu0 %v983, 96
        %v1011 = vpop.permute.xlu0 %1010
        %1012 = vrot.lane.b32.xlu0 %v987, 96
        %v1013 = vpop.permute.xlu0 %1012
        %1014 = vrot.lane.b32.xlu0 %v991, 96
        %v1015 = vpop.permute.xlu0 %1014
        %1016 = vrot.lane.b32.xlu0 %v995, 96
        %v1017 = vpop.permute.xlu0 %1016
        %1018 = vrot.lane.b32.xlu0 %v999, 96
        %v1019 = vpop.permute.xlu0 %1018
        %1020 = vrot.lane.b32.xlu0 %v1003, 96
        %v1021 = vpop.permute.xlu0 %1020
        %1022 = vrot.lane.b32.xlu0 %v1007, 96
        %v1023 = vpop.permute.xlu0 %1022
        %1032 = vst.msk [vmem:[%s360 + $0x1] sm:$0x1] %vm730, %v1009
        %1033 = vst.msk [vmem:[%s360 + $0x9] sm:$0x1] %vm730, %v1011
        %1034 = vst.msk [vmem:[%s360 + $0x11] sm:$0x1] %vm730, %v1013
        %1035 = vst.msk [vmem:[%s360 + $0x19] sm:$0x1] %vm730, %v1015
        %1036 = vst.msk [vmem:[%s360 + $0x21] sm:$0x1] %vm730, %v1017
        %1037 = vst.msk [vmem:[%s360 + $0x29] sm:$0x1] %vm730, %v1019
        %1038 = vst.msk [vmem:[%s360 + $0x31] sm:$0x1] %vm730, %v1021
        %1039 = vst.msk [vmem:[%s360 + $0x39] sm:$0x1] %vm730, %v1023
        %v1040 = vrot.slane %v407, 2
        %v1041 = vrot.slane %v408, 1
        %v1042 = vsel %vm425, %v1041, %v1040
        %v1043 = vsel %vm428, %v409, %v1042
        %v1044 = vrot.slane %v410, 7
        %v1045 = vsel %vm431, %v1044, %v1043
        %v1046 = vrot.slane %v411, 6
        %v1047 = vsel %vm434, %v1046, %v1045
        %v1048 = vrot.slane %v412, 5
        %v1049 = vsel %vm437, %v1048, %v1047
        %v1050 = vrot.slane %v413, 4
        %v1051 = vsel %vm440, %v1050, %v1049
        %v1052 = vrot.slane %v414, 3
        %v1053 = vsel %vm443, %v1052, %v1051
        %v1054 = vsel %vm445, %v1053, 0
        %1056 = vmatprep.subr.mxu0 0.0
        %1057 = vmatpush1.msra.mxu0 %v370
        %1058 = vmatprep.subr.mxu0 0.0
        %1059 = vmatpush1.msra.mxu0 %v371
        %1060 = vmatprep.subr.mxu0 0.0
        %1061 = vmatpush1.msra.mxu0 %v372
        %1062 = vmatprep.subr.mxu0 0.0
        %1063 = vmatpush1.msra.mxu0 %v373
        %1064 = vmatprep.subr.mxu0 0.0
        %1065 = vmatpush1.msra.mxu0 0.0
        %1066 = vmatprep.subr.mxu0 0.0
        %1067 = vmatpush1.msra.mxu0 0.0
        %1068 = vmatprep.subr.mxu0 0.0
        %1069 = vmatpush1.msra.mxu0 0.0
        %1070 = vmatprep.subr.mxu0 0.0
        %1071 = vmatpush1.msra.mxu0 0.0
        %1072 = vmatprep.subr.mxu0 0.0
        %1073 = vmatpush1.msra.mxu0 0.0
        %1074 = vmatprep.subr.mxu0 0.0
        %1075 = vmatpush1.msra.mxu0 0.0
        %1076 = vmatprep.subr.mxu0 0.0
        %1077 = vmatpush1.msra.mxu0 0.0
        %1078 = vmatprep.subr.mxu0 0.0
        %1079 = vmatpush1.msra.mxu0 0.0
        %1080 = vmatprep.subr.mxu0 0.0
        %1081 = vmatpush1.msra.mxu0 0.0
        %1082 = vmatprep.subr.mxu0 0.0
        %1083 = vmatpush1.msra.mxu0 0.0
        %1084 = vmatprep.subr.mxu0 0.0
        %1085 = vmatpush1.msra.mxu0 0.0
        %1086 = vmatprep.subr.mxu0 0.0
        %1087 = vmatpush1.msra.mxu0 0.0
        %1088 = vmatprep.subr.mxu0 0.0
        %1089 = vmatpush1.msra.mxu0 0.0
        %1090 = vmatprep.subr.mxu0 0.0
        %1091 = vmatpush1.msra.mxu0 0.0
        %1092 = vmatprep.subr.mxu0 0.0
        %1093 = vmatpush1.msra.mxu0 0.0
        %1094 = vmatprep.subr.mxu0 0.0
        %1095 = vmatpush1.msra.mxu0 0.0
        %1096 = vmatprep.subr.mxu0 0.0
        %1097 = vmatpush1.msra.mxu0 0.0
        %1098 = vmatprep.subr.mxu0 0.0
        %1099 = vmatpush1.msra.mxu0 0.0
        %1100 = vmatprep.subr.mxu0 0.0
        %1101 = vmatpush1.msra.mxu0 0.0
        %1102 = vmatprep.subr.mxu0 0.0
        %1103 = vmatpush1.msra.mxu0 0.0
        %1104 = vmatprep.subr.mxu0 0.0
        %1105 = vmatpush1.msra.mxu0 0.0
        %1106 = vmatprep.subr.mxu0 0.0
        %1107 = vmatpush1.msra.mxu0 0.0
        %1108 = vmatprep.subr.mxu0 0.0
        %1109 = vmatpush1.msra.mxu0 0.0
        %1110 = vmatprep.subr.mxu0 0.0
        %1111 = vmatpush1.msra.mxu0 0.0
        %1112 = vmatprep.subr.mxu0 0.0
        %1113 = vmatpush1.msra.mxu0 0.0
        %1114 = vmatprep.subr.mxu0 0.0
        %1115 = vmatpush1.msra.mxu0 0.0
        %1116 = vmatprep.subr.mxu0 0.0
        %1117 = vmatpush1.msra.mxu0 0.0
        %1118 = vmatprep.subr.mxu0 0.0
        %1119 = vmatpush1.msra.mxu0 0.0
        %1120 = vmatprep.mubr.f32.mxu0 0.0
        %1121 = vmatmul.mubr.f32.gmra.mrb[0].mxu0 %v1054
        %v1122 = vpop.f32.mrb[0].mxu0
        %v1123 = vadd.f32 %v383, %v1122
        %v1124 = vpop.f32.mrb[0].mxu0
        %1125 = vdwg.mxu0
        %1126 = vrot.lane.b32.xlu0 %v925, 96
        %v1127 = vpop.permute.xlu0 %1126
        %v1128 = vsel %vm445, %v1127, 0
        %1130 = vmatprep.subr.mxu0 0.0
        %1131 = vmatpush1.msra.mxu0 %v374
        %1132 = vmatprep.subr.mxu0 0.0
        %1133 = vmatpush1.msra.mxu0 %v375
        %1134 = vmatprep.subr.mxu0 0.0
        %1135 = vmatpush1.msra.mxu0 %v376
        %1136 = vmatprep.subr.mxu0 0.0
        %1137 = vmatpush1.msra.mxu0 %v377
        %1138 = vmatprep.subr.mxu0 0.0
        %1139 = vmatpush1.msra.mxu0 0.0
        %1140 = vmatprep.subr.mxu0 0.0
        %1141 = vmatpush1.msra.mxu0 0.0
        %1142 = vmatprep.subr.mxu0 0.0
        %1143 = vmatpush1.msra.mxu0 0.0
        %1144 = vmatprep.subr.mxu0 0.0
        %1145 = vmatpush1.msra.mxu0 0.0
        %1146 = vmatprep.subr.mxu0 0.0
        %1147 = vmatpush1.msra.mxu0 0.0
        %1148 = vmatprep.subr.mxu0 0.0
        %1149 = vmatpush1.msra.mxu0 0.0
        %1150 = vmatprep.subr.mxu0 0.0
        %1151 = vmatpush1.msra.mxu0 0.0
        %1152 = vmatprep.subr.mxu0 0.0
        %1153 = vmatpush1.msra.mxu0 0.0
        %1154 = vmatprep.subr.mxu0 0.0
        %1155 = vmatpush1.msra.mxu0 0.0
        %1156 = vmatprep.subr.mxu0 0.0
        %1157 = vmatpush1.msra.mxu0 0.0
        %1158 = vmatprep.subr.mxu0 0.0
        %1159 = vmatpush1.msra.mxu0 0.0
        %1160 = vmatprep.subr.mxu0 0.0
        %1161 = vmatpush1.msra.mxu0 0.0
        %1162 = vmatprep.subr.mxu0 0.0
        %1163 = vmatpush1.msra.mxu0 0.0
        %1164 = vmatprep.subr.mxu0 0.0
        %1165 = vmatpush1.msra.mxu0 0.0
        %1166 = vmatprep.subr.mxu0 0.0
        %1167 = vmatpush1.msra.mxu0 0.0
        %1168 = vmatprep.subr.mxu0 0.0
        %1169 = vmatpush1.msra.mxu0 0.0
        %1170 = vmatprep.subr.mxu0 0.0
        %1171 = vmatpush1.msra.mxu0 0.0
        %1172 = vmatprep.subr.mxu0 0.0
        %1173 = vmatpush1.msra.mxu0 0.0
        %1174 = vmatprep.subr.mxu0 0.0
        %1175 = vmatpush1.msra.mxu0 0.0
        %1176 = vmatprep.subr.mxu0 0.0
        %1177 = vmatpush1.msra.mxu0 0.0
        %1178 = vmatprep.subr.mxu0 0.0
        %1179 = vmatpush1.msra.mxu0 0.0
        %1180 = vmatprep.subr.mxu0 0.0
        %1181 = vmatpush1.msra.mxu0 0.0
        %1182 = vmatprep.subr.mxu0 0.0
        %1183 = vmatpush1.msra.mxu0 0.0
        %1184 = vmatprep.subr.mxu0 0.0
        %1185 = vmatpush1.msra.mxu0 0.0
        %1186 = vmatprep.subr.mxu0 0.0
        %1187 = vmatpush1.msra.mxu0 0.0
        %1188 = vmatprep.subr.mxu0 0.0
        %1189 = vmatpush1.msra.mxu0 0.0
        %1190 = vmatprep.subr.mxu0 0.0
        %1191 = vmatpush1.msra.mxu0 0.0
        %1192 = vmatprep.subr.mxu0 0.0
        %1193 = vmatpush1.msra.mxu0 0.0
        %1194 = vmatprep.mubr.f32.mxu0 0.0
        %1195 = vmatmul.mubr.f32.gmra.mrb[0].mxu0 %v1128
        %v1196 = vpop.f32.mrb[0].mxu0
        %v1197 = vadd.f32 0.0, %v1196
        %v1198 = vpop.f32.mrb[0].mxu0
        %1199 = vdwg.mxu0
        %v1200 = vadd.f32 %v1123, %v1197
        %v1201 = vxor.u32 %v1200, 2147483648
        %v1202 = vmul.f32 %v1201, 1.442695
        %v1203 = vpow.pop %v1202
        %v1204 = vadd.f32 %v1203, 1.0
        %v1205 = vrcp.pop %v1204
        %v1206 = vmul.f32 1.0, %v1205
        %v1207 = vadd.f32 %v1197, %v599
        %1209 = vrot.lane.b32.xlu0 %v1207, 64
        %v1210 = vpop.permute.xlu0 %1209
        %v1212 = vmul.f32 %v1206, %v1210
        %1214 = vrot.lane.b32.xlu0 %v1212, 64
        %v1215 = vpop.permute.xlu0 %1214
        %v1217 = vadd.f32 %v1123, %v1215
        %v1218 = vtanh.pop %v1217
        %v1219 = vsub.f32 1.0, %v1206
        %1221 = vrot.lane.b32.xlu0 %v1218, 96
        %v1222 = vpop.permute.xlu0 %1221
        %v1224 = vmul.f32 %v1219, %v1222
        %v1225 = vmul.f32 %v1206, %v925
        %v1226 = vadd.f32 %v1224, %v1225
        %v1228 = vcombine.high %v1226, %v1226
        %v1230 = vunpack.c.l.s4 1966171168
        %v1231 = vunpack.c.0.s8 %v1230
        %v1232 = vlaneseq
        %v1233 = vshrl.u32 %v1232, 7
        %v1234 = vsub.s32 %v1231, %v1233
        %v1235 = vrot.slane %v1226, %v1234
        %v1237 = vunpack.c.l.s4 1966171168
        %v1238 = vunpack.c.0.s8 %v1237
        %v1239 = vlaneseq
        %v1240 = vshrl.u32 %v1239, 7
        %v1241 = vsub.s32 %v1238, %v1240
        %v1242 = vrot.slane %v1228, %v1241
        %v1243 = vcombine.high %v1235, %v1235
        %v1244 = vcombine.high %v1242, %v1242
        %v1246 = vunpack.c.l.s4 1966171168
        %v1247 = vunpack.c.0.s8 %v1246
        %v1248 = vlaneseq
        %v1249 = vshrl.u32 %v1248, 7
        %v1250 = vsub.s32 %v1247, %v1249
        %v1251 = vrot.slane %v1235, %v1250
        %v1253 = vunpack.c.l.s4 1966171168
        %v1254 = vunpack.c.0.s8 %v1253
        %v1255 = vlaneseq
        %v1256 = vshrl.u32 %v1255, 7
        %v1257 = vsub.s32 %v1254, %v1256
        %v1258 = vrot.slane %v1242, %v1257
        %v1260 = vunpack.c.l.s4 1966171168
        %v1261 = vunpack.c.0.s8 %v1260
        %v1262 = vlaneseq
        %v1263 = vshrl.u32 %v1262, 7
        %v1264 = vsub.s32 %v1261, %v1263
        %v1265 = vrot.slane %v1243, %v1264
        %v1267 = vunpack.c.l.s4 1966171168
        %v1268 = vunpack.c.0.s8 %v1267
        %v1269 = vlaneseq
        %v1270 = vshrl.u32 %v1269, 7
        %v1271 = vsub.s32 %v1268, %v1270
        %v1272 = vrot.slane %v1244, %v1271
        %v1273 = vcombine.high %v1251, %v1251
        %v1274 = vcombine.high %v1258, %v1258
        %v1275 = vcombine.high %v1265, %v1265
        %v1276 = vcombine.high %v1272, %v1272
        %v1277 = vlaneseq
        %v1278 = vshrl.u32 %v1277, 7
        %v1279 = vsub.s32 0, %v1278
        %v1280 = vrot.slane %v1251, %v1279
        %v1281 = vlaneseq
        %v1282 = vshrl.u32 %v1281, 7
        %v1283 = vsub.s32 0, %v1282
        %v1284 = vrot.slane %v1265, %v1283
        %v1285 = vlaneseq
        %v1286 = vshrl.u32 %v1285, 7
        %v1287 = vsub.s32 0, %v1286
        %v1288 = vrot.slane %v1273, %v1287
        %v1289 = vlaneseq
        %v1290 = vshrl.u32 %v1289, 7
        %v1291 = vsub.s32 0, %v1290
        %v1292 = vrot.slane %v1275, %v1291
        %v1293 = vlaneseq
        %v1294 = vshrl.u32 %v1293, 7
        %v1295 = vsub.s32 0, %v1294
        %v1296 = vrot.slane %v1258, %v1295
        %v1297 = vlaneseq
        %v1298 = vshrl.u32 %v1297, 7
        %v1299 = vsub.s32 0, %v1298
        %v1300 = vrot.slane %v1272, %v1299
        %v1301 = vlaneseq
        %v1302 = vshrl.u32 %v1301, 7
        %v1303 = vsub.s32 0, %v1302
        %v1304 = vrot.slane %v1274, %v1303
        %v1305 = vlaneseq
        %v1306 = vshrl.u32 %v1305, 7
        %v1307 = vsub.s32 0, %v1306
        %v1308 = vrot.slane %v1276, %v1307
        %1309 = vrot.lane.b32.xlu0 %v1280, 96
        %v1310 = vpop.permute.xlu0 %1309
        %1311 = vrot.lane.b32.xlu0 %v1284, 96
        %v1312 = vpop.permute.xlu0 %1311
        %1313 = vrot.lane.b32.xlu0 %v1288, 96
        %v1314 = vpop.permute.xlu0 %1313
        %1315 = vrot.lane.b32.xlu0 %v1292, 96
        %v1316 = vpop.permute.xlu0 %1315
        %1317 = vrot.lane.b32.xlu0 %v1296, 96
        %v1318 = vpop.permute.xlu0 %1317
        %1319 = vrot.lane.b32.xlu0 %v1300, 96
        %v1320 = vpop.permute.xlu0 %1319
        %1321 = vrot.lane.b32.xlu0 %v1304, 96
        %v1322 = vpop.permute.xlu0 %1321
        %1323 = vrot.lane.b32.xlu0 %v1308, 96
        %v1324 = vpop.permute.xlu0 %1323
        %1333 = vst.msk [vmem:[%s360 + $0x2] sm:$0x1] %vm730, %v1310
        %1334 = vst.msk [vmem:[%s360 + $0xa] sm:$0x1] %vm730, %v1312
        %1335 = vst.msk [vmem:[%s360 + $0x12] sm:$0x1] %vm730, %v1314
        %1336 = vst.msk [vmem:[%s360 + $0x1a] sm:$0x1] %vm730, %v1316
        %1337 = vst.msk [vmem:[%s360 + $0x22] sm:$0x1] %vm730, %v1318
        %1338 = vst.msk [vmem:[%s360 + $0x2a] sm:$0x1] %vm730, %v1320
        %1339 = vst.msk [vmem:[%s360 + $0x32] sm:$0x1] %vm730, %v1322
        %1340 = vst.msk [vmem:[%s360 + $0x3a] sm:$0x1] %vm730, %v1324
        %v1341 = vrot.slane %v407, 3
        %v1342 = vrot.slane %v408, 2
        %v1343 = vsel %vm425, %v1342, %v1341
        %v1344 = vrot.slane %v409, 1
        %v1345 = vsel %vm428, %v1344, %v1343
        %v1346 = vsel %vm431, %v410, %v1345
        %v1347 = vrot.slane %v411, 7
        %v1348 = vsel %vm434, %v1347, %v1346
        %v1349 = vrot.slane %v412, 6
        %v1350 = vsel %vm437, %v1349, %v1348
        %v1351 = vrot.slane %v413, 5
        %v1352 = vsel %vm440, %v1351, %v1350
        %v1353 = vrot.slane %v414, 4
        %v1354 = vsel %vm443, %v1353, %v1352
        %v1355 = vsel %vm445, %v1354, 0
        %1357 = vmatprep.subr.mxu0 0.0
        %1358 = vmatpush1.msra.mxu0 %v370
        %1359 = vmatprep.subr.mxu0 0.0
        %1360 = vmatpush1.msra.mxu0 %v371
        %1361 = vmatprep.subr.mxu0 0.0
        %1362 = vmatpush1.msra.mxu0 %v372
        %1363 = vmatprep.subr.mxu0 0.0
        %1364 = vmatpush1.msra.mxu0 %v373
        %1365 = vmatprep.subr.mxu0 0.0
        %1366 = vmatpush1.msra.mxu0 0.0
        %1367 = vmatprep.subr.mxu0 0.0
        %1368 = vmatpush1.msra.mxu0 0.0
        %1369 = vmatprep.subr.mxu0 0.0
        %1370 = vmatpush1.msra.mxu0 0.0
        %1371 = vmatprep.subr.mxu0 0.0
        %1372 = vmatpush1.msra.mxu0 0.0
        %1373 = vmatprep.subr.mxu0 0.0
        %1374 = vmatpush1.msra.mxu0 0.0
        %1375 = vmatprep.subr.mxu0 0.0
        %1376 = vmatpush1.msra.mxu0 0.0
        %1377 = vmatprep.subr.mxu0 0.0
        %1378 = vmatpush1.msra.mxu0 0.0
        %1379 = vmatprep.subr.mxu0 0.0
        %1380 = vmatpush1.msra.mxu0 0.0
        %1381 = vmatprep.subr.mxu0 0.0
        %1382 = vmatpush1.msra.mxu0 0.0
        %1383 = vmatprep.subr.mxu0 0.0
        %1384 = vmatpush1.msra.mxu0 0.0
        %1385 = vmatprep.subr.mxu0 0.0
        %1386 = vmatpush1.msra.mxu0 0.0
        %1387 = vmatprep.subr.mxu0 0.0
        %1388 = vmatpush1.msra.mxu0 0.0
        %1389 = vmatprep.subr.mxu0 0.0
        %1390 = vmatpush1.msra.mxu0 0.0
        %1391 = vmatprep.subr.mxu0 0.0
        %1392 = vmatpush1.msra.mxu0 0.0
        %1393 = vmatprep.subr.mxu0 0.0
        %1394 = vmatpush1.msra.mxu0 0.0
        %1395 = vmatprep.subr.mxu0 0.0
        %1396 = vmatpush1.msra.mxu0 0.0
        %1397 = vmatprep.subr.mxu0 0.0
        %1398 = vmatpush1.msra.mxu0 0.0
        %1399 = vmatprep.subr.mxu0 0.0
        %1400 = vmatpush1.msra.mxu0 0.0
        %1401 = vmatprep.subr.mxu0 0.0
        %1402 = vmatpush1.msra.mxu0 0.0
        %1403 = vmatprep.subr.mxu0 0.0
        %1404 = vmatpush1.msra.mxu0 0.0
        %1405 = vmatprep.subr.mxu0 0.0
        %1406 = vmatpush1.msra.mxu0 0.0
        %1407 = vmatprep.subr.mxu0 0.0
        %1408 = vmatpush1.msra.mxu0 0.0
        %1409 = vmatprep.subr.mxu0 0.0
        %1410 = vmatpush1.msra.mxu0 0.0
        %1411 = vmatprep.subr.mxu0 0.0
        %1412 = vmatpush1.msra.mxu0 0.0
        %1413 = vmatprep.subr.mxu0 0.0
        %1414 = vmatpush1.msra.mxu0 0.0
        %1415 = vmatprep.subr.mxu0 0.0
        %1416 = vmatpush1.msra.mxu0 0.0
        %1417 = vmatprep.subr.mxu0 0.0
        %1418 = vmatpush1.msra.mxu0 0.0
        %1419 = vmatprep.subr.mxu0 0.0
        %1420 = vmatpush1.msra.mxu0 0.0
        %1421 = vmatprep.mubr.f32.mxu0 0.0
        %1422 = vmatmul.mubr.f32.gmra.mrb[0].mxu0 %v1355
        %v1423 = vpop.f32.mrb[0].mxu0
        %v1424 = vadd.f32 %v383, %v1423
        %v1425 = vpop.f32.mrb[0].mxu0
        %1426 = vdwg.mxu0
        %1427 = vrot.lane.b32.xlu0 %v1226, 96
        %v1428 = vpop.permute.xlu0 %1427
        %v1429 = vsel %vm445, %v1428, 0
        %1431 = vmatprep.subr.mxu0 0.0
        %1432 = vmatpush1.msra.mxu0 %v374
        %1433 = vmatprep.subr.mxu0 0.0
        %1434 = vmatpush1.msra.mxu0 %v375
        %1435 = vmatprep.subr.mxu0 0.0
        %1436 = vmatpush1.msra.mxu0 %v376
        %1437 = vmatprep.subr.mxu0 0.0
        %1438 = vmatpush1.msra.mxu0 %v377
        %1439 = vmatprep.subr.mxu0 0.0
        %1440 = vmatpush1.msra.mxu0 0.0
        %1441 = vmatprep.subr.mxu0 0.0
        %1442 = vmatpush1.msra.mxu0 0.0
        %1443 = vmatprep.subr.mxu0 0.0
        %1444 = vmatpush1.msra.mxu0 0.0
        %1445 = vmatprep.subr.mxu0 0.0
        %1446 = vmatpush1.msra.mxu0 0.0
        %1447 = vmatprep.subr.mxu0 0.0
        %1448 = vmatpush1.msra.mxu0 0.0
        %1449 = vmatprep.subr.mxu0 0.0
        %1450 = vmatpush1.msra.mxu0 0.0
        %1451 = vmatprep.subr.mxu0 0.0
        %1452 = vmatpush1.msra.mxu0 0.0
        %1453 = vmatprep.subr.mxu0 0.0
        %1454 = vmatpush1.msra.mxu0 0.0
        %1455 = vmatprep.subr.mxu0 0.0
        %1456 = vmatpush1.msra.mxu0 0.0
        %1457 = vmatprep.subr.mxu0 0.0
        %1458 = vmatpush1.msra.mxu0 0.0
        %1459 = vmatprep.subr.mxu0 0.0
        %1460 = vmatpush1.msra.mxu0 0.0
        %1461 = vmatprep.subr.mxu0 0.0
        %1462 = vmatpush1.msra.mxu0 0.0
        %1463 = vmatprep.subr.mxu0 0.0
        %1464 = vmatpush1.msra.mxu0 0.0
        %1465 = vmatprep.subr.mxu0 0.0
        %1466 = vmatpush1.msra.mxu0 0.0
        %1467 = vmatprep.subr.mxu0 0.0
        %1468 = vmatpush1.msra.mxu0 0.0
        %1469 = vmatprep.subr.mxu0 0.0
        %1470 = vmatpush1.msra.mxu0 0.0
        %1471 = vmatprep.subr.mxu0 0.0
        %1472 = vmatpush1.msra.mxu0 0.0
        %1473 = vmatprep.subr.mxu0 0.0
        %1474 = vmatpush1.msra.mxu0 0.0
        %1475 = vmatprep.subr.mxu0 0.0
        %1476 = vmatpush1.msra.mxu0 0.0
        %1477 = vmatprep.subr.mxu0 0.0
        %1478 = vmatpush1.msra.mxu0 0.0
        %1479 = vmatprep.subr.mxu0 0.0
        %1480 = vmatpush1.msra.mxu0 0.0
        %1481 = vmatprep.subr.mxu0 0.0
        %1482 = vmatpush1.msra.mxu0 0.0
        %1483 = vmatprep.subr.mxu0 0.0
        %1484 = vmatpush1.msra.mxu0 0.0
        %1485 = vmatprep.subr.mxu0 0.0
        %1486 = vmatpush1.msra.mxu0 0.0
        %1487 = vmatprep.subr.mxu0 0.0
        %1488 = vmatpush1.msra.mxu0 0.0
        %1489 = vmatprep.subr.mxu0 0.0
        %1490 = vmatpush1.msra.mxu0 0.0
        %1491 = vmatprep.subr.mxu0 0.0
        %1492 = vmatpush1.msra.mxu0 0.0
        %1493 = vmatprep.subr.mxu0 0.0
        %1494 = vmatpush1.msra.mxu0 0.0
        %1495 = vmatprep.mubr.f32.mxu0 0.0
        %1496 = vmatmul.mubr.f32.gmra.mrb[0].mxu0 %v1429
        %v1497 = vpop.f32.mrb[0].mxu0
        %v1498 = vadd.f32 0.0, %v1497
        %v1499 = vpop.f32.mrb[0].mxu0
        %1500 = vdwg.mxu0
        %v1501 = vadd.f32 %v1424, %v1498
        %v1502 = vxor.u32 %v1501, 2147483648
        %v1503 = vmul.f32 %v1502, 1.442695
        %v1504 = vpow.pop %v1503
        %v1505 = vadd.f32 %v1504, 1.0
        %v1506 = vrcp.pop %v1505
        %v1507 = vmul.f32 1.0, %v1506
        %v1508 = vadd.f32 %v1498, %v599
        %1510 = vrot.lane.b32.xlu0 %v1508, 64
        %v1511 = vpop.permute.xlu0 %1510
        %v1513 = vmul.f32 %v1507, %v1511
        %1515 = vrot.lane.b32.xlu0 %v1513, 64
        %v1516 = vpop.permute.xlu0 %1515
        %v1518 = vadd.f32 %v1424, %v1516
        %v1519 = vtanh.pop %v1518
        %v1520 = vsub.f32 1.0, %v1507
        %1522 = vrot.lane.b32.xlu0 %v1519, 96
        %v1523 = vpop.permute.xlu0 %1522
        %v1525 = vmul.f32 %v1520, %v1523
        %v1526 = vmul.f32 %v1507, %v1226
        %v1527 = vadd.f32 %v1525, %v1526
        %v1529 = vcombine.high %v1527, %v1527
        %v1531 = vunpack.c.l.s4 1966171168
        %v1532 = vunpack.c.0.s8 %v1531
        %v1533 = vlaneseq
        %v1534 = vshrl.u32 %v1533, 7
        %v1535 = vsub.s32 %v1532, %v1534
        %v1536 = vrot.slane %v1527, %v1535
        %v1538 = vunpack.c.l.s4 1966171168
        %v1539 = vunpack.c.0.s8 %v1538
        %v1540 = vlaneseq
        %v1541 = vshrl.u32 %v1540, 7
        %v1542 = vsub.s32 %v1539, %v1541
        %v1543 = vrot.slane %v1529, %v1542
        %v1544 = vcombine.high %v1536, %v1536
        %v1545 = vcombine.high %v1543, %v1543
        %v1547 = vunpack.c.l.s4 1966171168
        %v1548 = vunpack.c.0.s8 %v1547
        %v1549 = vlaneseq
        %v1550 = vshrl.u32 %v1549, 7
        %v1551 = vsub.s32 %v1548, %v1550
        %v1552 = vrot.slane %v1536, %v1551
        %v1554 = vunpack.c.l.s4 1966171168
        %v1555 = vunpack.c.0.s8 %v1554
        %v1556 = vlaneseq
        %v1557 = vshrl.u32 %v1556, 7
        %v1558 = vsub.s32 %v1555, %v1557
        %v1559 = vrot.slane %v1543, %v1558
        %v1561 = vunpack.c.l.s4 1966171168
        %v1562 = vunpack.c.0.s8 %v1561
        %v1563 = vlaneseq
        %v1564 = vshrl.u32 %v1563, 7
        %v1565 = vsub.s32 %v1562, %v1564
        %v1566 = vrot.slane %v1544, %v1565
        %v1568 = vunpack.c.l.s4 1966171168
        %v1569 = vunpack.c.0.s8 %v1568
        %v1570 = vlaneseq
        %v1571 = vshrl.u32 %v1570, 7
        %v1572 = vsub.s32 %v1569, %v1571
        %v1573 = vrot.slane %v1545, %v1572
        %v1574 = vcombine.high %v1552, %v1552
        %v1575 = vcombine.high %v1559, %v1559
        %v1576 = vcombine.high %v1566, %v1566
        %v1577 = vcombine.high %v1573, %v1573
        %v1578 = vlaneseq
        %v1579 = vshrl.u32 %v1578, 7
        %v1580 = vsub.s32 0, %v1579
        %v1581 = vrot.slane %v1552, %v1580
        %v1582 = vlaneseq
        %v1583 = vshrl.u32 %v1582, 7
        %v1584 = vsub.s32 0, %v1583
        %v1585 = vrot.slane %v1566, %v1584
        %v1586 = vlaneseq
        %v1587 = vshrl.u32 %v1586, 7
        %v1588 = vsub.s32 0, %v1587
        %v1589 = vrot.slane %v1574, %v1588
        %v1590 = vlaneseq
        %v1591 = vshrl.u32 %v1590, 7
        %v1592 = vsub.s32 0, %v1591
        %v1593 = vrot.slane %v1576, %v1592
        %v1594 = vlaneseq
        %v1595 = vshrl.u32 %v1594, 7
        %v1596 = vsub.s32 0, %v1595
        %v1597 = vrot.slane %v1559, %v1596
        %v1598 = vlaneseq
        %v1599 = vshrl.u32 %v1598, 7
        %v1600 = vsub.s32 0, %v1599
        %v1601 = vrot.slane %v1573, %v1600
        %v1602 = vlaneseq
        %v1603 = vshrl.u32 %v1602, 7
        %v1604 = vsub.s32 0, %v1603
        %v1605 = vrot.slane %v1575, %v1604
        %v1606 = vlaneseq
        %v1607 = vshrl.u32 %v1606, 7
        %v1608 = vsub.s32 0, %v1607
        %v1609 = vrot.slane %v1577, %v1608
        %1610 = vrot.lane.b32.xlu0 %v1581, 96
        %v1611 = vpop.permute.xlu0 %1610
        %1612 = vrot.lane.b32.xlu0 %v1585, 96
        %v1613 = vpop.permute.xlu0 %1612
        %1614 = vrot.lane.b32.xlu0 %v1589, 96
        %v1615 = vpop.permute.xlu0 %1614
        %1616 = vrot.lane.b32.xlu0 %v1593, 96
        %v1617 = vpop.permute.xlu0 %1616
        %1618 = vrot.lane.b32.xlu0 %v1597, 96
        %v1619 = vpop.permute.xlu0 %1618
        %1620 = vrot.lane.b32.xlu0 %v1601, 96
        %v1621 = vpop.permute.xlu0 %1620
        %1622 = vrot.lane.b32.xlu0 %v1605, 96
        %v1623 = vpop.permute.xlu0 %1622
        %1624 = vrot.lane.b32.xlu0 %v1609, 96
        %v1625 = vpop.permute.xlu0 %1624
        %1634 = vst.msk [vmem:[%s360 + $0x3] sm:$0x1] %vm730, %v1611
        %1635 = vst.msk [vmem:[%s360 + $0xb] sm:$0x1] %vm730, %v1613
        %1636 = vst.msk [vmem:[%s360 + $0x13] sm:$0x1] %vm730, %v1615
        %1637 = vst.msk [vmem:[%s360 + $0x1b] sm:$0x1] %vm730, %v1617
        %1638 = vst.msk [vmem:[%s360 + $0x23] sm:$0x1] %vm730, %v1619
        %1639 = vst.msk [vmem:[%s360 + $0x2b] sm:$0x1] %vm730, %v1621
        %1640 = vst.msk [vmem:[%s360 + $0x33] sm:$0x1] %vm730, %v1623
        %1641 = vst.msk [vmem:[%s360 + $0x3b] sm:$0x1] %vm730, %v1625
        %v1642 = vrot.slane %v407, 4
        %v1643 = vrot.slane %v408, 3
        %v1644 = vsel %vm425, %v1643, %v1642
        %v1645 = vrot.slane %v409, 2
        %v1646 = vsel %vm428, %v1645, %v1644
        %v1647 = vrot.slane %v410, 1
        %v1648 = vsel %vm431, %v1647, %v1646
        %v1649 = vsel %vm434, %v411, %v1648
        %v1650 = vrot.slane %v412, 7
        %v1651 = vsel %vm437, %v1650, %v1649
        %v1652 = vrot.slane %v413, 6
        %v1653 = vsel %vm440, %v1652, %v1651
        %v1654 = vrot.slane %v414, 5
        %v1655 = vsel %vm443, %v1654, %v1653
        %v1656 = vsel %vm445, %v1655, 0
        %1658 = vmatprep.subr.mxu0 0.0
        %1659 = vmatpush1.msra.mxu0 %v370
        %1660 = vmatprep.subr.mxu0 0.0
        %1661 = vmatpush1.msra.mxu0 %v371
        %1662 = vmatprep.subr.mxu0 0.0
        %1663 = vmatpush1.msra.mxu0 %v372
        %1664 = vmatprep.subr.mxu0 0.0
        %1665 = vmatpush1.msra.mxu0 %v373
        %1666 = vmatprep.subr.mxu0 0.0
        %1667 = vmatpush1.msra.mxu0 0.0
        %1668 = vmatprep.subr.mxu0 0.0
        %1669 = vmatpush1.msra.mxu0 0.0
        %1670 = vmatprep.subr.mxu0 0.0
        %1671 = vmatpush1.msra.mxu0 0.0
        %1672 = vmatprep.subr.mxu0 0.0
        %1673 = vmatpush1.msra.mxu0 0.0
        %1674 = vmatprep.subr.mxu0 0.0
        %1675 = vmatpush1.msra.mxu0 0.0
        %1676 = vmatprep.subr.mxu0 0.0
        %1677 = vmatpush1.msra.mxu0 0.0
        %1678 = vmatprep.subr.mxu0 0.0
        %1679 = vmatpush1.msra.mxu0 0.0
        %1680 = vmatprep.subr.mxu0 0.0
        %1681 = vmatpush1.msra.mxu0 0.0
        %1682 = vmatprep.subr.mxu0 0.0
        %1683 = vmatpush1.msra.mxu0 0.0
        %1684 = vmatprep.subr.mxu0 0.0
        %1685 = vmatpush1.msra.mxu0 0.0
        %1686 = vmatprep.subr.mxu0 0.0
        %1687 = vmatpush1.msra.mxu0 0.0
        %1688 = vmatprep.subr.mxu0 0.0
        %1689 = vmatpush1.msra.mxu0 0.0
        %1690 = vmatprep.subr.mxu0 0.0
        %1691 = vmatpush1.msra.mxu0 0.0
        %1692 = vmatprep.subr.mxu0 0.0
        %1693 = vmatpush1.msra.mxu0 0.0
        %1694 = vmatprep.subr.mxu0 0.0
        %1695 = vmatpush1.msra.mxu0 0.0
        %1696 = vmatprep.subr.mxu0 0.0
        %1697 = vmatpush1.msra.mxu0 0.0
        %1698 = vmatprep.subr.mxu0 0.0
        %1699 = vmatpush1.msra.mxu0 0.0
        %1700 = vmatprep.subr.mxu0 0.0
        %1701 = vmatpush1.msra.mxu0 0.0
        %1702 = vmatprep.subr.mxu0 0.0
        %1703 = vmatpush1.msra.mxu0 0.0
        %1704 = vmatprep.subr.mxu0 0.0
        %1705 = vmatpush1.msra.mxu0 0.0
        %1706 = vmatprep.subr.mxu0 0.0
        %1707 = vmatpush1.msra.mxu0 0.0
        %1708 = vmatprep.subr.mxu0 0.0
        %1709 = vmatpush1.msra.mxu0 0.0
        %1710 = vmatprep.subr.mxu0 0.0
        %1711 = vmatpush1.msra.mxu0 0.0
        %1712 = vmatprep.subr.mxu0 0.0
        %1713 = vmatpush1.msra.mxu0 0.0
        %1714 = vmatprep.subr.mxu0 0.0
        %1715 = vmatpush1.msra.mxu0 0.0
        %1716 = vmatprep.subr.mxu0 0.0
        %1717 = vmatpush1.msra.mxu0 0.0
        %1718 = vmatprep.subr.mxu0 0.0
        %1719 = vmatpush1.msra.mxu0 0.0
        %1720 = vmatprep.subr.mxu0 0.0
        %1721 = vmatpush1.msra.mxu0 0.0
        %1722 = vmatprep.mubr.f32.mxu0 0.0
        %1723 = vmatmul.mubr.f32.gmra.mrb[0].mxu0 %v1656
        %v1724 = vpop.f32.mrb[0].mxu0
        %v1725 = vadd.f32 %v383, %v1724
        %v1726 = vpop.f32.mrb[0].mxu0
        %1727 = vdwg.mxu0
        %1728 = vrot.lane.b32.xlu0 %v1527, 96
        %v1729 = vpop.permute.xlu0 %1728
        %v1730 = vsel %vm445, %v1729, 0
        %1732 = vmatprep.subr.mxu0 0.0
        %1733 = vmatpush1.msra.mxu0 %v374
        %1734 = vmatprep.subr.mxu0 0.0
        %1735 = vmatpush1.msra.mxu0 %v375
        %1736 = vmatprep.subr.mxu0 0.0
        %1737 = vmatpush1.msra.mxu0 %v376
        %1738 = vmatprep.subr.mxu0 0.0
        %1739 = vmatpush1.msra.mxu0 %v377
        %1740 = vmatprep.subr.mxu0 0.0
        %1741 = vmatpush1.msra.mxu0 0.0
        %1742 = vmatprep.subr.mxu0 0.0
        %1743 = vmatpush1.msra.mxu0 0.0
        %1744 = vmatprep.subr.mxu0 0.0
        %1745 = vmatpush1.msra.mxu0 0.0
        %1746 = vmatprep.subr.mxu0 0.0
        %1747 = vmatpush1.msra.mxu0 0.0
        %1748 = vmatprep.subr.mxu0 0.0
        %1749 = vmatpush1.msra.mxu0 0.0
        %1750 = vmatprep.subr.mxu0 0.0
        %1751 = vmatpush1.msra.mxu0 0.0
        %1752 = vmatprep.subr.mxu0 0.0
        %1753 = vmatpush1.msra.mxu0 0.0
        %1754 = vmatprep.subr.mxu0 0.0
        %1755 = vmatpush1.msra.mxu0 0.0
        %1756 = vmatprep.subr.mxu0 0.0
        %1757 = vmatpush1.msra.mxu0 0.0
        %1758 = vmatprep.subr.mxu0 0.0
        %1759 = vmatpush1.msra.mxu0 0.0
        %1760 = vmatprep.subr.mxu0 0.0
        %1761 = vmatpush1.msra.mxu0 0.0
        %1762 = vmatprep.subr.mxu0 0.0
        %1763 = vmatpush1.msra.mxu0 0.0
        %1764 = vmatprep.subr.mxu0 0.0
        %1765 = vmatpush1.msra.mxu0 0.0
        %1766 = vmatprep.subr.mxu0 0.0
        %1767 = vmatpush1.msra.mxu0 0.0
        %1768 = vmatprep.subr.mxu0 0.0
        %1769 = vmatpush1.msra.mxu0 0.0
        %1770 = vmatprep.subr.mxu0 0.0
        %1771 = vmatpush1.msra.mxu0 0.0
        %1772 = vmatprep.subr.mxu0 0.0
        %1773 = vmatpush1.msra.mxu0 0.0
        %1774 = vmatprep.subr.mxu0 0.0
        %1775 = vmatpush1.msra.mxu0 0.0
        %1776 = vmatprep.subr.mxu0 0.0
        %1777 = vmatpush1.msra.mxu0 0.0
        %1778 = vmatprep.subr.mxu0 0.0
        %1779 = vmatpush1.msra.mxu0 0.0
        %1780 = vmatprep.subr.mxu0 0.0
        %1781 = vmatpush1.msra.mxu0 0.0
        %1782 = vmatprep.subr.mxu0 0.0
        %1783 = vmatpush1.msra.mxu0 0.0
        %1784 = vmatprep.subr.mxu0 0.0
        %1785 = vmatpush1.msra.mxu0 0.0
        %1786 = vmatprep.subr.mxu0 0.0
        %1787 = vmatpush1.msra.mxu0 0.0
        %1788 = vmatprep.subr.mxu0 0.0
        %1789 = vmatpush1.msra.mxu0 0.0
        %1790 = vmatprep.subr.mxu0 0.0
        %1791 = vmatpush1.msra.mxu0 0.0
        %1792 = vmatprep.subr.mxu0 0.0
        %1793 = vmatpush1.msra.mxu0 0.0
        %1794 = vmatprep.subr.mxu0 0.0
        %1795 = vmatpush1.msra.mxu0 0.0
        %1796 = vmatprep.mubr.f32.mxu0 0.0
        %1797 = vmatmul.mubr.f32.gmra.mrb[0].mxu0 %v1730
        %v1798 = vpop.f32.mrb[0].mxu0
        %v1799 = vadd.f32 0.0, %v1798
        %v1800 = vpop.f32.mrb[0].mxu0
        %1801 = vdwg.mxu0
        %v1802 = vadd.f32 %v1725, %v1799
        %v1803 = vxor.u32 %v1802, 2147483648
        %v1804 = vmul.f32 %v1803, 1.442695
        %v1805 = vpow.pop %v1804
        %v1806 = vadd.f32 %v1805, 1.0
        %v1807 = vrcp.pop %v1806
        %v1808 = vmul.f32 1.0, %v1807
        %v1809 = vadd.f32 %v1799, %v599
        %1811 = vrot.lane.b32.xlu0 %v1809, 64
        %v1812 = vpop.permute.xlu0 %1811
        %v1814 = vmul.f32 %v1808, %v1812
        %1816 = vrot.lane.b32.xlu0 %v1814, 64
        %v1817 = vpop.permute.xlu0 %1816
        %v1819 = vadd.f32 %v1725, %v1817
        %v1820 = vtanh.pop %v1819
        %v1821 = vsub.f32 1.0, %v1808
        %1823 = vrot.lane.b32.xlu0 %v1820, 96
        %v1824 = vpop.permute.xlu0 %1823
        %v1826 = vmul.f32 %v1821, %v1824
        %v1827 = vmul.f32 %v1808, %v1527
        %v1828 = vadd.f32 %v1826, %v1827
        %v1830 = vcombine.high %v1828, %v1828
        %v1832 = vunpack.c.l.s4 1966171168
        %v1833 = vunpack.c.0.s8 %v1832
        %v1834 = vlaneseq
        %v1835 = vshrl.u32 %v1834, 7
        %v1836 = vsub.s32 %v1833, %v1835
        %v1837 = vrot.slane %v1828, %v1836
        %v1839 = vunpack.c.l.s4 1966171168
        %v1840 = vunpack.c.0.s8 %v1839
        %v1841 = vlaneseq
        %v1842 = vshrl.u32 %v1841, 7
        %v1843 = vsub.s32 %v1840, %v1842
        %v1844 = vrot.slane %v1830, %v1843
        %v1845 = vcombine.high %v1837, %v1837
        %v1846 = vcombine.high %v1844, %v1844
        %v1848 = vunpack.c.l.s4 1966171168
        %v1849 = vunpack.c.0.s8 %v1848
        %v1850 = vlaneseq
        %v1851 = vshrl.u32 %v1850, 7
        %v1852 = vsub.s32 %v1849, %v1851
        %v1853 = vrot.slane %v1837, %v1852
        %v1855 = vunpack.c.l.s4 1966171168
        %v1856 = vunpack.c.0.s8 %v1855
        %v1857 = vlaneseq
        %v1858 = vshrl.u32 %v1857, 7
        %v1859 = vsub.s32 %v1856, %v1858
        %v1860 = vrot.slane %v1844, %v1859
        %v1862 = vunpack.c.l.s4 1966171168
        %v1863 = vunpack.c.0.s8 %v1862
        %v1864 = vlaneseq
        %v1865 = vshrl.u32 %v1864, 7
        %v1866 = vsub.s32 %v1863, %v1865
        %v1867 = vrot.slane %v1845, %v1866
        %v1869 = vunpack.c.l.s4 1966171168
        %v1870 = vunpack.c.0.s8 %v1869
        %v1871 = vlaneseq
        %v1872 = vshrl.u32 %v1871, 7
        %v1873 = vsub.s32 %v1870, %v1872
        %v1874 = vrot.slane %v1846, %v1873
        %v1875 = vcombine.high %v1853, %v1853
        %v1876 = vcombine.high %v1860, %v1860
        %v1877 = vcombine.high %v1867, %v1867
        %v1878 = vcombine.high %v1874, %v1874
        %v1879 = vlaneseq
        %v1880 = vshrl.u32 %v1879, 7
        %v1881 = vsub.s32 0, %v1880
        %v1882 = vrot.slane %v1853, %v1881
        %v1883 = vlaneseq
        %v1884 = vshrl.u32 %v1883, 7
        %v1885 = vsub.s32 0, %v1884
        %v1886 = vrot.slane %v1867, %v1885
        %v1887 = vlaneseq
        %v1888 = vshrl.u32 %v1887, 7
        %v1889 = vsub.s32 0, %v1888
        %v1890 = vrot.slane %v1875, %v1889
        %v1891 = vlaneseq
        %v1892 = vshrl.u32 %v1891, 7
        %v1893 = vsub.s32 0, %v1892
        %v1894 = vrot.slane %v1877, %v1893
        %v1895 = vlaneseq
        %v1896 = vshrl.u32 %v1895, 7
        %v1897 = vsub.s32 0, %v1896
        %v1898 = vrot.slane %v1860, %v1897
        %v1899 = vlaneseq
        %v1900 = vshrl.u32 %v1899, 7
        %v1901 = vsub.s32 0, %v1900
        %v1902 = vrot.slane %v1874, %v1901
        %v1903 = vlaneseq
        %v1904 = vshrl.u32 %v1903, 7
        %v1905 = vsub.s32 0, %v1904
        %v1906 = vrot.slane %v1876, %v1905
        %v1907 = vlaneseq
        %v1908 = vshrl.u32 %v1907, 7
        %v1909 = vsub.s32 0, %v1908
        %v1910 = vrot.slane %v1878, %v1909
        %1911 = vrot.lane.b32.xlu0 %v1882, 96
        %v1912 = vpop.permute.xlu0 %1911
        %1913 = vrot.lane.b32.xlu0 %v1886, 96
        %v1914 = vpop.permute.xlu0 %1913
        %1915 = vrot.lane.b32.xlu0 %v1890, 96
        %v1916 = vpop.permute.xlu0 %1915
        %1917 = vrot.lane.b32.xlu0 %v1894, 96
        %v1918 = vpop.permute.xlu0 %1917
        %1919 = vrot.lane.b32.xlu0 %v1898, 96
        %v1920 = vpop.permute.xlu0 %1919
        %1921 = vrot.lane.b32.xlu0 %v1902, 96
        %v1922 = vpop.permute.xlu0 %1921
        %1923 = vrot.lane.b32.xlu0 %v1906, 96
        %v1924 = vpop.permute.xlu0 %1923
        %1925 = vrot.lane.b32.xlu0 %v1910, 96
        %v1926 = vpop.permute.xlu0 %1925
        %1935 = vst.msk [vmem:[%s360 + $0x4] sm:$0x1] %vm730, %v1912
        %1936 = vst.msk [vmem:[%s360 + $0xc] sm:$0x1] %vm730, %v1914
        %1937 = vst.msk [vmem:[%s360 + $0x14] sm:$0x1] %vm730, %v1916
        %1938 = vst.msk [vmem:[%s360 + $0x1c] sm:$0x1] %vm730, %v1918
        %1939 = vst.msk [vmem:[%s360 + $0x24] sm:$0x1] %vm730, %v1920
        %1940 = vst.msk [vmem:[%s360 + $0x2c] sm:$0x1] %vm730, %v1922
        %1941 = vst.msk [vmem:[%s360 + $0x34] sm:$0x1] %vm730, %v1924
        %1942 = vst.msk [vmem:[%s360 + $0x3c] sm:$0x1] %vm730, %v1926
        %v1943 = vrot.slane %v407, 5
        %v1944 = vrot.slane %v408, 4
        %v1945 = vsel %vm425, %v1944, %v1943
        %v1946 = vrot.slane %v409, 3
        %v1947 = vsel %vm428, %v1946, %v1945
        %v1948 = vrot.slane %v410, 2
        %v1949 = vsel %vm431, %v1948, %v1947
        %v1950 = vrot.slane %v411, 1
        %v1951 = vsel %vm434, %v1950, %v1949
        %v1952 = vsel %vm437, %v412, %v1951
        %v1953 = vrot.slane %v413, 7
        %v1954 = vsel %vm440, %v1953, %v1952
        %v1955 = vrot.slane %v414, 6
        %v1956 = vsel %vm443, %v1955, %v1954
        %v1957 = vsel %vm445, %v1956, 0
        %1959 = vmatprep.subr.mxu0 0.0
        %1960 = vmatpush1.msra.mxu0 %v370
        %1961 = vmatprep.subr.mxu0 0.0
        %1962 = vmatpush1.msra.mxu0 %v371
        %1963 = vmatprep.subr.mxu0 0.0
        %1964 = vmatpush1.msra.mxu0 %v372
        %1965 = vmatprep.subr.mxu0 0.0
        %1966 = vmatpush1.msra.mxu0 %v373
        %1967 = vmatprep.subr.mxu0 0.0
        %1968 = vmatpush1.msra.mxu0 0.0
        %1969 = vmatprep.subr.mxu0 0.0
        %1970 = vmatpush1.msra.mxu0 0.0
        %1971 = vmatprep.subr.mxu0 0.0
        %1972 = vmatpush1.msra.mxu0 0.0
        %1973 = vmatprep.subr.mxu0 0.0
        %1974 = vmatpush1.msra.mxu0 0.0
        %1975 = vmatprep.subr.mxu0 0.0
        %1976 = vmatpush1.msra.mxu0 0.0
        %1977 = vmatprep.subr.mxu0 0.0
        %1978 = vmatpush1.msra.mxu0 0.0
        %1979 = vmatprep.subr.mxu0 0.0
        %1980 = vmatpush1.msra.mxu0 0.0
        %1981 = vmatprep.subr.mxu0 0.0
        %1982 = vmatpush1.msra.mxu0 0.0
        %1983 = vmatprep.subr.mxu0 0.0
        %1984 = vmatpush1.msra.mxu0 0.0
        %1985 = vmatprep.subr.mxu0 0.0
        %1986 = vmatpush1.msra.mxu0 0.0
        %1987 = vmatprep.subr.mxu0 0.0
        %1988 = vmatpush1.msra.mxu0 0.0
        %1989 = vmatprep.subr.mxu0 0.0
        %1990 = vmatpush1.msra.mxu0 0.0
        %1991 = vmatprep.subr.mxu0 0.0
        %1992 = vmatpush1.msra.mxu0 0.0
        %1993 = vmatprep.subr.mxu0 0.0
        %1994 = vmatpush1.msra.mxu0 0.0
        %1995 = vmatprep.subr.mxu0 0.0
        %1996 = vmatpush1.msra.mxu0 0.0
        %1997 = vmatprep.subr.mxu0 0.0
        %1998 = vmatpush1.msra.mxu0 0.0
        %1999 = vmatprep.subr.mxu0 0.0
        %2000 = vmatpush1.msra.mxu0 0.0
        %2001 = vmatprep.subr.mxu0 0.0
        %2002 = vmatpush1.msra.mxu0 0.0
        %2003 = vmatprep.subr.mxu0 0.0
        %2004 = vmatpush1.msra.mxu0 0.0
        %2005 = vmatprep.subr.mxu0 0.0
        %2006 = vmatpush1.msra.mxu0 0.0
        %2007 = vmatprep.subr.mxu0 0.0
        %2008 = vmatpush1.msra.mxu0 0.0
        %2009 = vmatprep.subr.mxu0 0.0
        %2010 = vmatpush1.msra.mxu0 0.0
        %2011 = vmatprep.subr.mxu0 0.0
        %2012 = vmatpush1.msra.mxu0 0.0
        %2013 = vmatprep.subr.mxu0 0.0
        %2014 = vmatpush1.msra.mxu0 0.0
        %2015 = vmatprep.subr.mxu0 0.0
        %2016 = vmatpush1.msra.mxu0 0.0
        %2017 = vmatprep.subr.mxu0 0.0
        %2018 = vmatpush1.msra.mxu0 0.0
        %2019 = vmatprep.subr.mxu0 0.0
        %2020 = vmatpush1.msra.mxu0 0.0
        %2021 = vmatprep.subr.mxu0 0.0
        %2022 = vmatpush1.msra.mxu0 0.0
        %2023 = vmatprep.mubr.f32.mxu0 0.0
        %2024 = vmatmul.mubr.f32.gmra.mrb[0].mxu0 %v1957
        %v2025 = vpop.f32.mrb[0].mxu0
        %v2026 = vadd.f32 %v383, %v2025
        %v2027 = vpop.f32.mrb[0].mxu0
        %2028 = vdwg.mxu0
        %2029 = vrot.lane.b32.xlu0 %v1828, 96
        %v2030 = vpop.permute.xlu0 %2029
        %v2031 = vsel %vm445, %v2030, 0
        %2033 = vmatprep.subr.mxu0 0.0
        %2034 = vmatpush1.msra.mxu0 %v374
        %2035 = vmatprep.subr.mxu0 0.0
        %2036 = vmatpush1.msra.mxu0 %v375
        %2037 = vmatprep.subr.mxu0 0.0
        %2038 = vmatpush1.msra.mxu0 %v376
        %2039 = vmatprep.subr.mxu0 0.0
        %2040 = vmatpush1.msra.mxu0 %v377
        %2041 = vmatprep.subr.mxu0 0.0
        %2042 = vmatpush1.msra.mxu0 0.0
        %2043 = vmatprep.subr.mxu0 0.0
        %2044 = vmatpush1.msra.mxu0 0.0
        %2045 = vmatprep.subr.mxu0 0.0
        %2046 = vmatpush1.msra.mxu0 0.0
        %2047 = vmatprep.subr.mxu0 0.0
        %2048 = vmatpush1.msra.mxu0 0.0
        %2049 = vmatprep.subr.mxu0 0.0
        %2050 = vmatpush1.msra.mxu0 0.0
        %2051 = vmatprep.subr.mxu0 0.0
        %2052 = vmatpush1.msra.mxu0 0.0
        %2053 = vmatprep.subr.mxu0 0.0
        %2054 = vmatpush1.msra.mxu0 0.0
        %2055 = vmatprep.subr.mxu0 0.0
        %2056 = vmatpush1.msra.mxu0 0.0
        %2057 = vmatprep.subr.mxu0 0.0
        %2058 = vmatpush1.msra.mxu0 0.0
        %2059 = vmatprep.subr.mxu0 0.0
        %2060 = vmatpush1.msra.mxu0 0.0
        %2061 = vmatprep.subr.mxu0 0.0
        %2062 = vmatpush1.msra.mxu0 0.0
        %2063 = vmatprep.subr.mxu0 0.0
        %2064 = vmatpush1.msra.mxu0 0.0
        %2065 = vmatprep.subr.mxu0 0.0
        %2066 = vmatpush1.msra.mxu0 0.0
        %2067 = vmatprep.subr.mxu0 0.0
        %2068 = vmatpush1.msra.mxu0 0.0
        %2069 = vmatprep.subr.mxu0 0.0
        %2070 = vmatpush1.msra.mxu0 0.0
        %2071 = vmatprep.subr.mxu0 0.0
        %2072 = vmatpush1.msra.mxu0 0.0
        %2073 = vmatprep.subr.mxu0 0.0
        %2074 = vmatpush1.msra.mxu0 0.0
        %2075 = vmatprep.subr.mxu0 0.0
        %2076 = vmatpush1.msra.mxu0 0.0
        %2077 = vmatprep.subr.mxu0 0.0
        %2078 = vmatpush1.msra.mxu0 0.0
        %2079 = vmatprep.subr.mxu0 0.0
        %2080 = vmatpush1.msra.mxu0 0.0
        %2081 = vmatprep.subr.mxu0 0.0
        %2082 = vmatpush1.msra.mxu0 0.0
        %2083 = vmatprep.subr.mxu0 0.0
        %2084 = vmatpush1.msra.mxu0 0.0
        %2085 = vmatprep.subr.mxu0 0.0
        %2086 = vmatpush1.msra.mxu0 0.0
        %2087 = vmatprep.subr.mxu0 0.0
        %2088 = vmatpush1.msra.mxu0 0.0
        %2089 = vmatprep.subr.mxu0 0.0
        %2090 = vmatpush1.msra.mxu0 0.0
        %2091 = vmatprep.subr.mxu0 0.0
        %2092 = vmatpush1.msra.mxu0 0.0
        %2093 = vmatprep.subr.mxu0 0.0
        %2094 = vmatpush1.msra.mxu0 0.0
        %2095 = vmatprep.subr.mxu0 0.0
        %2096 = vmatpush1.msra.mxu0 0.0
        %2097 = vmatprep.mubr.f32.mxu0 0.0
        %2098 = vmatmul.mubr.f32.gmra.mrb[0].mxu0 %v2031
        %v2099 = vpop.f32.mrb[0].mxu0
        %v2100 = vadd.f32 0.0, %v2099
        %v2101 = vpop.f32.mrb[0].mxu0
        %2102 = vdwg.mxu0
        %v2103 = vadd.f32 %v2026, %v2100
        %v2104 = vxor.u32 %v2103, 2147483648
        %v2105 = vmul.f32 %v2104, 1.442695
        %v2106 = vpow.pop %v2105
        %v2107 = vadd.f32 %v2106, 1.0
        %v2108 = vrcp.pop %v2107
        %v2109 = vmul.f32 1.0, %v2108
        %v2110 = vadd.f32 %v2100, %v599
        %2112 = vrot.lane.b32.xlu0 %v2110, 64
        %v2113 = vpop.permute.xlu0 %2112
        %v2115 = vmul.f32 %v2109, %v2113
        %2117 = vrot.lane.b32.xlu0 %v2115, 64
        %v2118 = vpop.permute.xlu0 %2117
        %v2120 = vadd.f32 %v2026, %v2118
        %v2121 = vtanh.pop %v2120
        %v2122 = vsub.f32 1.0, %v2109
        %2124 = vrot.lane.b32.xlu0 %v2121, 96
        %v2125 = vpop.permute.xlu0 %2124
        %v2127 = vmul.f32 %v2122, %v2125
        %v2128 = vmul.f32 %v2109, %v1828
        %v2129 = vadd.f32 %v2127, %v2128
        %v2131 = vcombine.high %v2129, %v2129
        %v2133 = vunpack.c.l.s4 1966171168
        %v2134 = vunpack.c.0.s8 %v2133
        %v2135 = vlaneseq
        %v2136 = vshrl.u32 %v2135, 7
        %v2137 = vsub.s32 %v2134, %v2136
        %v2138 = vrot.slane %v2129, %v2137
        %v2140 = vunpack.c.l.s4 1966171168
        %v2141 = vunpack.c.0.s8 %v2140
        %v2142 = vlaneseq
        %v2143 = vshrl.u32 %v2142, 7
        %v2144 = vsub.s32 %v2141, %v2143
        %v2145 = vrot.slane %v2131, %v2144
        %v2146 = vcombine.high %v2138, %v2138
        %v2147 = vcombine.high %v2145, %v2145
        %v2149 = vunpack.c.l.s4 1966171168
        %v2150 = vunpack.c.0.s8 %v2149
        %v2151 = vlaneseq
        %v2152 = vshrl.u32 %v2151, 7
        %v2153 = vsub.s32 %v2150, %v2152
        %v2154 = vrot.slane %v2138, %v2153
        %v2156 = vunpack.c.l.s4 1966171168
        %v2157 = vunpack.c.0.s8 %v2156
        %v2158 = vlaneseq
        %v2159 = vshrl.u32 %v2158, 7
        %v2160 = vsub.s32 %v2157, %v2159
        %v2161 = vrot.slane %v2145, %v2160
        %v2163 = vunpack.c.l.s4 1966171168
        %v2164 = vunpack.c.0.s8 %v2163
        %v2165 = vlaneseq
        %v2166 = vshrl.u32 %v2165, 7
        %v2167 = vsub.s32 %v2164, %v2166
        %v2168 = vrot.slane %v2146, %v2167
        %v2170 = vunpack.c.l.s4 1966171168
        %v2171 = vunpack.c.0.s8 %v2170
        %v2172 = vlaneseq
        %v2173 = vshrl.u32 %v2172, 7
        %v2174 = vsub.s32 %v2171, %v2173
        %v2175 = vrot.slane %v2147, %v2174
        %v2176 = vcombine.high %v2154, %v2154
        %v2177 = vcombine.high %v2161, %v2161
        %v2178 = vcombine.high %v2168, %v2168
        %v2179 = vcombine.high %v2175, %v2175
        %v2180 = vlaneseq
        %v2181 = vshrl.u32 %v2180, 7
        %v2182 = vsub.s32 0, %v2181
        %v2183 = vrot.slane %v2154, %v2182
        %v2184 = vlaneseq
        %v2185 = vshrl.u32 %v2184, 7
        %v2186 = vsub.s32 0, %v2185
        %v2187 = vrot.slane %v2168, %v2186
        %v2188 = vlaneseq
        %v2189 = vshrl.u32 %v2188, 7
        %v2190 = vsub.s32 0, %v2189
        %v2191 = vrot.slane %v2176, %v2190
        %v2192 = vlaneseq
        %v2193 = vshrl.u32 %v2192, 7
        %v2194 = vsub.s32 0, %v2193
        %v2195 = vrot.slane %v2178, %v2194
        %v2196 = vlaneseq
        %v2197 = vshrl.u32 %v2196, 7
        %v2198 = vsub.s32 0, %v2197
        %v2199 = vrot.slane %v2161, %v2198
        %v2200 = vlaneseq
        %v2201 = vshrl.u32 %v2200, 7
        %v2202 = vsub.s32 0, %v2201
        %v2203 = vrot.slane %v2175, %v2202
        %v2204 = vlaneseq
        %v2205 = vshrl.u32 %v2204, 7
        %v2206 = vsub.s32 0, %v2205
        %v2207 = vrot.slane %v2177, %v2206
        %v2208 = vlaneseq
        %v2209 = vshrl.u32 %v2208, 7
        %v2210 = vsub.s32 0, %v2209
        %v2211 = vrot.slane %v2179, %v2210
        %2212 = vrot.lane.b32.xlu0 %v2183, 96
        %v2213 = vpop.permute.xlu0 %2212
        %2214 = vrot.lane.b32.xlu0 %v2187, 96
        %v2215 = vpop.permute.xlu0 %2214
        %2216 = vrot.lane.b32.xlu0 %v2191, 96
        %v2217 = vpop.permute.xlu0 %2216
        %2218 = vrot.lane.b32.xlu0 %v2195, 96
        %v2219 = vpop.permute.xlu0 %2218
        %2220 = vrot.lane.b32.xlu0 %v2199, 96
        %v2221 = vpop.permute.xlu0 %2220
        %2222 = vrot.lane.b32.xlu0 %v2203, 96
        %v2223 = vpop.permute.xlu0 %2222
        %2224 = vrot.lane.b32.xlu0 %v2207, 96
        %v2225 = vpop.permute.xlu0 %2224
        %2226 = vrot.lane.b32.xlu0 %v2211, 96
        %v2227 = vpop.permute.xlu0 %2226
        %2236 = vst.msk [vmem:[%s360 + $0x5] sm:$0x1] %vm730, %v2213
        %2237 = vst.msk [vmem:[%s360 + $0xd] sm:$0x1] %vm730, %v2215
        %2238 = vst.msk [vmem:[%s360 + $0x15] sm:$0x1] %vm730, %v2217
        %2239 = vst.msk [vmem:[%s360 + $0x1d] sm:$0x1] %vm730, %v2219
        %2240 = vst.msk [vmem:[%s360 + $0x25] sm:$0x1] %vm730, %v2221
        %2241 = vst.msk [vmem:[%s360 + $0x2d] sm:$0x1] %vm730, %v2223
        %2242 = vst.msk [vmem:[%s360 + $0x35] sm:$0x1] %vm730, %v2225
        %2243 = vst.msk [vmem:[%s360 + $0x3d] sm:$0x1] %vm730, %v2227
        %v2244 = vrot.slane %v407, 6
        %v2245 = vrot.slane %v408, 5
        %v2246 = vsel %vm425, %v2245, %v2244
        %v2247 = vrot.slane %v409, 4
        %v2248 = vsel %vm428, %v2247, %v2246
        %v2249 = vrot.slane %v410, 3
        %v2250 = vsel %vm431, %v2249, %v2248
        %v2251 = vrot.slane %v411, 2
        %v2252 = vsel %vm434, %v2251, %v2250
        %v2253 = vrot.slane %v412, 1
        %v2254 = vsel %vm437, %v2253, %v2252
        %v2255 = vsel %vm440, %v413, %v2254
        %v2256 = vrot.slane %v414, 7
        %v2257 = vsel %vm443, %v2256, %v2255
        %v2258 = vsel %vm445, %v2257, 0
        %2260 = vmatprep.subr.mxu0 0.0
        %2261 = vmatpush1.msra.mxu0 %v370
        %2262 = vmatprep.subr.mxu0 0.0
        %2263 = vmatpush1.msra.mxu0 %v371
        %2264 = vmatprep.subr.mxu0 0.0
        %2265 = vmatpush1.msra.mxu0 %v372
        %2266 = vmatprep.subr.mxu0 0.0
        %2267 = vmatpush1.msra.mxu0 %v373
        %2268 = vmatprep.subr.mxu0 0.0
        %2269 = vmatpush1.msra.mxu0 0.0
        %2270 = vmatprep.subr.mxu0 0.0
        %2271 = vmatpush1.msra.mxu0 0.0
        %2272 = vmatprep.subr.mxu0 0.0
        %2273 = vmatpush1.msra.mxu0 0.0
        %2274 = vmatprep.subr.mxu0 0.0
        %2275 = vmatpush1.msra.mxu0 0.0
        %2276 = vmatprep.subr.mxu0 0.0
        %2277 = vmatpush1.msra.mxu0 0.0
        %2278 = vmatprep.subr.mxu0 0.0
        %2279 = vmatpush1.msra.mxu0 0.0
        %2280 = vmatprep.subr.mxu0 0.0
        %2281 = vmatpush1.msra.mxu0 0.0
        %2282 = vmatprep.subr.mxu0 0.0
        %2283 = vmatpush1.msra.mxu0 0.0
        %2284 = vmatprep.subr.mxu0 0.0
        %2285 = vmatpush1.msra.mxu0 0.0
        %2286 = vmatprep.subr.mxu0 0.0
        %2287 = vmatpush1.msra.mxu0 0.0
        %2288 = vmatprep.subr.mxu0 0.0
        %2289 = vmatpush1.msra.mxu0 0.0
        %2290 = vmatprep.subr.mxu0 0.0
        %2291 = vmatpush1.msra.mxu0 0.0
        %2292 = vmatprep.subr.mxu0 0.0
        %2293 = vmatpush1.msra.mxu0 0.0
        %2294 = vmatprep.subr.mxu0 0.0
        %2295 = vmatpush1.msra.mxu0 0.0
        %2296 = vmatprep.subr.mxu0 0.0
        %2297 = vmatpush1.msra.mxu0 0.0
        %2298 = vmatprep.subr.mxu0 0.0
        %2299 = vmatpush1.msra.mxu0 0.0
        %2300 = vmatprep.subr.mxu0 0.0
        %2301 = vmatpush1.msra.mxu0 0.0
        %2302 = vmatprep.subr.mxu0 0.0
        %2303 = vmatpush1.msra.mxu0 0.0
        %2304 = vmatprep.subr.mxu0 0.0
        %2305 = vmatpush1.msra.mxu0 0.0
        %2306 = vmatprep.subr.mxu0 0.0
        %2307 = vmatpush1.msra.mxu0 0.0
        %2308 = vmatprep.subr.mxu0 0.0
        %2309 = vmatpush1.msra.mxu0 0.0
        %2310 = vmatprep.subr.mxu0 0.0
        %2311 = vmatpush1.msra.mxu0 0.0
        %2312 = vmatprep.subr.mxu0 0.0
        %2313 = vmatpush1.msra.mxu0 0.0
        %2314 = vmatprep.subr.mxu0 0.0
        %2315 = vmatpush1.msra.mxu0 0.0
        %2316 = vmatprep.subr.mxu0 0.0
        %2317 = vmatpush1.msra.mxu0 0.0
        %2318 = vmatprep.subr.mxu0 0.0
        %2319 = vmatpush1.msra.mxu0 0.0
        %2320 = vmatprep.subr.mxu0 0.0
        %2321 = vmatpush1.msra.mxu0 0.0
        %2322 = vmatprep.subr.mxu0 0.0
        %2323 = vmatpush1.msra.mxu0 0.0
        %2324 = vmatprep.mubr.f32.mxu0 0.0
        %2325 = vmatmul.mubr.f32.gmra.mrb[0].mxu0 %v2258
        %v2326 = vpop.f32.mrb[0].mxu0
        %v2327 = vadd.f32 %v383, %v2326
        %v2328 = vpop.f32.mrb[0].mxu0
        %2329 = vdwg.mxu0
        %2330 = vrot.lane.b32.xlu0 %v2129, 96
        %v2331 = vpop.permute.xlu0 %2330
        %v2332 = vsel %vm445, %v2331, 0
        %2334 = vmatprep.subr.mxu0 0.0
        %2335 = vmatpush1.msra.mxu0 %v374
        %2336 = vmatprep.subr.mxu0 0.0
        %2337 = vmatpush1.msra.mxu0 %v375
        %2338 = vmatprep.subr.mxu0 0.0
        %2339 = vmatpush1.msra.mxu0 %v376
        %2340 = vmatprep.subr.mxu0 0.0
        %2341 = vmatpush1.msra.mxu0 %v377
        %2342 = vmatprep.subr.mxu0 0.0
        %2343 = vmatpush1.msra.mxu0 0.0
        %2344 = vmatprep.subr.mxu0 0.0
        %2345 = vmatpush1.msra.mxu0 0.0
        %2346 = vmatprep.subr.mxu0 0.0
        %2347 = vmatpush1.msra.mxu0 0.0
        %2348 = vmatprep.subr.mxu0 0.0
        %2349 = vmatpush1.msra.mxu0 0.0
        %2350 = vmatprep.subr.mxu0 0.0
        %2351 = vmatpush1.msra.mxu0 0.0
        %2352 = vmatprep.subr.mxu0 0.0
        %2353 = vmatpush1.msra.mxu0 0.0
        %2354 = vmatprep.subr.mxu0 0.0
        %2355 = vmatpush1.msra.mxu0 0.0
        %2356 = vmatprep.subr.mxu0 0.0
        %2357 = vmatpush1.msra.mxu0 0.0
        %2358 = vmatprep.subr.mxu0 0.0
        %2359 = vmatpush1.msra.mxu0 0.0
        %2360 = vmatprep.subr.mxu0 0.0
        %2361 = vmatpush1.msra.mxu0 0.0
        %2362 = vmatprep.subr.mxu0 0.0
        %2363 = vmatpush1.msra.mxu0 0.0
        %2364 = vmatprep.subr.mxu0 0.0
        %2365 = vmatpush1.msra.mxu0 0.0
        %2366 = vmatprep.subr.mxu0 0.0
        %2367 = vmatpush1.msra.mxu0 0.0
        %2368 = vmatprep.subr.mxu0 0.0
        %2369 = vmatpush1.msra.mxu0 0.0
        %2370 = vmatprep.subr.mxu0 0.0
        %2371 = vmatpush1.msra.mxu0 0.0
        %2372 = vmatprep.subr.mxu0 0.0
        %2373 = vmatpush1.msra.mxu0 0.0
        %2374 = vmatprep.subr.mxu0 0.0
        %2375 = vmatpush1.msra.mxu0 0.0
        %2376 = vmatprep.subr.mxu0 0.0
        %2377 = vmatpush1.msra.mxu0 0.0
        %2378 = vmatprep.subr.mxu0 0.0
        %2379 = vmatpush1.msra.mxu0 0.0
        %2380 = vmatprep.subr.mxu0 0.0
        %2381 = vmatpush1.msra.mxu0 0.0
        %2382 = vmatprep.subr.mxu0 0.0
        %2383 = vmatpush1.msra.mxu0 0.0
        %2384 = vmatprep.subr.mxu0 0.0
        %2385 = vmatpush1.msra.mxu0 0.0
        %2386 = vmatprep.subr.mxu0 0.0
        %2387 = vmatpush1.msra.mxu0 0.0
        %2388 = vmatprep.subr.mxu0 0.0
        %2389 = vmatpush1.msra.mxu0 0.0
        %2390 = vmatprep.subr.mxu0 0.0
        %2391 = vmatpush1.msra.mxu0 0.0
        %2392 = vmatprep.subr.mxu0 0.0
        %2393 = vmatpush1.msra.mxu0 0.0
        %2394 = vmatprep.subr.mxu0 0.0
        %2395 = vmatpush1.msra.mxu0 0.0
        %2396 = vmatprep.subr.mxu0 0.0
        %2397 = vmatpush1.msra.mxu0 0.0
        %2398 = vmatprep.mubr.f32.mxu0 0.0
        %2399 = vmatmul.mubr.f32.gmra.mrb[0].mxu0 %v2332
        %v2400 = vpop.f32.mrb[0].mxu0
        %v2401 = vadd.f32 0.0, %v2400
        %v2402 = vpop.f32.mrb[0].mxu0
        %2403 = vdwg.mxu0
        %v2404 = vadd.f32 %v2327, %v2401
        %v2405 = vxor.u32 %v2404, 2147483648
        %v2406 = vmul.f32 %v2405, 1.442695
        %v2407 = vpow.pop %v2406
        %v2408 = vadd.f32 %v2407, 1.0
        %v2409 = vrcp.pop %v2408
        %v2410 = vmul.f32 1.0, %v2409
        %v2411 = vadd.f32 %v2401, %v599
        %2413 = vrot.lane.b32.xlu0 %v2411, 64
        %v2414 = vpop.permute.xlu0 %2413
        %v2416 = vmul.f32 %v2410, %v2414
        %2418 = vrot.lane.b32.xlu0 %v2416, 64
        %v2419 = vpop.permute.xlu0 %2418
        %v2421 = vadd.f32 %v2327, %v2419
        %v2422 = vtanh.pop %v2421
        %v2423 = vsub.f32 1.0, %v2410
        %2425 = vrot.lane.b32.xlu0 %v2422, 96
        %v2426 = vpop.permute.xlu0 %2425
        %v2428 = vmul.f32 %v2423, %v2426
        %v2429 = vmul.f32 %v2410, %v2129
        %v2430 = vadd.f32 %v2428, %v2429
        %v2432 = vcombine.high %v2430, %v2430
        %v2434 = vunpack.c.l.s4 1966171168
        %v2435 = vunpack.c.0.s8 %v2434
        %v2436 = vlaneseq
        %v2437 = vshrl.u32 %v2436, 7
        %v2438 = vsub.s32 %v2435, %v2437
        %v2439 = vrot.slane %v2430, %v2438
        %v2441 = vunpack.c.l.s4 1966171168
        %v2442 = vunpack.c.0.s8 %v2441
        %v2443 = vlaneseq
        %v2444 = vshrl.u32 %v2443, 7
        %v2445 = vsub.s32 %v2442, %v2444
        %v2446 = vrot.slane %v2432, %v2445
        %v2447 = vcombine.high %v2439, %v2439
        %v2448 = vcombine.high %v2446, %v2446
        %v2450 = vunpack.c.l.s4 1966171168
        %v2451 = vunpack.c.0.s8 %v2450
        %v2452 = vlaneseq
        %v2453 = vshrl.u32 %v2452, 7
        %v2454 = vsub.s32 %v2451, %v2453
        %v2455 = vrot.slane %v2439, %v2454
        %v2457 = vunpack.c.l.s4 1966171168
        %v2458 = vunpack.c.0.s8 %v2457
        %v2459 = vlaneseq
        %v2460 = vshrl.u32 %v2459, 7
        %v2461 = vsub.s32 %v2458, %v2460
        %v2462 = vrot.slane %v2446, %v2461
        %v2464 = vunpack.c.l.s4 1966171168
        %v2465 = vunpack.c.0.s8 %v2464
        %v2466 = vlaneseq
        %v2467 = vshrl.u32 %v2466, 7
        %v2468 = vsub.s32 %v2465, %v2467
        %v2469 = vrot.slane %v2447, %v2468
        %v2471 = vunpack.c.l.s4 1966171168
        %v2472 = vunpack.c.0.s8 %v2471
        %v2473 = vlaneseq
        %v2474 = vshrl.u32 %v2473, 7
        %v2475 = vsub.s32 %v2472, %v2474
        %v2476 = vrot.slane %v2448, %v2475
        %v2477 = vcombine.high %v2455, %v2455
        %v2478 = vcombine.high %v2462, %v2462
        %v2479 = vcombine.high %v2469, %v2469
        %v2480 = vcombine.high %v2476, %v2476
        %v2481 = vlaneseq
        %v2482 = vshrl.u32 %v2481, 7
        %v2483 = vsub.s32 0, %v2482
        %v2484 = vrot.slane %v2455, %v2483
        %v2485 = vlaneseq
        %v2486 = vshrl.u32 %v2485, 7
        %v2487 = vsub.s32 0, %v2486
        %v2488 = vrot.slane %v2469, %v2487
        %v2489 = vlaneseq
        %v2490 = vshrl.u32 %v2489, 7
        %v2491 = vsub.s32 0, %v2490
        %v2492 = vrot.slane %v2477, %v2491
        %v2493 = vlaneseq
        %v2494 = vshrl.u32 %v2493, 7
        %v2495 = vsub.s32 0, %v2494
        %v2496 = vrot.slane %v2479, %v2495
        %v2497 = vlaneseq
        %v2498 = vshrl.u32 %v2497, 7
        %v2499 = vsub.s32 0, %v2498
        %v2500 = vrot.slane %v2462, %v2499
        %v2501 = vlaneseq
        %v2502 = vshrl.u32 %v2501, 7
        %v2503 = vsub.s32 0, %v2502
        %v2504 = vrot.slane %v2476, %v2503
        %v2505 = vlaneseq
        %v2506 = vshrl.u32 %v2505, 7
        %v2507 = vsub.s32 0, %v2506
        %v2508 = vrot.slane %v2478, %v2507
        %v2509 = vlaneseq
        %v2510 = vshrl.u32 %v2509, 7
        %v2511 = vsub.s32 0, %v2510
        %v2512 = vrot.slane %v2480, %v2511
        %2513 = vrot.lane.b32.xlu0 %v2484, 96
        %v2514 = vpop.permute.xlu0 %2513
        %2515 = vrot.lane.b32.xlu0 %v2488, 96
        %v2516 = vpop.permute.xlu0 %2515
        %2517 = vrot.lane.b32.xlu0 %v2492, 96
        %v2518 = vpop.permute.xlu0 %2517
        %2519 = vrot.lane.b32.xlu0 %v2496, 96
        %v2520 = vpop.permute.xlu0 %2519
        %2521 = vrot.lane.b32.xlu0 %v2500, 96
        %v2522 = vpop.permute.xlu0 %2521
        %2523 = vrot.lane.b32.xlu0 %v2504, 96
        %v2524 = vpop.permute.xlu0 %2523
        %2525 = vrot.lane.b32.xlu0 %v2508, 96
        %v2526 = vpop.permute.xlu0 %2525
        %2527 = vrot.lane.b32.xlu0 %v2512, 96
        %v2528 = vpop.permute.xlu0 %2527
        %2537 = vst.msk [vmem:[%s360 + $0x6] sm:$0x1] %vm730, %v2514
        %2538 = vst.msk [vmem:[%s360 + $0xe] sm:$0x1] %vm730, %v2516
        %2539 = vst.msk [vmem:[%s360 + $0x16] sm:$0x1] %vm730, %v2518
        %2540 = vst.msk [vmem:[%s360 + $0x1e] sm:$0x1] %vm730, %v2520
        %2541 = vst.msk [vmem:[%s360 + $0x26] sm:$0x1] %vm730, %v2522
        %2542 = vst.msk [vmem:[%s360 + $0x2e] sm:$0x1] %vm730, %v2524
        %2543 = vst.msk [vmem:[%s360 + $0x36] sm:$0x1] %vm730, %v2526
        %2544 = vst.msk [vmem:[%s360 + $0x3e] sm:$0x1] %vm730, %v2528
        %v2545 = vrot.slane %v407, 7
        %v2546 = vrot.slane %v408, 6
        %v2547 = vsel %vm425, %v2546, %v2545
        %v2548 = vrot.slane %v409, 5
        %v2549 = vsel %vm428, %v2548, %v2547
        %v2550 = vrot.slane %v410, 4
        %v2551 = vsel %vm431, %v2550, %v2549
        %v2552 = vrot.slane %v411, 3
        %v2553 = vsel %vm434, %v2552, %v2551
        %v2554 = vrot.slane %v412, 2
        %v2555 = vsel %vm437, %v2554, %v2553
        %v2556 = vrot.slane %v413, 1
        %v2557 = vsel %vm440, %v2556, %v2555
        %v2558 = vsel %vm443, %v414, %v2557
        %v2559 = vsel %vm445, %v2558, 0
        %2561 = vmatprep.subr.mxu0 0.0
        %2562 = vmatpush1.msra.mxu0 %v370
        %2563 = vmatprep.subr.mxu0 0.0
        %2564 = vmatpush1.msra.mxu0 %v371
        %2565 = vmatprep.subr.mxu0 0.0
        %2566 = vmatpush1.msra.mxu0 %v372
        %2567 = vmatprep.subr.mxu0 0.0
        %2568 = vmatpush1.msra.mxu0 %v373
        %2569 = vmatprep.subr.mxu0 0.0
        %2570 = vmatpush1.msra.mxu0 0.0
        %2571 = vmatprep.subr.mxu0 0.0
        %2572 = vmatpush1.msra.mxu0 0.0
        %2573 = vmatprep.subr.mxu0 0.0
        %2574 = vmatpush1.msra.mxu0 0.0
        %2575 = vmatprep.subr.mxu0 0.0
        %2576 = vmatpush1.msra.mxu0 0.0
        %2577 = vmatprep.subr.mxu0 0.0
        %2578 = vmatpush1.msra.mxu0 0.0
        %2579 = vmatprep.subr.mxu0 0.0
        %2580 = vmatpush1.msra.mxu0 0.0
        %2581 = vmatprep.subr.mxu0 0.0
        %2582 = vmatpush1.msra.mxu0 0.0
        %2583 = vmatprep.subr.mxu0 0.0
        %2584 = vmatpush1.msra.mxu0 0.0
        %2585 = vmatprep.subr.mxu0 0.0
        %2586 = vmatpush1.msra.mxu0 0.0
        %2587 = vmatprep.subr.mxu0 0.0
        %2588 = vmatpush1.msra.mxu0 0.0
        %2589 = vmatprep.subr.mxu0 0.0
        %2590 = vmatpush1.msra.mxu0 0.0
        %2591 = vmatprep.subr.mxu0 0.0
        %2592 = vmatpush1.msra.mxu0 0.0
        %2593 = vmatprep.subr.mxu0 0.0
        %2594 = vmatpush1.msra.mxu0 0.0
        %2595 = vmatprep.subr.mxu0 0.0
        %2596 = vmatpush1.msra.mxu0 0.0
        %2597 = vmatprep.subr.mxu0 0.0
        %2598 = vmatpush1.msra.mxu0 0.0
        %2599 = vmatprep.subr.mxu0 0.0
        %2600 = vmatpush1.msra.mxu0 0.0
        %2601 = vmatprep.subr.mxu0 0.0
        %2602 = vmatpush1.msra.mxu0 0.0
        %2603 = vmatprep.subr.mxu0 0.0
        %2604 = vmatpush1.msra.mxu0 0.0
        %2605 = vmatprep.subr.mxu0 0.0
        %2606 = vmatpush1.msra.mxu0 0.0
        %2607 = vmatprep.subr.mxu0 0.0
        %2608 = vmatpush1.msra.mxu0 0.0
        %2609 = vmatprep.subr.mxu0 0.0
        %2610 = vmatpush1.msra.mxu0 0.0
        %2611 = vmatprep.subr.mxu0 0.0
        %2612 = vmatpush1.msra.mxu0 0.0
        %2613 = vmatprep.subr.mxu0 0.0
        %2614 = vmatpush1.msra.mxu0 0.0
        %2615 = vmatprep.subr.mxu0 0.0
        %2616 = vmatpush1.msra.mxu0 0.0
        %2617 = vmatprep.subr.mxu0 0.0
        %2618 = vmatpush1.msra.mxu0 0.0
        %2619 = vmatprep.subr.mxu0 0.0
        %2620 = vmatpush1.msra.mxu0 0.0
        %2621 = vmatprep.subr.mxu0 0.0
        %2622 = vmatpush1.msra.mxu0 0.0
        %2623 = vmatprep.subr.mxu0 0.0
        %2624 = vmatpush1.msra.mxu0 0.0
        %2625 = vmatprep.mubr.f32.mxu0 0.0
        %2626 = vmatmul.mubr.f32.gmra.mrb[0].mxu0 %v2559
        %v2627 = vpop.f32.mrb[0].mxu0
        %v2628 = vadd.f32 %v383, %v2627
        %v2629 = vpop.f32.mrb[0].mxu0
        %2630 = vdwg.mxu0
        %2631 = vrot.lane.b32.xlu0 %v2430, 96
        %v2632 = vpop.permute.xlu0 %2631
        %v2633 = vsel %vm445, %v2632, 0
        %2635 = vmatprep.subr.mxu0 0.0
        %2636 = vmatpush1.msra.mxu0 %v374
        %2637 = vmatprep.subr.mxu0 0.0
        %2638 = vmatpush1.msra.mxu0 %v375
        %2639 = vmatprep.subr.mxu0 0.0
        %2640 = vmatpush1.msra.mxu0 %v376
        %2641 = vmatprep.subr.mxu0 0.0
        %2642 = vmatpush1.msra.mxu0 %v377
        %2643 = vmatprep.subr.mxu0 0.0
        %2644 = vmatpush1.msra.mxu0 0.0
        %2645 = vmatprep.subr.mxu0 0.0
        %2646 = vmatpush1.msra.mxu0 0.0
        %2647 = vmatprep.subr.mxu0 0.0
        %2648 = vmatpush1.msra.mxu0 0.0
        %2649 = vmatprep.subr.mxu0 0.0
        %2650 = vmatpush1.msra.mxu0 0.0
        %2651 = vmatprep.subr.mxu0 0.0
        %2652 = vmatpush1.msra.mxu0 0.0
        %2653 = vmatprep.subr.mxu0 0.0
        %2654 = vmatpush1.msra.mxu0 0.0
        %2655 = vmatprep.subr.mxu0 0.0
        %2656 = vmatpush1.msra.mxu0 0.0
        %2657 = vmatprep.subr.mxu0 0.0
        %2658 = vmatpush1.msra.mxu0 0.0
        %2659 = vmatprep.subr.mxu0 0.0
        %2660 = vmatpush1.msra.mxu0 0.0
        %2661 = vmatprep.subr.mxu0 0.0
        %2662 = vmatpush1.msra.mxu0 0.0
        %2663 = vmatprep.subr.mxu0 0.0
        %2664 = vmatpush1.msra.mxu0 0.0
        %2665 = vmatprep.subr.mxu0 0.0
        %2666 = vmatpush1.msra.mxu0 0.0
        %2667 = vmatprep.subr.mxu0 0.0
        %2668 = vmatpush1.msra.mxu0 0.0
        %2669 = vmatprep.subr.mxu0 0.0
        %2670 = vmatpush1.msra.mxu0 0.0
        %2671 = vmatprep.subr.mxu0 0.0
        %2672 = vmatpush1.msra.mxu0 0.0
        %2673 = vmatprep.subr.mxu0 0.0
        %2674 = vmatpush1.msra.mxu0 0.0
        %2675 = vmatprep.subr.mxu0 0.0
        %2676 = vmatpush1.msra.mxu0 0.0
        %2677 = vmatprep.subr.mxu0 0.0
        %2678 = vmatpush1.msra.mxu0 0.0
        %2679 = vmatprep.subr.mxu0 0.0
        %2680 = vmatpush1.msra.mxu0 0.0
        %2681 = vmatprep.subr.mxu0 0.0
        %2682 = vmatpush1.msra.mxu0 0.0
        %2683 = vmatprep.subr.mxu0 0.0
        %2684 = vmatpush1.msra.mxu0 0.0
        %2685 = vmatprep.subr.mxu0 0.0
        %2686 = vmatpush1.msra.mxu0 0.0
        %2687 = vmatprep.subr.mxu0 0.0
        %2688 = vmatpush1.msra.mxu0 0.0
        %2689 = vmatprep.subr.mxu0 0.0
        %2690 = vmatpush1.msra.mxu0 0.0
        %2691 = vmatprep.subr.mxu0 0.0
        %2692 = vmatpush1.msra.mxu0 0.0
        %2693 = vmatprep.subr.mxu0 0.0
        %2694 = vmatpush1.msra.mxu0 0.0
        %2695 = vmatprep.subr.mxu0 0.0
        %2696 = vmatpush1.msra.mxu0 0.0
        %2697 = vmatprep.subr.mxu0 0.0
        %2698 = vmatpush1.msra.mxu0 0.0
        %2699 = vmatprep.mubr.f32.mxu0 0.0
        %2700 = vmatmul.mubr.f32.gmra.mrb[0].mxu0 %v2633
        %v2701 = vpop.f32.mrb[0].mxu0
        %v2702 = vadd.f32 0.0, %v2701
        %v2703 = vpop.f32.mrb[0].mxu0
        %2704 = vdwg.mxu0
        %v2705 = vadd.f32 %v2628, %v2702
        %v2706 = vxor.u32 %v2705, 2147483648
        %v2707 = vmul.f32 %v2706, 1.442695
        %v2708 = vpow.pop %v2707
        %v2709 = vadd.f32 %v2708, 1.0
        %v2710 = vrcp.pop %v2709
        %v2711 = vmul.f32 1.0, %v2710
        %v2712 = vadd.f32 %v2702, %v599
        %2714 = vrot.lane.b32.xlu0 %v2712, 64
        %v2715 = vpop.permute.xlu0 %2714
        %v2717 = vmul.f32 %v2711, %v2715
        %2719 = vrot.lane.b32.xlu0 %v2717, 64
        %v2720 = vpop.permute.xlu0 %2719
        %v2722 = vadd.f32 %v2628, %v2720
        %v2723 = vtanh.pop %v2722
        %v2724 = vsub.f32 1.0, %v2711
        %2726 = vrot.lane.b32.xlu0 %v2723, 96
        %v2727 = vpop.permute.xlu0 %2726
        %v2729 = vmul.f32 %v2724, %v2727
        %v2730 = vmul.f32 %v2711, %v2430
        %v2731 = vadd.f32 %v2729, %v2730
        %v2733 = vcombine.high %v2731, %v2731
        %v2735 = vunpack.c.l.s4 1966171168
        %v2736 = vunpack.c.0.s8 %v2735
        %v2737 = vlaneseq
        %v2738 = vshrl.u32 %v2737, 7
        %v2739 = vsub.s32 %v2736, %v2738
        %v2740 = vrot.slane %v2731, %v2739
        %v2742 = vunpack.c.l.s4 1966171168
        %v2743 = vunpack.c.0.s8 %v2742
        %v2744 = vlaneseq
        %v2745 = vshrl.u32 %v2744, 7
        %v2746 = vsub.s32 %v2743, %v2745
        %v2747 = vrot.slane %v2733, %v2746
        %v2748 = vcombine.high %v2740, %v2740
        %v2749 = vcombine.high %v2747, %v2747
        %v2751 = vunpack.c.l.s4 1966171168
        %v2752 = vunpack.c.0.s8 %v2751
        %v2753 = vlaneseq
        %v2754 = vshrl.u32 %v2753, 7
        %v2755 = vsub.s32 %v2752, %v2754
        %v2756 = vrot.slane %v2740, %v2755
        %v2758 = vunpack.c.l.s4 1966171168
        %v2759 = vunpack.c.0.s8 %v2758
        %v2760 = vlaneseq
        %v2761 = vshrl.u32 %v2760, 7
        %v2762 = vsub.s32 %v2759, %v2761
        %v2763 = vrot.slane %v2747, %v2762
        %v2765 = vunpack.c.l.s4 1966171168
        %v2766 = vunpack.c.0.s8 %v2765
        %v2767 = vlaneseq
        %v2768 = vshrl.u32 %v2767, 7
        %v2769 = vsub.s32 %v2766, %v2768
        %v2770 = vrot.slane %v2748, %v2769
        %v2772 = vunpack.c.l.s4 1966171168
        %v2773 = vunpack.c.0.s8 %v2772
        %v2774 = vlaneseq
        %v2775 = vshrl.u32 %v2774, 7
        %v2776 = vsub.s32 %v2773, %v2775
        %v2777 = vrot.slane %v2749, %v2776
        %v2778 = vcombine.high %v2756, %v2756
        %v2779 = vcombine.high %v2763, %v2763
        %v2780 = vcombine.high %v2770, %v2770
        %v2781 = vcombine.high %v2777, %v2777
        %v2782 = vlaneseq
        %v2783 = vshrl.u32 %v2782, 7
        %v2784 = vsub.s32 0, %v2783
        %v2785 = vrot.slane %v2756, %v2784
        %v2786 = vlaneseq
        %v2787 = vshrl.u32 %v2786, 7
        %v2788 = vsub.s32 0, %v2787
        %v2789 = vrot.slane %v2770, %v2788
        %v2790 = vlaneseq
        %v2791 = vshrl.u32 %v2790, 7
        %v2792 = vsub.s32 0, %v2791
        %v2793 = vrot.slane %v2778, %v2792
        %v2794 = vlaneseq
        %v2795 = vshrl.u32 %v2794, 7
        %v2796 = vsub.s32 0, %v2795
        %v2797 = vrot.slane %v2780, %v2796
        %v2798 = vlaneseq
        %v2799 = vshrl.u32 %v2798, 7
        %v2800 = vsub.s32 0, %v2799
        %v2801 = vrot.slane %v2763, %v2800
        %v2802 = vlaneseq
        %v2803 = vshrl.u32 %v2802, 7
        %v2804 = vsub.s32 0, %v2803
        %v2805 = vrot.slane %v2777, %v2804
        %v2806 = vlaneseq
        %v2807 = vshrl.u32 %v2806, 7
        %v2808 = vsub.s32 0, %v2807
        %v2809 = vrot.slane %v2779, %v2808
        %v2810 = vlaneseq
        %v2811 = vshrl.u32 %v2810, 7
        %v2812 = vsub.s32 0, %v2811
        %v2813 = vrot.slane %v2781, %v2812
        %2814 = vrot.lane.b32.xlu0 %v2785, 96
        %v2815 = vpop.permute.xlu0 %2814
        %2816 = vrot.lane.b32.xlu0 %v2789, 96
        %v2817 = vpop.permute.xlu0 %2816
        %2818 = vrot.lane.b32.xlu0 %v2793, 96
        %v2819 = vpop.permute.xlu0 %2818
        %2820 = vrot.lane.b32.xlu0 %v2797, 96
        %v2821 = vpop.permute.xlu0 %2820
        %2822 = vrot.lane.b32.xlu0 %v2801, 96
        %v2823 = vpop.permute.xlu0 %2822
        %2824 = vrot.lane.b32.xlu0 %v2805, 96
        %v2825 = vpop.permute.xlu0 %2824
        %2826 = vrot.lane.b32.xlu0 %v2809, 96
        %v2827 = vpop.permute.xlu0 %2826
        %2828 = vrot.lane.b32.xlu0 %v2813, 96
        %v2829 = vpop.permute.xlu0 %2828
        %2838 = vst.msk [vmem:[%s360 + $0x7] sm:$0x1] %vm730, %v2815
        %2839 = vst.msk [vmem:[%s360 + $0xf] sm:$0x1] %vm730, %v2817
        %2840 = vst.msk [vmem:[%s360 + $0x17] sm:$0x1] %vm730, %v2819
        %2841 = vst.msk [vmem:[%s360 + $0x1f] sm:$0x1] %vm730, %v2821
        %2842 = vst.msk [vmem:[%s360 + $0x27] sm:$0x1] %vm730, %v2823
        %2843 = vst.msk [vmem:[%s360 + $0x2f] sm:$0x1] %vm730, %v2825
        %2844 = vst.msk [vmem:[%s360 + $0x37] sm:$0x1] %vm730, %v2827
        %2845 = vst.msk [vmem:[%s360 + $0x3f] sm:$0x1] %vm730, %v2829
        %2846 = vrot.lane.b32.xlu0 %v2731, 96
        %v2847 = vpop.permute.xlu0 %2846
        %2849 = vst.msk [vmem:[#allocation2] sm:$0xff] %vm445, %v2847
        %s2850 = sand.u32 %s189, 1
        %s2851 = scalar_lea.sflag [#allocation5], %s2850
        %s2852 = sand.u32 %s189, 1
        %s2853 = smul.addr %s2852, 64
        %s2854 = scalar_lea.vmem [#allocation11], %s2853
        // Predicated region
        $region65: #{frequency_delayed_stack.1} parent=43 // pred_check
          %p2855 = pneg %p199
        $region66: #{frequency_delayed_stack.1} parent=43 // pred_check_branch
          %2857 = sbr.rel (%p2855) target = $region68
        $region67: #{frequency_delayed_stack.1} parent=43 // pred_region
          %s2858 = smul.u32 8, %s31
          %s2860 = ssub.s32 1024, 1024
          %2861 = vsyncadd %s2851, %s2860
          %s2862 = smul.addr %s2858, 2
          %s2863 = sadd.s32 %s32, %s2862
          %s2864 = smul.addr %s2863, 128
          %s2865 = scalar_lea.hbm %s6, %s2864
          %s2866 = sshll.u32 %s2854, 4
          %s2867 = int_to_ptr.vmem [resolvable:$true] %s2866
          %2872 = dma.vmem_to_hbm [thread:$0]  %s2867, 1024, %s2865, %s2851, 128, 256, 8
        $region68: #{frequency_delayed_stack.1} parent=43 // pred_fallthru
          _
      $region44: #{frequency_delayed_stack.1} parent=5 // pred_fallthru
        _
      %p2873 = scmp.le.s32.totalorder 2, %s22
      // Predicated region
      $region69: #{frequency_delayed_stack.1} parent=5 // pred_check
        %p2874 = pneg %p2873
      $region70: #{frequency_delayed_stack.1} parent=5 // pred_check_branch
        %2876 = sbr.rel (%p2874) target = $region72
      $region71: #{frequency_delayed_stack.1} parent=5 // pred_region
        %s2877 = ssub.s32 %s22, 2
        // Predicated region
        $region73: #{frequency_delayed_stack.1} parent=71 // pred_check
          %p2878 = pneg %p205
        $region74: #{frequency_delayed_stack.1} parent=71 // pred_check_branch
          %2880 = sbr.rel (%p2878) target = $region76
        $region75: #{frequency_delayed_stack.1} parent=71 // pred_region
          %s2881 = sand.u32 %s190, 1
          %s2882 = scalar_lea.sflag [#allocation5], %s2881
          %s2883 = sand.u32 %s190, 1
          %s2884 = smul.addr %s2883, 64
          %s2885 = scalar_lea.vmem [#allocation11], %s2884
          %2886 = dma.done %s2882, 1024
        $region76: #{frequency_delayed_stack.1} parent=71 // pred_fallthru
          _
      $region72: #{frequency_delayed_stack.1} parent=5 // pred_fallthru
        _
    $region6: #{frequency_delayed_stack.1} parent=1 // loop_footer
      %s26 = sadd.s32 1, %s22
    $region7: #{frequency_delayed_stack.1} parent=1 // loop_footer_branch
      %21 = sbr.rel target = $region3
    $region8: #{frequency_delayed_stack.1} parent=1 // loop_exit
      _
    %2887 = vsyncpa [#allocation4], 1
    %s2888 = scalar_lea.sflag [#allocation4], 1
    %2889 = vsyncpa %s2888, 1
    %2890 = vsyncpa [#allocation7], 1
    %s2891 = scalar_lea.sflag [#allocation7], 1
    %2892 = vsyncpa %s2891, 1
    %2893 = vsyncpa [#allocation10], 1
    %2894 = vsyncpa [#allocation5], 1
    %s2895 = scalar_lea.sflag [#allocation5], 1
    %2896 = vsyncpa %s2895, 1

</llo_original>
